<compile_context>
chip_gen: v7x
topology: tpu7x:2x2x1
jax: 0.10.0
libtpu: 0.0.40
codegen_flags: <defaults>
</compile_context>

<pallas_src>
import functools

import jax
import jax.numpy as jnp
from jax.experimental import pallas as pl
from jax.experimental.pallas import tpu as pltpu


# ----------------------------------------------------------------------------
# Small-scale stand-in dimensions (ResNet50/CXR-BERT real dims in comments).
# ----------------------------------------------------------------------------
B = 8            # batch
C_IN = 4         # image channels (real: 3)
H = W = 16       # spatial (real: 224)
D_IMG = 256      # encoder feature dim (real: 2048)
D_HID = 256      # projection hidden dim (real: 2048)
D_OUT = 128      # projection output dim (real: 1024)
D_TXT = 128      # text hidden size (real: 768)
D_IN_MAX = D_IMG # padded common input dim for the fused projection kernel
SEQ = 8          # token sequence length (real: 512)
VOCAB = 32
BN_EPS = 1e-5

# Tile sizes (lane-dense: multiples of 128 on the last dim).
THW = 128        # spatial tile for the encoder   (real: e.g. 512)
TN_IMG = 128     # output-channel tile for encoder (real: e.g. 256)
TN_HID = 128     # hidden tile for the proj heads  (real: e.g. 512)

assert (H * W) % THW == 0 and D_IMG % TN_IMG == 0 and D_HID % TN_HID == 0


# ----------------------------------------------------------------------------
# Kernel 1: image-encoder stand-in.
#   1x1 conv (channel contraction) + ReLU + global average pool.
#   grid = (D_IMG tiles [parallel], spatial tiles [arbitrary/reduction])
# ----------------------------------------------------------------------------
def encoder_kernel(x_ref, w_ref, o_ref, acc_ref):
    # x_ref: [B, THW, C_IN] bf16   w_ref: [C_IN, TN_IMG] bf16
    # o_ref: [B, TN_IMG] f32       acc_ref: [B, TN_IMG] f32 scratch
    hw = pl.program_id(1)

    @pl.when(hw == 0)
    def _():
        acc_ref[...] = jnp.zeros_like(acc_ref)

    # Channel contraction (K = C_IN is tiny; at real ResNet dims this stem
    # would be restructured into a large-M 2-D matmul / VPU FMA form).
    h = jax.lax.dot_general(
        x_ref[...], w_ref[...],
        dimension_numbers=(((2,), (0,)), ((), ())),
        preferred_element_type=jnp.float32,
    )                                      # [B, THW, TN_IMG] f32
    h = jnp.maximum(h, 0.0)                # ReLU
    acc_ref[...] += jnp.sum(h, axis=1)     # partial spatial sum

    @pl.when(hw == pl.num_programs(1) - 1)
    def _():
        # finalize: divide by total spatial size -> global average pool
        o_ref[...] = (acc_ref[...] * (1.0 / float(H * W))).astype(o_ref.dtype)


def encode_image(img_nchw, w_stem_bf16):
    # PyTorch gives NCHW; channels-last + flatten spatial, cast to bf16.
    x = jnp.transpose(img_nchw, (0, 2, 3, 1)).reshape(B, H * W, C_IN)
    x = x.astype(jnp.bfloat16)
    return pl.pallas_call(
        encoder_kernel,
        out_shape=jax.ShapeDtypeStruct((B, D_IMG), jnp.float32),
        grid=(D_IMG // TN_IMG, (H * W) // THW),
        in_specs=[
            pl.BlockSpec((B, THW, C_IN), lambda j, hw: (0, hw, 0)),
            pl.BlockSpec((C_IN, TN_IMG), lambda j, hw: (0, j)),
        ],
        out_specs=pl.BlockSpec((B, TN_IMG), lambda j, hw: (0, j)),
        scratch_shapes=[pltpu.VMEM((B, TN_IMG), jnp.float32)],
        compiler_params=pltpu.CompilerParams(
            dimension_semantics=("parallel", "arbitrary")),
    )(x, w_stem_bf16)


# ----------------------------------------------------------------------------
# Kernel 2: BOTH projection heads fused in one call.
#   For each head i and hidden tile k:
#     h_k  = x_i @ W1_i[:, k]  + b1_i[k]          (bf16 MXU, f32 acc)
#     h_k  = BN1(h_k) (per-feature batch stats -> column tile self-contained)
#     h_k  = ReLU(h_k)
#     acc += h_k @ W2_i[k, :]                      (bf16 MXU, f32 acc)
#   last k: y = acc + b2_i ; output = BN2(y) (affine=False)
#   grid = (2 heads [parallel], D_HID // TN_HID [arbitrary/reduction])
# ----------------------------------------------------------------------------
def proj_pair_kernel(x_ref, w1_ref, b1_ref, g_ref, be_ref, w2_ref, b2_ref,
                     o_ref, acc_ref):
    k = pl.program_id(1)

    @pl.when(k == 0)
    def _():
        acc_ref[...] = jnp.zeros_like(acc_ref)

    x = x_ref[0]                                      # [B, D_IN_MAX] bf16
    w1 = w1_ref[0]                                    # [D_IN_MAX, TN_HID] bf16
    h = jnp.dot(x, w1, preferred_element_type=jnp.float32) + b1_ref[0]

    # BatchNorm1d (training-mode batch stats, biased variance) -- one pass.
    mu = jnp.mean(h, axis=0, keepdims=True)
    var = jnp.maximum(jnp.mean(h * h, axis=0, keepdims=True) - mu * mu, 0.0)
    h = (h - mu) * jax.lax.rsqrt(var + BN_EPS) * g_ref[0] + be_ref[0]

    # ReLU, then accumulate the second Linear over hidden tiles.
    h = jnp.maximum(h, 0.0)
    acc_ref[...] += jnp.dot(h.astype(jnp.bfloat16), w2_ref[0],
                            preferred_element_type=jnp.float32)

    @pl.when(k == pl.num_programs(1) - 1)
    def _():
        y = acc_ref[...] + b2_ref[0]
        # BatchNorm1d(affine=False), batch stats, biased variance.
        mu2 = jnp.mean(y, axis=0, keepdims=True)
        var2 = jnp.maximum(jnp.mean(y * y, axis=0, keepdims=True) - mu2 * mu2,
                           0.0)
        o_ref[0] = ((y - mu2) * jax.lax.rsqrt(var2 + BN_EPS)).astype(o_ref.dtype)


def proj_heads_fused(img_emb, txt_cls, fused):
    # Stack both heads' inputs; pad the text input dim up to D_IN_MAX (the
    # extra W1 rows for the text head are zero, so the result is unchanged).
    x_img = img_emb.astype(jnp.bfloat16)                               # [B, D_IN_MAX]
    x_txt = jnp.pad(txt_cls, ((0, 0), (0, D_IN_MAX - D_TXT)))
    x_txt = x_txt.astype(jnp.bfloat16)                                 # [B, D_IN_MAX]
    x_all = jnp.stack([x_img, x_txt], axis=0)                          # [2, B, D_IN_MAX]

    out = pl.pallas_call(
        proj_pair_kernel,
        out_shape=jax.ShapeDtypeStruct((2, B, D_OUT), jnp.float32),
        grid=(2, D_HID // TN_HID),
        in_specs=[
            pl.BlockSpec((1, B, D_IN_MAX),    lambda i, k: (i, 0, 0)),
            pl.BlockSpec((1, D_IN_MAX, TN_HID), lambda i, k: (i, 0, k)),
            pl.BlockSpec((1, 1, TN_HID),      lambda i, k: (i, 0, k)),
            pl.BlockSpec((1, 1, TN_HID),      lambda i, k: (i, 0, k)),
            pl.BlockSpec((1, 1, TN_HID),      lambda i, k: (i, 0, k)),
            pl.BlockSpec((1, TN_HID, D_OUT),  lambda i, k: (i, k, 0)),
            pl.BlockSpec((1, 1, D_OUT),       lambda i, k: (i, 0, 0)),
        ],
        out_specs=pl.BlockSpec((1, B, D_OUT), lambda i, k: (i, 0, 0)),
        scratch_shapes=[pltpu.VMEM((B, D_OUT), jnp.float32)],
        compiler_params=pltpu.CompilerParams(
            dimension_semantics=("parallel", "arbitrary")),
    )(x_all, fused["w1"], fused["b1"], fused["gamma"], fused["beta"],
      fused["w2"], fused["b2"])
    return out[0], out[1]


# ----------------------------------------------------------------------------
# Parameter construction (deterministic, synthetic; weights stored bf16).
# ----------------------------------------------------------------------------
def make_params(key):
    ks = jax.random.split(key, 8)

    def lin(k, din, dout):
        return jax.random.normal(k, (din, dout), jnp.float32) * (1.0 / jnp.sqrt(din))

    # proj_v: Linear(D_IMG,D_HID) BN ReLU Linear(D_HID,D_OUT) BN(no affine)
    w1_v, w2_v = lin(ks[2], D_IMG, D_HID), lin(ks[3], D_HID, D_OUT)
    # proj_t: Linear(D_TXT,D_HID) BN ReLU Linear(D_HID,D_OUT) BN(no affine)
    w1_t, w2_t = lin(ks[4], D_TXT, D_HID), lin(ks[5], D_HID, D_OUT)
    w1_t_pad = jnp.pad(w1_t, ((0, D_IN_MAX - D_TXT), (0, 0)))  # zero rows

    return {
        # encoder stand-in (1x1 stem)
        "w_stem": lin(ks[0], C_IN, D_IMG).astype(jnp.bfloat16),
        # lm_model stand-in (token embedding table)
        "embed": jax.random.normal(ks[1], (VOCAB, D_TXT), jnp.float32) * 0.02,
        # both projection heads stacked: index 0 = proj_v, index 1 = proj_t
        "proj_fused": {
            "w1":    jnp.stack([w1_v, w1_t_pad]).astype(jnp.bfloat16),  # [2, D_IN_MAX, D_HID]
            "b1":    jnp.zeros((2, 1, D_HID), jnp.float32),
            "gamma": jnp.ones((2, 1, D_HID), jnp.float32),
            "beta":  jnp.zeros((2, 1, D_HID), jnp.float32),
            "w2":    jnp.stack([w2_v, w2_t]).astype(jnp.bfloat16),      # [2, D_HID, D_OUT]
            "b2":    jnp.zeros((2, 1, D_OUT), jnp.float32),
        },
    }


# ----------------------------------------------------------------------------
# Full forward, mirroring ResNet_CXRBert.forward(img, input_ids, attention_mask)
# ----------------------------------------------------------------------------
@functools.partial(jax.jit, static_argnames=())
def forward(params, img, input_ids, attention_mask):
    # img_emb = self.encoder(img).view(B, C)
    img_emb = encode_image(img, params["w_stem"])                   # [B, D_IMG]

    # text_emb = self.lm_model(...).last_hidden_state[:, 0]  (frozen stand-in)
    # Only the CLS token feeds proj_t, so only position 0 is embedded.
    cls = jnp.take(params["embed"], input_ids[:, 0], axis=0)        # [B, D_TXT]
    cls = cls * attention_mask[:, 0:1].astype(jnp.float32)
    cls = jax.lax.stop_gradient(cls)                                # @torch.no_grad()

    # projection heads: one fused Pallas call for proj_v and proj_t
    proj_img_emb, proj_text_emb = proj_heads_fused(img_emb, cls,
                                                   params["proj_fused"])

    return {
        "img_emb": img_emb,
        "proj_img_emb": proj_img_emb,
        "proj_text_emb": proj_text_emb,
    }


if __name__ == "__main__":
    key = jax.random.PRNGKey(0)
    k_img, k_ids, k_par = jax.random.split(key, 3)

    img = jax.random.normal(k_img, (B, C_IN, H, W), jnp.float32)    # NCHW, like PyTorch
    input_ids = jax.random.randint(k_ids, (B, SEQ), 0, VOCAB, jnp.int32)
    attention_mask = jnp.ones((B, SEQ), jnp.int32)

    params = make_params(k_par)

    out = forward(params, img, input_ids, attention_mask)
    jax.block_until_ready(out)

    assert out["img_emb"].shape == (B, D_IMG)
    assert out["proj_img_emb"].shape == (B, D_OUT)
    assert out["proj_text_emb"].shape == (B, D_OUT)
    assert bool(jnp.all(jnp.isfinite(out["proj_img_emb"])))
    assert bool(jnp.all(jnp.isfinite(out["proj_text_emb"])))
    print("KERNEL_OK")
</pallas_src>

<mosaic_0001>
module attributes {stable_mosaic.version = 11 : i64} {
  func.func @encoder_kernel(%arg0: i32, %arg1: i32, %arg2: memref<8x128x4xbf16, #tpu.memory_space<vmem>>, %arg3: memref<4x128xbf16, #tpu.memory_space<vmem>>, %arg4: memref<8x128xf32, #tpu.memory_space<vmem>>, %arg5: memref<8x128xf32, #tpu.memory_space<vmem>>) attributes {dimension_semantics = [#tpu.dimension_semantics<parallel>, #tpu.dimension_semantics<arbitrary>], iteration_bounds = array<i64: 2, 2>, scalar_prefetch = 0 : i64, scratch_operands = 1 : i64, tpu.core_type = #tpu.core_type<tc>, window_params = [{transform_indices = @transform_0, window_bounds = array<i64: 8, 128, 4>}, {transform_indices = @transform_1, window_bounds = array<i64: 4, 128>}, {transform_indices = @transform_2, window_bounds = array<i64: 8, 128>}]} {
    %c0_i32 = arith.constant 0 : i32
    %0 = arith.cmpi eq, %arg1, %c0_i32 : i32
    %1 = arith.extui %0 : i1 to i32
    %c0_i32_0 = arith.constant 0 : i32
    %2 = arith.cmpi ne, %1, %c0_i32_0 : i32
    scf.if %2 {
      %cst_12 = arith.constant 0.000000e+00 : f32
      %15 = vector.broadcast %cst_12 : f32 to vector<8x128xf32>
      %c0_13 = arith.constant 0 : index
      %c0_14 = arith.constant 0 : index
      %16 = vector.load %arg5[%c0_13, %c0_14] : memref<8x128xf32, #tpu.memory_space<vmem>>, vector<8x128xf32>
      tpu.vector_store %arg5[%c0_13, %c0_14], %15 {strides = array<i32>} : memref<8x128xf32, #tpu.memory_space<vmem>>, vector<8x128xf32>,
    } else {
    }
    %c0 = arith.constant 0 : index
    %c0_1 = arith.constant 0 : index
    %c0_2 = arith.constant 0 : index
    %3 = vector.load %arg2[%c0, %c0_1, %c0_2] : memref<8x128x4xbf16, #tpu.memory_space<vmem>>, vector<8x128x4xbf16>
    %c0_3 = arith.constant 0 : index
    %c0_4 = arith.constant 0 : index
    %4 = vector.load %arg3[%c0_3, %c0_4] : memref<4x128xbf16, #tpu.memory_space<vmem>>, vector<4x128xbf16>
    %cst = arith.constant dense<0.000000e+00> : vector<8x128x128xf32>
    %5 = tpu.matmul %3, %4, %cst {dimension_numbers = #tpu.dot_dimension_numbers<[2], [0], [0, 1], [1], [0, 0, 0, 1, 1, 1], [], []>} : vector<8x128x4xbf16>, vector<4x128xbf16>, vector<8x128x128xf32> -> vector<8x128x128xf32>
    %cst_5 = arith.constant 0.000000e+00 : f32
    %6 = vector.broadcast %cst_5 : f32 to vector<8x128x128xf32>
    %7 = arith.maximumf %5, %6 : vector<8x128x128xf32>
    %c0_6 = arith.constant 0 : index
    %c0_7 = arith.constant 0 : index
    %8 = vector.load %arg5[%c0_6, %c0_7] : memref<8x128xf32, #tpu.memory_space<vmem>>, vector<8x128xf32>
    %cst_8 = arith.constant dense<0.000000e+00> : vector<8x128xf32>
    %9 = vector.multi_reduction <add>, %7, %cst_8 [1] : vector<8x128x128xf32> to vector<8x128xf32>
    %10 = arith.addf %8, %9 : vector<8x128xf32>
    %c0_9 = arith.constant 0 : index
    %c0_10 = arith.constant 0 : index
    %11 = vector.load %arg5[%c0_9, %c0_10] : memref<8x128xf32, #tpu.memory_space<vmem>>, vector<8x128xf32>
    tpu.vector_store %arg5[%c0_9, %c0_10], %10 {strides = array<i32>} : memref<8x128xf32, #tpu.memory_space<vmem>>, vector<8x128xf32>,
    %c1_i32 = arith.constant 1 : i32
    %12 = arith.cmpi eq, %arg1, %c1_i32 : i32
    %13 = arith.extui %12 : i1 to i32
    %c0_i32_11 = arith.constant 0 : i32
    %14 = arith.cmpi ne, %13, %c0_i32_11 : i32
    scf.if %14 {
      %c0_12 = arith.constant 0 : index
      %c0_13 = arith.constant 0 : index
      %15 = vector.load %arg5[%c0_12, %c0_13] : memref<8x128xf32, #tpu.memory_space<vmem>>, vector<8x128xf32>
      %cst_14 = arith.constant 3.906250e-03 : f32
      %16 = vector.broadcast %cst_14 : f32 to vector<8x128xf32>
      %17 = arith.mulf %15, %16 : vector<8x128xf32>
      %c0_15 = arith.constant 0 : index
      %c0_16 = arith.constant 0 : index
      %18 = vector.load %arg4[%c0_15, %c0_16] : memref<8x128xf32, #tpu.memory_space<vmem>>, vector<8x128xf32>
      tpu.vector_store %arg4[%c0_15, %c0_16], %17 {strides = array<i32>} : memref<8x128xf32, #tpu.memory_space<vmem>>, vector<8x128xf32>,
    } else {
    }
    return
  }
  func.func @transform_0(%arg0: i32, %arg1: i32) -> (i32, i32, i32) {
    %c0_i32 = arith.constant 0 : i32
    %c0_i32_0 = arith.constant 0 : i32
    %c0_i32_1 = arith.constant 0 : i32
    return %c0_i32, %arg1, %c0_i32_0 : i32, i32, i32
  }
  func.func @transform_1(%arg0: i32, %arg1: i32) -> (i32, i32) {
    %c0_i32 = arith.constant 0 : i32
    %c0_i32_0 = arith.constant 0 : i32
    return %c0_i32, %arg0 : i32, i32
  }
  func.func @transform_2(%arg0: i32, %arg1: i32) -> (i32, i32) {
    %c0_i32 = arith.constant 0 : i32
    %c0_i32_0 = arith.constant 0 : i32
    return %c0_i32, %arg0 : i32, i32
  }
}

module attributes {stable_mosaic.version = 11 : i64} {
  func.func @proj_pair_kernel(%arg0: i32, %arg1: i32, %arg2: memref<1x8x256xbf16, #tpu.memory_space<vmem>>, %arg3: memref<1x256x128xbf16, #tpu.memory_space<vmem>>, %arg4: memref<1x1x128xf32, #tpu.memory_space<vmem>>, %arg5: memref<1x1x128xf32, #tpu.memory_space<vmem>>, %arg6: memref<1x1x128xf32, #tpu.memory_space<vmem>>, %arg7: memref<1x128x128xbf16, #tpu.memory_space<vmem>>, %arg8: memref<1x1x128xf32, #tpu.memory_space<vmem>>, %arg9: memref<1x8x128xf32, #tpu.memory_space<vmem>>, %arg10: memref<8x128xf32, #tpu.memory_space<vmem>>) attributes {dimension_semantics = [#tpu.dimension_semantics<parallel>, #tpu.dimension_semantics<arbitrary>], iteration_bounds = array<i64: 2, 2>, scalar_prefetch = 0 : i64, scratch_operands = 1 : i64, tpu.core_type = #tpu.core_type<tc>, window_params = [{transform_indices = @transform_0, window_bounds = array<i64: 1, 8, 256>}, {transform_indices = @transform_1, window_bounds = array<i64: 1, 256, 128>}, {transform_indices = @transform_2, window_bounds = array<i64: 1, 1, 128>}, {transform_indices = @transform_3, window_bounds = array<i64: 1, 1, 128>}, {transform_indices = @transform_4, window_bounds = array<i64: 1, 1, 128>}, {transform_indices = @transform_5, window_bounds = array<i64: 1, 128, 128>}, {transform_indices = @transform_6, window_bounds = array<i64: 1, 1, 128>}, {transform_indices = @transform_7, window_bounds = array<i64: 1, 8, 128>}]} {
    %c0_i32 = arith.constant 0 : i32
    %0 = arith.cmpi eq, %arg1, %c0_i32 : i32
    %1 = arith.extui %0 : i1 to i32
    %c0_i32_0 = arith.constant 0 : i32
    %2 = arith.cmpi ne, %1, %c0_i32_0 : i32
    scf.if %2 {
      %cst_31 = arith.constant 0.000000e+00 : f32
      %52 = vector.broadcast %cst_31 : f32 to vector<8x128xf32>
      %c0_32 = arith.constant 0 : index
      %c0_33 = arith.constant 0 : index
      %53 = vector.load %arg10[%c0_32, %c0_33] : memref<8x128xf32, #tpu.memory_space<vmem>>, vector<8x128xf32>
      tpu.vector_store %arg10[%c0_32, %c0_33], %52 {strides = array<i32>} : memref<8x128xf32, #tpu.memory_space<vmem>>, vector<8x128xf32>,
    } else {
    }
    %c0 = arith.constant 0 : index
    %c0_1 = arith.constant 0 : index
    %c0_2 = arith.constant 0 : index
    %3 = vector.load %arg2[%c0, %c0_1, %c0_2] : memref<1x8x256xbf16, #tpu.memory_space<vmem>>, vector<1x8x256xbf16>
    %4 = vector.shape_cast %3 : vector<1x8x256xbf16> to vector<8x256xbf16>
    %c0_3 = arith.constant 0 : index
    %c0_4 = arith.constant 0 : index
    %c0_5 = arith.constant 0 : index
    %5 = vector.load %arg3[%c0_3, %c0_4, %c0_5] : memref<1x256x128xbf16, #tpu.memory_space<vmem>>, vector<1x256x128xbf16>
    %6 = vector.shape_cast %5 : vector<1x256x128xbf16> to vector<256x128xbf16>
    %cst = arith.constant dense<0.000000e+00> : vector<8x128xf32>
    %7 = tpu.matmul %4, %6, %cst {dimension_numbers = #tpu.dot_dimension_numbers<[1], [0], [0], [1], [0, 0, 1, 1], [], []>} : vector<8x256xbf16>, vector<256x128xbf16>, vector<8x128xf32> -> vector<8x128xf32>
    %c0_6 = arith.constant 0 : index
    %c0_7 = arith.constant 0 : index
    %c0_8 = arith.constant 0 : index
    %8 = vector.load %arg4[%c0_6, %c0_7, %c0_8] : memref<1x1x128xf32, #tpu.memory_space<vmem>>, vector<1x1x128xf32>
    %9 = vector.shape_cast %8 : vector<1x1x128xf32> to vector<1x128xf32>
    %10 = vector.broadcast %9 : vector<1x128xf32> to vector<8x128xf32>
    %11 = arith.addf %7, %10 : vector<8x128xf32>
    %cst_9 = arith.constant dense<0.000000e+00> : vector<128xf32>
    %12 = vector.multi_reduction <add>, %11, %cst_9 [0] : vector<8x128xf32> to vector<128xf32>
    %13 = vector.shape_cast %12 : vector<128xf32> to vector<1x128xf32>
    %cst_10 = arith.constant 8.000000e+00 : f32
    %14 = vector.broadcast %cst_10 : f32 to vector<1x128xf32>
    %15 = arith.divf %13, %14 : vector<1x128xf32>
    %16 = arith.mulf %11, %11 : vector<8x128xf32>
    %cst_11 = arith.constant dense<0.000000e+00> : vector<128xf32>
    %17 = vector.multi_reduction <add>, %16, %cst_11 [0] : vector<8x128xf32> to vector<128xf32>
    %18 = vector.shape_cast %17 : vector<128xf32> to vector<1x128xf32>
    %cst_12 = arith.constant 8.000000e+00 : f32
    %19 = vector.broadcast %cst_12 : f32 to vector<1x128xf32>
    %20 = arith.divf %18, %19 : vector<1x128xf32>
    %21 = arith.mulf %15, %15 : vector<1x128xf32>
    %22 = arith.subf %20, %21 : vector<1x128xf32>
    %cst_13 = arith.constant 0.000000e+00 : f32
    %23 = vector.broadcast %cst_13 : f32 to vector<1x128xf32>
    %24 = arith.maximumf %22, %23 : vector<1x128xf32>
    %25 = vector.broadcast %15 : vector<1x128xf32> to vector<8x128xf32>
    %26 = arith.subf %11, %25 : vector<8x128xf32>
    %cst_14 = arith.constant 9.99999974E-6 : f32
    %27 = vector.broadcast %cst_14 : f32 to vector<1x128xf32>
    %28 = arith.addf %24, %27 : vector<1x128xf32>
    %29 = math.rsqrt %28 : vector<1x128xf32>
    %30 = vector.broadcast %29 : vector<1x128xf32> to vector<8x128xf32>
    %31 = arith.mulf %26, %30 : vector<8x128xf32>
    %c0_15 = arith.constant 0 : index
    %c0_16 = arith.constant 0 : index
    %c0_17 = arith.constant 0 : index
    %32 = vector.load %arg5[%c0_15, %c0_16, %c0_17] : memref<1x1x128xf32, #tpu.memory_space<vmem>>, vector<1x1x128xf32>
    %33 = vector.shape_cast %32 : vector<1x1x128xf32> to vector<1x128xf32>
    %34 = vector.broadcast %33 : vector<1x128xf32> to vector<8x128xf32>
    %35 = arith.mulf %31, %34 : vector<8x128xf32>
    %c0_18 = arith.constant 0 : index
    %c0_19 = arith.constant 0 : index
    %c0_20 = arith.constant 0 : index
    %36 = vector.load %arg6[%c0_18, %c0_19, %c0_20] : memref<1x1x128xf32, #tpu.memory_space<vmem>>, vector<1x1x128xf32>
    %37 = vector.shape_cast %36 : vector<1x1x128xf32> to vector<1x128xf32>
    %38 = vector.broadcast %37 : vector<1x128xf32> to vector<8x128xf32>
    %39 = arith.addf %35, %38 : vector<8x128xf32>
    %cst_21 = arith.constant 0.000000e+00 : f32
    %40 = vector.broadcast %cst_21 : f32 to vector<8x128xf32>
    %41 = arith.maximumf %39, %40 : vector<8x128xf32>
    %c0_22 = arith.constant 0 : index
    %c0_23 = arith.constant 0 : index
    %42 = vector.load %arg10[%c0_22, %c0_23] : memref<8x128xf32, #tpu.memory_space<vmem>>, vector<8x128xf32>
    %43 = arith.truncf %41 : vector<8x128xf32> to vector<8x128xbf16>
    %c0_24 = arith.constant 0 : index
    %c0_25 = arith.constant 0 : index
    %c0_26 = arith.constant 0 : index
    %44 = vector.load %arg7[%c0_24, %c0_25, %c0_26] : memref<1x128x128xbf16, #tpu.memory_space<vmem>>, vector<1x128x128xbf16>
    %45 = vector.shape_cast %44 : vector<1x128x128xbf16> to vector<128x128xbf16>
    %cst_27 = arith.constant dense<0.000000e+00> : vector<8x128xf32>
    %46 = tpu.matmul %43, %45, %cst_27 {dimension_numbers = #tpu.dot_dimension_numbers<[1], [0], [0], [1], [0, 0, 1, 1], [], []>} : vector<8x128xbf16>, vector<128x128xbf16>, vector<8x128xf32> -> vector<8x128xf32>
    %47 = arith.addf %42, %46 : vector<8x128xf32>
    %c0_28 = arith.constant 0 : index
    %c0_29 = arith.constant 0 : index
    %48 = vector.load %arg10[%c0_28, %c0_29] : memref<8x128xf32, #tpu.memory_space<vmem>>, vector<8x128xf32>
    tpu.vector_store %arg10[%c0_28, %c0_29], %47 {strides = array<i32>} : memref<8x128xf32, #tpu.memory_space<vmem>>, vector<8x128xf32>,
    %c1_i32 = arith.constant 1 : i32
    %49 = arith.cmpi eq, %arg1, %c1_i32 : i32
    %50 = arith.extui %49 : i1 to i32
    %c0_i32_30 = arith.constant 0 : i32
    %51 = arith.cmpi ne, %50, %c0_i32_30 : i32
    scf.if %51 {
      %c0_31 = arith.constant 0 : index
      %c0_32 = arith.constant 0 : index
      %52 = vector.load %arg10[%c0_31, %c0_32] : memref<8x128xf32, #tpu.memory_space<vmem>>, vector<8x128xf32>
      %c0_33 = arith.constant 0 : index
      %c0_34 = arith.constant 0 : index
      %c0_35 = arith.constant 0 : index
      %53 = vector.load %arg8[%c0_33, %c0_34, %c0_35] : memref<1x1x128xf32, #tpu.memory_space<vmem>>, vector<1x1x128xf32>
      %54 = vector.shape_cast %53 : vector<1x1x128xf32> to vector<1x128xf32>
      %55 = vector.broadcast %54 : vector<1x128xf32> to vector<8x128xf32>
      %56 = arith.addf %52, %55 : vector<8x128xf32>
      %cst_36 = arith.constant dense<0.000000e+00> : vector<128xf32>
      %57 = vector.multi_reduction <add>, %56, %cst_36 [0] : vector<8x128xf32> to vector<128xf32>
      %58 = vector.shape_cast %57 : vector<128xf32> to vector<1x128xf32>
      %cst_37 = arith.constant 8.000000e+00 : f32
      %59 = vector.broadcast %cst_37 : f32 to vector<1x128xf32>
      %60 = arith.divf %58, %59 : vector<1x128xf32>
      %61 = arith.mulf %56, %56 : vector<8x128xf32>
      %cst_38 = arith.constant dense<0.000000e+00> : vector<128xf32>
      %62 = vector.multi_reduction <add>, %61, %cst_38 [0] : vector<8x128xf32> to vector<128xf32>
      %63 = vector.shape_cast %62 : vector<128xf32> to vector<1x128xf32>
      %cst_39 = arith.constant 8.000000e+00 : f32
      %64 = vector.broadcast %cst_39 : f32 to vector<1x128xf32>
      %65 = arith.divf %63, %64 : vector<1x128xf32>
      %66 = arith.mulf %60, %60 : vector<1x128xf32>
      %67 = arith.subf %65, %66 : vector<1x128xf32>
      %cst_40 = arith.constant 0.000000e+00 : f32
      %68 = vector.broadcast %cst_40 : f32 to vector<1x128xf32>
      %69 = arith.maximumf %67, %68 : vector<1x128xf32>
      %70 = vector.broadcast %60 : vector<1x128xf32> to vector<8x128xf32>
      %71 = arith.subf %56, %70 : vector<8x128xf32>
      %cst_41 = arith.constant 9.99999974E-6 : f32
      %72 = vector.broadcast %cst_41 : f32 to vector<1x128xf32>
      %73 = arith.addf %69, %72 : vector<1x128xf32>
      %74 = math.rsqrt %73 : vector<1x128xf32>
      %75 = vector.broadcast %74 : vector<1x128xf32> to vector<8x128xf32>
      %76 = arith.mulf %71, %75 : vector<8x128xf32>
      %c0_42 = arith.constant 0 : index
      %c0_43 = arith.constant 0 : index
      %c0_44 = arith.constant 0 : index
      %77 = vector.load %arg9[%c0_42, %c0_43, %c0_44] : memref<1x8x128xf32, #tpu.memory_space<vmem>>, vector<1x8x128xf32>
      %78 = vector.shape_cast %77 : vector<1x8x128xf32> to vector<8x128xf32>
      %79 = vector.shape_cast %76 : vector<8x128xf32> to vector<1x8x128xf32>
      tpu.vector_store %arg9[%c0_42, %c0_43, %c0_44], %79 {strides = array<i32>} : memref<1x8x128xf32, #tpu.memory_space<vmem>>, vector<1x8x128xf32>,
    } else {
    }
    return
  }
  func.func @transform_0(%arg0: i32, %arg1: i32) -> (i32, i32, i32) {
    %c0_i32 = arith.constant 0 : i32
    %c0_i32_0 = arith.constant 0 : i32
    %c0_i32_1 = arith.constant 0 : i32
    return %arg0, %c0_i32, %c0_i32_0 : i32, i32, i32
  }
  func.func @transform_1(%arg0: i32, %arg1: i32) -> (i32, i32, i32) {
    %c0_i32 = arith.constant 0 : i32
    %c0_i32_0 = arith.constant 0 : i32
    return %arg0, %c0_i32, %arg1 : i32, i32, i32
  }
  func.func @transform_2(%arg0: i32, %arg1: i32) -> (i32, i32, i32) {
    %c0_i32 = arith.constant 0 : i32
    %c0_i32_0 = arith.constant 0 : i32
    return %arg0, %c0_i32, %arg1 : i32, i32, i32
  }
  func.func @transform_3(%arg0: i32, %arg1: i32) -> (i32, i32, i32) {
    %c0_i32 = arith.constant 0 : i32
    %c0_i32_0 = arith.constant 0 : i32
    return %arg0, %c0_i32, %arg1 : i32, i32, i32
  }
  func.func @transform_4(%arg0: i32, %arg1: i32) -> (i32, i32, i32) {
    %c0_i32 = arith.constant 0 : i32
    %c0_i32_0 = arith.constant 0 : i32
    return %arg0, %c0_i32, %arg1 : i32, i32, i32
  }
  func.func @transform_5(%arg0: i32, %arg1: i32) -> (i32, i32, i32) {
    %c0_i32 = arith.constant 0 : i32
    %c0_i32_0 = arith.constant 0 : i32
    return %arg0, %arg1, %c0_i32 : i32, i32, i32
  }
  func.func @transform_6(%arg0: i32, %arg1: i32) -> (i32, i32, i32) {
    %c0_i32 = arith.constant 0 : i32
    %c0_i32_0 = arith.constant 0 : i32
    %c0_i32_1 = arith.constant 0 : i32
    return %arg0, %c0_i32, %c0_i32_0 : i32, i32, i32
  }
  func.func @transform_7(%arg0: i32, %arg1: i32) -> (i32, i32, i32) {
    %c0_i32 = arith.constant 0 : i32
    %c0_i32_0 = arith.constant 0 : i32
    %c0_i32_1 = arith.constant 0 : i32
    return %arg0, %c0_i32, %c0_i32_0 : i32, i32, i32
  }
}

</mosaic_0001>

<llo_original>
// kernel: forward.3
$region0: #{forward.3}
  #allocation0 [shape = 'u32[]', space=smem, size = 0x4, offset = 0x4, fixed_abs, tag = 'smem constant byte address 0x4 - core index']
  #allocation1 [shape = 'u32[144,128]{1,0:T(1,128)}', space=vmem, size = 0x12000, scoped, tag = 'internal scratch']
  #allocation2 [shape = 'f32[8,128]{1,0:T(8,128)}', space=vmem, size = 0x1000, scoped, tag = 'scratch operand']
  %s0 = inlined_call_operand.vmem [shape: bf16[2,8,256], index: 0, kind: input, shape index: {}]
  %s1 = inlined_call_operand.vmem [shape: bf16[2,256,256], index: 1, kind: input, shape index: {}]
  %s2 = inlined_call_operand.vmem [shape: f32[2,1,256], index: 2, kind: input, shape index: {}]
  %s3 = inlined_call_operand.vmem [shape: f32[2,1,256], index: 3, kind: input, shape index: {}]
  %s4 = inlined_call_operand.vmem [shape: f32[2,1,256], index: 4, kind: input, shape index: {}]
  %s5 = inlined_call_operand.vmem [shape: bf16[2,256,128], index: 5, kind: input, shape index: {}]
  %s6 = inlined_call_operand.vmem [shape: f32[2,1,128], index: 6, kind: input, shape index: {}]
  %s7 = inlined_call_operand.vmem [shape: f32[2,8,128], index: 7, kind: output, shape index: {}]
  %s8 = sld [smem:[#allocation0]]
  $region110: #{forward.3} parent=0
    _
  %s10 = ssub.s32 1, %s8
  %s11 = scalar_select 0, %s10, %s8
  $region1: #{forward.3} parent=0
    #allocation3 [shape = 'u8[131072]{0}', space=vmem, size = 0x20000, scoped, tag = 'input window, operand 1']
    loop: start=0, step=1, limit=6
    $region2: #{forward.3} parent=1 // loop_pre_header
      _
    $region3: #{forward.3} parent=1 // loop_header
      %s13 = sphi 0, %s17
      %p14 = scmp.ge.s32.totalorder %s13, 6
      %s20 = sphi 0, %s32
      %s21 = sphi 0, %s28
      %s22 = sphi 0, %s20
      %s23 = sphi 0, %s21
      %s24 = sphi 0, %s22
      %s25 = sphi 0, %s23
      %s35 = sphi 0, %s37
      %s38 = sphi 0, %s35
      %s39 = sphi 0, %s38
      %s55 = sphi 0, %s39
      %s63 = sphi 0, %s65
      %s66 = sphi 0, %s63
      %s67 = sphi 0, %s66
      %s83 = sphi 0, %s67
      %s91 = sphi 0, %s93
      %s94 = sphi 0, %s91
      %s95 = sphi 0, %s94
      %s111 = sphi 0, %s95
      %s119 = sphi 0, %s121
      %s122 = sphi 0, %s119
      %s123 = sphi 0, %s122
      %s139 = sphi 0, %s123
      %s147 = sphi 0, %s149
      %s150 = sphi 0, %s147
      %s151 = sphi 0, %s150
      %s167 = sphi 0, %s151
      %s175 = sphi 0, %s177
      %s178 = sphi 0, %s175
      %s179 = sphi 0, %s178
      %s195 = sphi 0, %s179
      %s201 = sphi 0, %s203
      %s204 = sphi 0, %s201
      %s205 = sphi 0, %s204
      %s221 = sphi 0, %s205
      %s227 = sphi 0, %s229
      %s230 = sphi 0, %s227
      %s231 = sphi 0, %s230
      %s247 = sphi 0, %s231
    $region4: #{forward.3} parent=1 // loop_header_branch
      %16 = sbr.rel (%p14) target = $region8
    $region5: #{forward.3} parent=1 // loop_body
      %s18 = ssub.s32 %s13, 1
      %s19 = ssub.s32 %s13, 2
      %s26 = sadd.s32 1, %s21
      %p27 = scmp.ge.s32.totalorder %s26, 2
      %s28 = scalar_select %p27, 0, %s26
      %s29 = sadd.s32 1, %s20
      %s30 = scalar_select %p27, %s29, %s20
      %p31 = scmp.ge.s32.totalorder %s30, 2
      %s32 = scalar_select %p31, 0, %s30
      %s33 = ssub.s32 %s20, %s32
      %p34 = scmp.eq.s32.totalorder %s33, 0
      %s36 = sadd.s32 %s35, 1
      %s37 = scalar_select %p34, %s35, %s36
      %p40 = pneg %p34
      %p41 = scmp.eq.s32.totalorder %s13, 3
      %p42 = por %p40, %p41
      %p43 = scmp.ne.s32.totalorder %s35, %s38
      %p44 = scmp.eq.s32.totalorder %s13, 0
      %p45 = por %p43, %p44
      %p46 = scmp.ne.s32.totalorder %s35, %s38
      %p47 = scmp.eq.s32.totalorder %s18, 3
      %p48 = por %p46, %p47
      %p49 = scmp.ne.s32.totalorder %s38, %s39
      %p50 = scmp.eq.s32.totalorder %s18, 0
      %p51 = por %p49, %p50
      %p52 = scmp.ne.s32.totalorder %s38, %s39
      %p53 = scmp.eq.s32.totalorder %s19, 3
      %p54 = por %p52, %p53
      %p56 = scmp.ne.s32.totalorder %s39, %s55
      %p57 = scmp.eq.s32.totalorder %s19, 0
      %p58 = por %p56, %p57
      %s59 = ssub.s32 %s20, %s32
      %s60 = ssub.s32 %s21, %s28
      %s61 = sor.u32 %s59, %s60
      %p62 = scmp.eq.s32.totalorder %s61, 0
      %s64 = sadd.s32 %s63, 1
      %s65 = scalar_select %p62, %s63, %s64
      %p68 = pneg %p62
      %p69 = scmp.eq.s32.totalorder %s13, 3
      %p70 = por %p68, %p69
      %p71 = scmp.ne.s32.totalorder %s63, %s66
      %p72 = scmp.eq.s32.totalorder %s13, 0
      %p73 = por %p71, %p72
      %p74 = scmp.ne.s32.totalorder %s63, %s66
      %p75 = scmp.eq.s32.totalorder %s18, 3
      %p76 = por %p74, %p75
      %p77 = scmp.ne.s32.totalorder %s66, %s67
      %p78 = scmp.eq.s32.totalorder %s18, 0
      %p79 = por %p77, %p78
      %p80 = scmp.ne.s32.totalorder %s66, %s67
      %p81 = scmp.eq.s32.totalorder %s19, 3
      %p82 = por %p80, %p81
      %p84 = scmp.ne.s32.totalorder %s67, %s83
      %p85 = scmp.eq.s32.totalorder %s19, 0
      %p86 = por %p84, %p85
      %s87 = ssub.s32 %s20, %s32
      %s88 = ssub.s32 %s21, %s28
      %s89 = sor.u32 %s87, %s88
      %p90 = scmp.eq.s32.totalorder %s89, 0
      %s92 = sadd.s32 %s91, 1
      %s93 = scalar_select %p90, %s91, %s92
      %p96 = pneg %p90
      %p97 = scmp.eq.s32.totalorder %s13, 3
      %p98 = por %p96, %p97
      %p99 = scmp.ne.s32.totalorder %s91, %s94
      %p100 = scmp.eq.s32.totalorder %s13, 0
      %p101 = por %p99, %p100
      %p102 = scmp.ne.s32.totalorder %s91, %s94
      %p103 = scmp.eq.s32.totalorder %s18, 3
      %p104 = por %p102, %p103
      %p105 = scmp.ne.s32.totalorder %s94, %s95
      %p106 = scmp.eq.s32.totalorder %s18, 0
      %p107 = por %p105, %p106
      %p108 = scmp.ne.s32.totalorder %s94, %s95
      %p109 = scmp.eq.s32.totalorder %s19, 3
      %p110 = por %p108, %p109
      %p112 = scmp.ne.s32.totalorder %s95, %s111
      %p113 = scmp.eq.s32.totalorder %s19, 0
      %p114 = por %p112, %p113
      %s115 = ssub.s32 %s20, %s32
      %s116 = ssub.s32 %s21, %s28
      %s117 = sor.u32 %s115, %s116
      %p118 = scmp.eq.s32.totalorder %s117, 0
      %s120 = sadd.s32 %s119, 1
      %s121 = scalar_select %p118, %s119, %s120
      %p124 = pneg %p118
      %p125 = scmp.eq.s32.totalorder %s13, 3
      %p126 = por %p124, %p125
      %p127 = scmp.ne.s32.totalorder %s119, %s122
      %p128 = scmp.eq.s32.totalorder %s13, 0
      %p129 = por %p127, %p128
      %p130 = scmp.ne.s32.totalorder %s119, %s122
      %p131 = scmp.eq.s32.totalorder %s18, 3
      %p132 = por %p130, %p131
      %p133 = scmp.ne.s32.totalorder %s122, %s123
      %p134 = scmp.eq.s32.totalorder %s18, 0
      %p135 = por %p133, %p134
      %p136 = scmp.ne.s32.totalorder %s122, %s123
      %p137 = scmp.eq.s32.totalorder %s19, 3
      %p138 = por %p136, %p137
      %p140 = scmp.ne.s32.totalorder %s123, %s139
      %p141 = scmp.eq.s32.totalorder %s19, 0
      %p142 = por %p140, %p141
      %s143 = ssub.s32 %s20, %s32
      %s144 = ssub.s32 %s21, %s28
      %s145 = sor.u32 %s143, %s144
      %p146 = scmp.eq.s32.totalorder %s145, 0
      %s148 = sadd.s32 %s147, 1
      %s149 = scalar_select %p146, %s147, %s148
      %p152 = pneg %p146
      %p153 = scmp.eq.s32.totalorder %s13, 3
      %p154 = por %p152, %p153
      %p155 = scmp.ne.s32.totalorder %s147, %s150
      %p156 = scmp.eq.s32.totalorder %s13, 0
      %p157 = por %p155, %p156
      %p158 = scmp.ne.s32.totalorder %s147, %s150
      %p159 = scmp.eq.s32.totalorder %s18, 3
      %p160 = por %p158, %p159
      %p161 = scmp.ne.s32.totalorder %s150, %s151
      %p162 = scmp.eq.s32.totalorder %s18, 0
      %p163 = por %p161, %p162
      %p164 = scmp.ne.s32.totalorder %s150, %s151
      %p165 = scmp.eq.s32.totalorder %s19, 3
      %p166 = por %p164, %p165
      %p168 = scmp.ne.s32.totalorder %s151, %s167
      %p169 = scmp.eq.s32.totalorder %s19, 0
      %p170 = por %p168, %p169
      %s171 = ssub.s32 %s20, %s32
      %s172 = ssub.s32 %s21, %s28
      %s173 = sor.u32 %s171, %s172
      %p174 = scmp.eq.s32.totalorder %s173, 0
      %s176 = sadd.s32 %s175, 1
      %s177 = scalar_select %p174, %s175, %s176
      %p180 = pneg %p174
      %p181 = scmp.eq.s32.totalorder %s13, 3
      %p182 = por %p180, %p181
      %p183 = scmp.ne.s32.totalorder %s175, %s178
      %p184 = scmp.eq.s32.totalorder %s13, 0
      %p185 = por %p183, %p184
      %p186 = scmp.ne.s32.totalorder %s175, %s178
      %p187 = scmp.eq.s32.totalorder %s18, 3
      %p188 = por %p186, %p187
      %p189 = scmp.ne.s32.totalorder %s178, %s179
      %p190 = scmp.eq.s32.totalorder %s18, 0
      %p191 = por %p189, %p190
      %p192 = scmp.ne.s32.totalorder %s178, %s179
      %p193 = scmp.eq.s32.totalorder %s19, 3
      %p194 = por %p192, %p193
      %p196 = scmp.ne.s32.totalorder %s179, %s195
      %p197 = scmp.eq.s32.totalorder %s19, 0
      %p198 = por %p196, %p197
      %s199 = ssub.s32 %s20, %s32
      %p200 = scmp.eq.s32.totalorder %s199, 0
      %s202 = sadd.s32 %s201, 1
      %s203 = scalar_select %p200, %s201, %s202
      %p206 = pneg %p200
      %p207 = scmp.eq.s32.totalorder %s13, 3
      %p208 = por %p206, %p207
      %p209 = scmp.ne.s32.totalorder %s201, %s204
      %p210 = scmp.eq.s32.totalorder %s13, 0
      %p211 = por %p209, %p210
      %p212 = scmp.ne.s32.totalorder %s201, %s204
      %p213 = scmp.eq.s32.totalorder %s18, 3
      %p214 = por %p212, %p213
      %p215 = scmp.ne.s32.totalorder %s204, %s205
      %p216 = scmp.eq.s32.totalorder %s18, 0
      %p217 = por %p215, %p216
      %p218 = scmp.ne.s32.totalorder %s204, %s205
      %p219 = scmp.eq.s32.totalorder %s19, 3
      %p220 = por %p218, %p219
      %p222 = scmp.ne.s32.totalorder %s205, %s221
      %p223 = scmp.eq.s32.totalorder %s19, 0
      %p224 = por %p222, %p223
      %s225 = ssub.s32 %s20, %s32
      %p226 = scmp.eq.s32.totalorder %s225, 0
      %s228 = sadd.s32 %s227, 1
      %s229 = scalar_select %p226, %s227, %s228
      %p232 = pneg %p226
      %p233 = scmp.eq.s32.totalorder %s13, 3
      %p234 = por %p232, %p233
      %p235 = scmp.ne.s32.totalorder %s227, %s230
      %p236 = scmp.eq.s32.totalorder %s13, 0
      %p237 = por %p235, %p236
      %p238 = scmp.ne.s32.totalorder %s227, %s230
      %p239 = scmp.eq.s32.totalorder %s18, 3
      %p240 = por %p238, %p239
      %p241 = scmp.ne.s32.totalorder %s230, %s231
      %p242 = scmp.eq.s32.totalorder %s18, 0
      %p243 = por %p241, %p242
      %p244 = scmp.ne.s32.totalorder %s230, %s231
      %p245 = scmp.eq.s32.totalorder %s19, 3
      %p246 = por %p244, %p245
      %p248 = scmp.ne.s32.totalorder %s231, %s247
      %p249 = scmp.eq.s32.totalorder %s19, 0
      %p250 = por %p248, %p249
      %p251 = scmp.le.s32.totalorder 1, %s13
      %p252 = scmp.lt.s32.totalorder %s13, 5
      %p253 = pnand %p251, %p252
      %p254 = pneg %p253
      // Predicated region
      $region9: #{forward.3} parent=5 // pred_check
        _
      $region10: #{forward.3} parent=5 // pred_check_branch
        %256 = sbr.rel (%p253) target = $region12
      $region11: #{forward.3} parent=5 // pred_region
        %s257 = ssub.s32 %s13, 1
      $region12: #{forward.3} parent=5 // pred_fallthru
        _
      %p258 = scmp.lt.s32.totalorder %s13, 4
      // Predicated region
      $region13: #{forward.3} parent=5 // pred_check
        %p259 = pneg %p258
      $region14: #{forward.3} parent=5 // pred_check_branch
        %261 = sbr.rel (%p259) target = $region16
      $region15: #{forward.3} parent=5 // pred_region
        // Predicated region
        $region17: #{forward.3} parent=15 // pred_check
          %p262 = pneg %p45
        $region18: #{forward.3} parent=15 // pred_check_branch
          %264 = sbr.rel (%p262) target = $region20
        $region19: #{forward.3} parent=15 // pred_region
          %p265 = scmp.lt.s32.totalorder %s20, 1
          %s266 = scalar_select %p265, %s20, 1
          %s267 = smul.addr %s266, 2
          %s268 = smul.addr %s267, 4
          %s269 = scalar_lea.vmem %s0, %s268
        $region20: #{forward.3} parent=15 // pred_fallthru
          _
        // Predicated region
        $region21: #{forward.3} parent=15 // pred_check
          %p270 = pneg %p73
        $region22: #{forward.3} parent=15 // pred_check_branch
          %272 = sbr.rel (%p270) target = $region24
        $region23: #{forward.3} parent=15 // pred_region
          %s273 = sand.u32 %s63, 1
          %s274 = sand.u32 %s63, 1
          %s275 = smul.addr %s274, 128
          %s276 = scalar_lea.vmem [#allocation3], %s275
          %s277 = smul.addr %s20, 64
          %s278 = sadd.s32 %s21, %s277
          %s279 = smul.addr %s278, 4
          %s280 = scalar_lea.vmem %s1, %s279
          // Predicated region
          $region25: #{forward.3} parent=23 // pred_check
            _
          $region26: #{forward.3} parent=23 // pred_check_branch
            %282 = sbr.rel (0) target = $region28
          $region27: #{forward.3} parent=23 // pred_region
            // Predicated region
            $region29: #{forward.3} parent=27 // pred_check
              _
            $region30: #{forward.3} parent=27 // pred_check_branch
              %284 = sbr.rel target = $region32
            $region31: #{forward.3} parent=27 // pred_region
              // Predicated region
              $region44: #{forward.3} parent=31 // pred_check
                _
              $region45: #{forward.3} parent=31 // pred_check_branch
                %361 = sbr.rel (0) target = $region47
              $region46: #{forward.3} parent=31 // pred_region
                loop: start=0, step=1, limit=1
                $region48: #{forward.3} parent=46 // loop_pre_header
                  _
                $region49: #{forward.3} parent=46 // loop_header
                  %s363 = sphi 0, %s367
                  %p364 = scmp.ge.s32.totalorder %s363, 1
                  %s368 = sphi %s280, %s280
                  %s369 = sphi %s276, %s276
                $region50: #{forward.3} parent=46 // loop_header_branch
                  %366 = sbr.rel (%p364) target = $region54
                $region51: #{forward.3} parent=46 // loop_body
                  _
                $region52: #{forward.3} parent=46 // loop_footer
                  %s367 = sadd.s32 1, %s363
                $region53: #{forward.3} parent=46 // loop_footer_branch
                  %362 = sbr.rel target = $region49
                $region54: #{forward.3} parent=46 // loop_exit
                  _
                loop: start=0, step=1, limit=1
                $region55: #{forward.3} parent=46 // loop_pre_header
                  _
                $region56: #{forward.3} parent=46 // loop_header
                  %s372 = sphi 0, %s376
                  %p373 = scmp.ge.s32.totalorder %s372, 1
                  %s377 = sphi %s280, %s280
                  %s378 = sphi %s276, %s276
                $region57: #{forward.3} parent=46 // loop_header_branch
                  %375 = sbr.rel (%p373) target = $region61
                $region58: #{forward.3} parent=46 // loop_body
                  %v379 = vld [vmem:[%s377] sm:$0xf]
                  %380 = vst [vmem:[%s378] sm:$0xf] %v379
                  %v381 = vld [vmem:[%s377 + $0x8] sm:$0xf]
                  %382 = vst [vmem:[%s378 + $0x4] sm:$0xf] %v381
                  %v383 = vld [vmem:[%s377 + $0x10] sm:$0xf]
                  %384 = vst [vmem:[%s378 + $0x8] sm:$0xf] %v383
                  %v385 = vld [vmem:[%s377 + $0x18] sm:$0xf]
                  %386 = vst [vmem:[%s378 + $0xc] sm:$0xf] %v385
                  %v387 = vld [vmem:[%s377 + $0x20] sm:$0xf]
                  %388 = vst [vmem:[%s378 + $0x10] sm:$0xf] %v387
                  %v389 = vld [vmem:[%s377 + $0x28] sm:$0xf]
                  %390 = vst [vmem:[%s378 + $0x14] sm:$0xf] %v389
                  %v391 = vld [vmem:[%s377 + $0x30] sm:$0xf]
                  %392 = vst [vmem:[%s378 + $0x18] sm:$0xf] %v391
                  %v393 = vld [vmem:[%s377 + $0x38] sm:$0xf]
                  %394 = vst [vmem:[%s378 + $0x1c] sm:$0xf] %v393
                  %v395 = vld [vmem:[%s377 + $0x40] sm:$0xf]
                  %396 = vst [vmem:[%s378 + $0x20] sm:$0xf] %v395
                  %v397 = vld [vmem:[%s377 + $0x48] sm:$0xf]
                  %398 = vst [vmem:[%s378 + $0x24] sm:$0xf] %v397
                  %v399 = vld [vmem:[%s377 + $0x50] sm:$0xf]
                  %400 = vst [vmem:[%s378 + $0x28] sm:$0xf] %v399
                  %v401 = vld [vmem:[%s377 + $0x58] sm:$0xf]
                  %402 = vst [vmem:[%s378 + $0x2c] sm:$0xf] %v401
                  %v403 = vld [vmem:[%s377 + $0x60] sm:$0xf]
                  %404 = vst [vmem:[%s378 + $0x30] sm:$0xf] %v403
                  %v405 = vld [vmem:[%s377 + $0x68] sm:$0xf]
                  %406 = vst [vmem:[%s378 + $0x34] sm:$0xf] %v405
                  %v407 = vld [vmem:[%s377 + $0x70] sm:$0xf]
                  %408 = vst [vmem:[%s378 + $0x38] sm:$0xf] %v407
                  %v409 = vld [vmem:[%s377 + $0x78] sm:$0xf]
                  %410 = vst [vmem:[%s378 + $0x3c] sm:$0xf] %v409
                  %v411 = vld [vmem:[%s377 + $0x80] sm:$0xf]
                  %412 = vst [vmem:[%s378 + $0x40] sm:$0xf] %v411
                  %v413 = vld [vmem:[%s377 + $0x88] sm:$0xf]
                  %414 = vst [vmem:[%s378 + $0x44] sm:$0xf] %v413
                  %v415 = vld [vmem:[%s377 + $0x90] sm:$0xf]
                  %416 = vst [vmem:[%s378 + $0x48] sm:$0xf] %v415
                  %v417 = vld [vmem:[%s377 + $0x98] sm:$0xf]
                  %418 = vst [vmem:[%s378 + $0x4c] sm:$0xf] %v417
                  %v419 = vld [vmem:[%s377 + $0xa0] sm:$0xf]
                  %420 = vst [vmem:[%s378 + $0x50] sm:$0xf] %v419
                  %v421 = vld [vmem:[%s377 + $0xa8] sm:$0xf]
                  %422 = vst [vmem:[%s378 + $0x54] sm:$0xf] %v421
                  %v423 = vld [vmem:[%s377 + $0xb0] sm:$0xf]
                  %424 = vst [vmem:[%s378 + $0x58] sm:$0xf] %v423
                  %v425 = vld [vmem:[%s377 + $0xb8] sm:$0xf]
                  %426 = vst [vmem:[%s378 + $0x5c] sm:$0xf] %v425
                  %v427 = vld [vmem:[%s377 + $0xc0] sm:$0xf]
                  %428 = vst [vmem:[%s378 + $0x60] sm:$0xf] %v427
                  %v429 = vld [vmem:[%s377 + $0xc8] sm:$0xf]
                  %430 = vst [vmem:[%s378 + $0x64] sm:$0xf] %v429
                  %v431 = vld [vmem:[%s377 + $0xd0] sm:$0xf]
                  %432 = vst [vmem:[%s378 + $0x68] sm:$0xf] %v431
                  %v433 = vld [vmem:[%s377 + $0xd8] sm:$0xf]
                  %434 = vst [vmem:[%s378 + $0x6c] sm:$0xf] %v433
                  %v435 = vld [vmem:[%s377 + $0xe0] sm:$0xf]
                  %436 = vst [vmem:[%s378 + $0x70] sm:$0xf] %v435
                  %v437 = vld [vmem:[%s377 + $0xe8] sm:$0xf]
                  %438 = vst [vmem:[%s378 + $0x74] sm:$0xf] %v437
                  %v439 = vld [vmem:[%s377 + $0xf0] sm:$0xf]
                  %440 = vst [vmem:[%s378 + $0x78] sm:$0xf] %v439
                  %v441 = vld [vmem:[%s377 + $0xf8] sm:$0xf]
                  %442 = vst [vmem:[%s378 + $0x7c] sm:$0xf] %v441
                $region59: #{forward.3} parent=46 // loop_footer
                  %s376 = sadd.s32 1, %s372
                $region60: #{forward.3} parent=46 // loop_footer_branch
                  %371 = sbr.rel target = $region56
                $region61: #{forward.3} parent=46 // loop_exit
                  _
              $region47: #{forward.3} parent=31 // pred_fallthru
                _
            $region32: #{forward.3} parent=27 // pred_fallthru
              _
            // Predicated region
            $region33: #{forward.3} parent=27 // pred_check
              _
            $region34: #{forward.3} parent=27 // pred_check_branch
              %286 = sbr.rel (0) target = $region36
            $region35: #{forward.3} parent=27 // pred_region
              loop: start=0, step=1, limit=1
              $region37: #{forward.3} parent=35 // loop_pre_header
                _
              $region38: #{forward.3} parent=35 // loop_header
                %s289 = sphi 0, %s293
                %p290 = scmp.ge.s32.totalorder %s289, 1
                %s294 = sphi %s280, %s280
                %s295 = sphi %s276, %s276
              $region39: #{forward.3} parent=35 // loop_header_branch
                %292 = sbr.rel (%p290) target = $region43
              $region40: #{forward.3} parent=35 // loop_body
                %v296 = vld [vmem:[%s294] sm:$0xf]
                %297 = vst [vmem:[%s295] sm:$0xf] %v296
                %v298 = vld [vmem:[%s294 + $0x8] sm:$0xf]
                %299 = vst [vmem:[%s295 + $0x4] sm:$0xf] %v298
                %v300 = vld [vmem:[%s294 + $0x10] sm:$0xf]
                %301 = vst [vmem:[%s295 + $0x8] sm:$0xf] %v300
                %v302 = vld [vmem:[%s294 + $0x18] sm:$0xf]
                %303 = vst [vmem:[%s295 + $0xc] sm:$0xf] %v302
                %v304 = vld [vmem:[%s294 + $0x20] sm:$0xf]
                %305 = vst [vmem:[%s295 + $0x10] sm:$0xf] %v304
                %v306 = vld [vmem:[%s294 + $0x28] sm:$0xf]
                %307 = vst [vmem:[%s295 + $0x14] sm:$0xf] %v306
                %v308 = vld [vmem:[%s294 + $0x30] sm:$0xf]
                %309 = vst [vmem:[%s295 + $0x18] sm:$0xf] %v308
                %v310 = vld [vmem:[%s294 + $0x38] sm:$0xf]
                %311 = vst [vmem:[%s295 + $0x1c] sm:$0xf] %v310
                %v312 = vld [vmem:[%s294 + $0x40] sm:$0xf]
                %313 = vst [vmem:[%s295 + $0x20] sm:$0xf] %v312
                %v314 = vld [vmem:[%s294 + $0x48] sm:$0xf]
                %315 = vst [vmem:[%s295 + $0x24] sm:$0xf] %v314
                %v316 = vld [vmem:[%s294 + $0x50] sm:$0xf]
                %317 = vst [vmem:[%s295 + $0x28] sm:$0xf] %v316
                %v318 = vld [vmem:[%s294 + $0x58] sm:$0xf]
                %319 = vst [vmem:[%s295 + $0x2c] sm:$0xf] %v318
                %v320 = vld [vmem:[%s294 + $0x60] sm:$0xf]
                %321 = vst [vmem:[%s295 + $0x30] sm:$0xf] %v320
                %v322 = vld [vmem:[%s294 + $0x68] sm:$0xf]
                %323 = vst [vmem:[%s295 + $0x34] sm:$0xf] %v322
                %v324 = vld [vmem:[%s294 + $0x70] sm:$0xf]
                %325 = vst [vmem:[%s295 + $0x38] sm:$0xf] %v324
                %v326 = vld [vmem:[%s294 + $0x78] sm:$0xf]
                %327 = vst [vmem:[%s295 + $0x3c] sm:$0xf] %v326
                %v328 = vld [vmem:[%s294 + $0x80] sm:$0xf]
                %329 = vst [vmem:[%s295 + $0x40] sm:$0xf] %v328
                %v330 = vld [vmem:[%s294 + $0x88] sm:$0xf]
                %331 = vst [vmem:[%s295 + $0x44] sm:$0xf] %v330
                %v332 = vld [vmem:[%s294 + $0x90] sm:$0xf]
                %333 = vst [vmem:[%s295 + $0x48] sm:$0xf] %v332
                %v334 = vld [vmem:[%s294 + $0x98] sm:$0xf]
                %335 = vst [vmem:[%s295 + $0x4c] sm:$0xf] %v334
                %v336 = vld [vmem:[%s294 + $0xa0] sm:$0xf]
                %337 = vst [vmem:[%s295 + $0x50] sm:$0xf] %v336
                %v338 = vld [vmem:[%s294 + $0xa8] sm:$0xf]
                %339 = vst [vmem:[%s295 + $0x54] sm:$0xf] %v338
                %v340 = vld [vmem:[%s294 + $0xb0] sm:$0xf]
                %341 = vst [vmem:[%s295 + $0x58] sm:$0xf] %v340
                %v342 = vld [vmem:[%s294 + $0xb8] sm:$0xf]
                %343 = vst [vmem:[%s295 + $0x5c] sm:$0xf] %v342
                %v344 = vld [vmem:[%s294 + $0xc0] sm:$0xf]
                %345 = vst [vmem:[%s295 + $0x60] sm:$0xf] %v344
                %v346 = vld [vmem:[%s294 + $0xc8] sm:$0xf]
                %347 = vst [vmem:[%s295 + $0x64] sm:$0xf] %v346
                %v348 = vld [vmem:[%s294 + $0xd0] sm:$0xf]
                %349 = vst [vmem:[%s295 + $0x68] sm:$0xf] %v348
                %v350 = vld [vmem:[%s294 + $0xd8] sm:$0xf]
                %351 = vst [vmem:[%s295 + $0x6c] sm:$0xf] %v350
                %v352 = vld [vmem:[%s294 + $0xe0] sm:$0xf]
                %353 = vst [vmem:[%s295 + $0x70] sm:$0xf] %v352
                %v354 = vld [vmem:[%s294 + $0xe8] sm:$0xf]
                %355 = vst [vmem:[%s295 + $0x74] sm:$0xf] %v354
                %v356 = vld [vmem:[%s294 + $0xf0] sm:$0xf]
                %357 = vst [vmem:[%s295 + $0x78] sm:$0xf] %v356
                %v358 = vld [vmem:[%s294 + $0xf8] sm:$0xf]
                %359 = vst [vmem:[%s295 + $0x7c] sm:$0xf] %v358
              $region41: #{forward.3} parent=35 // loop_footer
                %s293 = sadd.s32 1, %s289
              $region42: #{forward.3} parent=35 // loop_footer_branch
                %288 = sbr.rel target = $region38
              $region43: #{forward.3} parent=35 // loop_exit
                _
            $region36: #{forward.3} parent=27 // pred_fallthru
              _
          $region28: #{forward.3} parent=23 // pred_fallthru
            _
          %443 = vnop
        $region24: #{forward.3} parent=15 // pred_fallthru
          _
        // Predicated region
        $region62: #{forward.3} parent=15 // pred_check
          %p444 = pneg %p101
        $region63: #{forward.3} parent=15 // pred_check_branch
          %446 = sbr.rel (%p444) target = $region65
        $region64: #{forward.3} parent=15 // pred_region
          %p447 = scmp.lt.s32.totalorder %s20, 1
          %s448 = scalar_select %p447, %s20, 1
          %p449 = scmp.lt.s32.totalorder %s21, 1
          %s450 = scalar_select %p449, %s21, 1
          %s451 = smul.addr %s448, 2
          %s452 = sadd.s32 %s450, %s451
          %s453 = scalar_lea.vmem %s2, %s452
        $region65: #{forward.3} parent=15 // pred_fallthru
          _
        // Predicated region
        $region66: #{forward.3} parent=15 // pred_check
          %p454 = pneg %p129
        $region67: #{forward.3} parent=15 // pred_check_branch
          %456 = sbr.rel (%p454) target = $region69
        $region68: #{forward.3} parent=15 // pred_region
          %p457 = scmp.lt.s32.totalorder %s20, 1
          %s458 = scalar_select %p457, %s20, 1
          %p459 = scmp.lt.s32.totalorder %s21, 1
          %s460 = scalar_select %p459, %s21, 1
          %s461 = smul.addr %s458, 2
          %s462 = sadd.s32 %s460, %s461
          %s463 = scalar_lea.vmem %s3, %s462
        $region69: #{forward.3} parent=15 // pred_fallthru
          _
        // Predicated region
        $region70: #{forward.3} parent=15 // pred_check
          %p464 = pneg %p157
        $region71: #{forward.3} parent=15 // pred_check_branch
          %466 = sbr.rel (%p464) target = $region73
        $region72: #{forward.3} parent=15 // pred_region
          %p467 = scmp.lt.s32.totalorder %s20, 1
          %s468 = scalar_select %p467, %s20, 1
          %p469 = scmp.lt.s32.totalorder %s21, 1
          %s470 = scalar_select %p469, %s21, 1
          %s471 = smul.addr %s468, 2
          %s472 = sadd.s32 %s470, %s471
          %s473 = scalar_lea.vmem %s4, %s472
        $region73: #{forward.3} parent=15 // pred_fallthru
          _
        // Predicated region
        $region74: #{forward.3} parent=15 // pred_check
          %p474 = pneg %p185
        $region75: #{forward.3} parent=15 // pred_check_branch
          %476 = sbr.rel (%p474) target = $region77
        $region76: #{forward.3} parent=15 // pred_region
          %s477 = smul.u32 16, %s21
          %p478 = scmp.lt.s32.totalorder %s20, 1
          %s479 = scalar_select %p478, %s20, 1
          %p480 = scmp.lt.s32.totalorder %s477, 31
          %s481 = scalar_select %p480, %s477, 31
          %s482 = smul.addr %s479, 32
          %s483 = sadd.s32 %s481, %s482
          %s484 = smul.addr %s483, 4
          %s485 = scalar_lea.vmem %s5, %s484
          %s486 = smul.u32 16, %s21
        $region77: #{forward.3} parent=15 // pred_fallthru
          _
        // Predicated region
        $region78: #{forward.3} parent=15 // pred_check
          %p487 = pneg %p211
        $region79: #{forward.3} parent=15 // pred_check_branch
          %489 = sbr.rel (%p487) target = $region81
        $region80: #{forward.3} parent=15 // pred_region
          %p490 = scmp.lt.s32.totalorder %s20, 1
          %s491 = scalar_select %p490, %s20, 1
          %s492 = scalar_lea.vmem %s6, %s491
        $region81: #{forward.3} parent=15 // pred_fallthru
          _
      $region16: #{forward.3} parent=5 // pred_fallthru
        _
      %p493 = scmp.le.s32.totalorder 1, %s13
      %p494 = scmp.lt.s32.totalorder %s13, 5
      %p495 = pnand %p493, %p494
      %p496 = pneg %p495
      // Predicated region
      $region82: #{forward.3} parent=5 // pred_check
        _
      $region83: #{forward.3} parent=5 // pred_check_branch
        %498 = sbr.rel (%p495) target = $region85
      $region84: #{forward.3} parent=5 // pred_region
        %s499 = ssub.s32 %s13, 1
        %s500 = sand.u32 %s66, 1
        %s501 = sand.u32 %s66, 1
        %s502 = smul.addr %s501, 128
        %s503 = scalar_lea.vmem [#allocation3], %s502
        // Predicated region
        $region86: #{forward.3} parent=84 // pred_check
          %p504 = pneg %p79
        $region87: #{forward.3} parent=84 // pred_check_branch
          %506 = sbr.rel (%p504) target = $region89
        $region88: #{forward.3} parent=84 // pred_region
          _
        $region89: #{forward.3} parent=84 // pred_fallthru
          _
        %p507 = scmp.lt.s32.totalorder %s22, 1
        %s508 = scalar_select %p507, %s22, 1
        %s509 = smul.addr %s508, 2
        %s510 = smul.addr %s509, 4
        %s511 = scalar_lea.vmem %s0, %s510
        %p512 = pneg %p51
        %p513 = pneg %p48
        %s514 = sand.u32 %s66, 1
        %s515 = sand.u32 %s66, 1
        %s516 = smul.addr %s515, 128
        %s517 = scalar_lea.vmem [#allocation3], %s516
        %p518 = pneg %p79
        %p519 = pneg %p76
        %p520 = scmp.lt.s32.totalorder %s22, 1
        %s521 = scalar_select %p520, %s22, 1
        %p522 = scmp.lt.s32.totalorder %s23, 1
        %s523 = scalar_select %p522, %s23, 1
        %s524 = smul.addr %s521, 2
        %s525 = sadd.s32 %s523, %s524
        %s526 = scalar_lea.vmem %s2, %s525
        %p527 = pneg %p107
        %p528 = pneg %p104
        %p529 = scmp.lt.s32.totalorder %s22, 1
        %s530 = scalar_select %p529, %s22, 1
        %p531 = scmp.lt.s32.totalorder %s23, 1
        %s532 = scalar_select %p531, %s23, 1
        %s533 = smul.addr %s530, 2
        %s534 = sadd.s32 %s532, %s533
        %s535 = scalar_lea.vmem %s3, %s534
        %p536 = pneg %p135
        %p537 = pneg %p132
        %p538 = scmp.lt.s32.totalorder %s22, 1
        %s539 = scalar_select %p538, %s22, 1
        %p540 = scmp.lt.s32.totalorder %s23, 1
        %s541 = scalar_select %p540, %s23, 1
        %s542 = smul.addr %s539, 2
        %s543 = sadd.s32 %s541, %s542
        %s544 = scalar_lea.vmem %s4, %s543
        %p545 = pneg %p163
        %p546 = pneg %p160
        %s547 = smul.u32 16, %s23
        %p548 = scmp.lt.s32.totalorder %s22, 1
        %s549 = scalar_select %p548, %s22, 1
        %p550 = scmp.lt.s32.totalorder %s547, 31
        %s551 = scalar_select %p550, %s547, 31
        %s552 = smul.addr %s549, 32
        %s553 = sadd.s32 %s551, %s552
        %s554 = smul.addr %s553, 4
        %s555 = scalar_lea.vmem %s5, %s554
        %p556 = pneg %p191
        %p557 = pneg %p188
        %p558 = scmp.lt.s32.totalorder %s22, 1
        %s559 = scalar_select %p558, %s22, 1
        %s560 = scalar_lea.vmem %s6, %s559
        %p561 = pneg %p217
        %p562 = pneg %p214
        %p563 = pneg %p243
        %p564 = pneg %p240
        %p565 = scmp.lt.s32.totalorder %s22, 1
        %s566 = scalar_select %p565, %s22, 1
        %s567 = smul.addr %s566, 8
        %s568 = scalar_lea.vmem %s7, %s567
        %p569 = scmp.lt.s32.totalorder %s22, 1
        %s570 = scalar_select %p569, %s22, 1
        %s571 = smul.addr %s570, 2
        %s572 = smul.addr %s571, 4
        %s573 = scalar_lea.vmem %s0, %s572
        %p574 = scmp.lt.s32.totalorder %s22, 1
        %s575 = scalar_select %p574, %s22, 1
        %p576 = scmp.lt.s32.totalorder %s23, 1
        %s577 = scalar_select %p576, %s23, 1
        %s578 = smul.addr %s575, 2
        %s579 = sadd.s32 %s577, %s578
        %s580 = scalar_lea.vmem %s2, %s579
        %p581 = scmp.lt.s32.totalorder %s22, 1
        %s582 = scalar_select %p581, %s22, 1
        %p583 = scmp.lt.s32.totalorder %s23, 1
        %s584 = scalar_select %p583, %s23, 1
        %s585 = smul.addr %s582, 2
        %s586 = sadd.s32 %s584, %s585
        %s587 = scalar_lea.vmem %s3, %s586
        %p588 = scmp.lt.s32.totalorder %s22, 1
        %s589 = scalar_select %p588, %s22, 1
        %p590 = scmp.lt.s32.totalorder %s23, 1
        %s591 = scalar_select %p590, %s23, 1
        %s592 = smul.addr %s589, 2
        %s593 = sadd.s32 %s591, %s592
        %s594 = scalar_lea.vmem %s4, %s593
        %s595 = smul.u32 16, %s23
        %p596 = scmp.lt.s32.totalorder %s22, 1
        %s597 = scalar_select %p596, %s22, 1
        %p598 = scmp.lt.s32.totalorder %s595, 31
        %s599 = scalar_select %p598, %s595, 31
        %s600 = smul.addr %s597, 32
        %s601 = sadd.s32 %s599, %s600
        %s602 = smul.addr %s601, 4
        %s603 = scalar_lea.vmem %s5, %s602
        %s604 = smul.u32 16, %s23
        %p605 = scmp.lt.s32.totalorder %s22, 1
        %s606 = scalar_select %p605, %s22, 1
        %s607 = scalar_lea.vmem %s6, %s606
        %p608 = scmp.lt.s32.totalorder %s22, 1
        %s609 = scalar_select %p608, %s22, 1
        %s610 = smul.addr %s609, 8
        %s611 = scalar_lea.vmem %s7, %s610
        %p613 = scmp.eq.s32.totalorder %s23, 0
        // Predicated region
        $region90: #{forward.3} parent=84 // pred_check
          %p614 = pneg %p613
        $region91: #{forward.3} parent=84 // pred_check_branch
          %616 = sbr.rel (%p614) target = $region93
        $region92: #{forward.3} parent=84 // pred_region
          %617 = vst [vmem:[#allocation2] sm:$0xff] 0.0
        $region93: #{forward.3} parent=84 // pred_fallthru
          _
        %v618 = vld [vmem:[%s573] sm:$0xff]
        %v619 = vld [vmem:[%s503] sm:$0xf]
        %v620 = vld [vmem:[%s503 + $0x4] sm:$0xf]
        %v621 = vld [vmem:[%s503 + $0x8] sm:$0xf]
        %v622 = vld [vmem:[%s503 + $0xc] sm:$0xf]
        %v623 = vld [vmem:[%s503 + $0x10] sm:$0xf]
        %v624 = vld [vmem:[%s503 + $0x14] sm:$0xf]
        %v625 = vld [vmem:[%s503 + $0x18] sm:$0xf]
        %v626 = vld [vmem:[%s503 + $0x1c] sm:$0xf]
        %v627 = vld [vmem:[%s503 + $0x20] sm:$0xf]
        %v628 = vld [vmem:[%s503 + $0x24] sm:$0xf]
        %v629 = vld [vmem:[%s503 + $0x28] sm:$0xf]
        %v630 = vld [vmem:[%s503 + $0x2c] sm:$0xf]
        %v631 = vld [vmem:[%s503 + $0x30] sm:$0xf]
        %v632 = vld [vmem:[%s503 + $0x34] sm:$0xf]
        %v633 = vld [vmem:[%s503 + $0x38] sm:$0xf]
        %v634 = vld [vmem:[%s503 + $0x3c] sm:$0xf]
        %v635 = vld [vmem:[%s503 + $0x40] sm:$0xf]
        %v636 = vld [vmem:[%s503 + $0x44] sm:$0xf]
        %v637 = vld [vmem:[%s503 + $0x48] sm:$0xf]
        %v638 = vld [vmem:[%s503 + $0x4c] sm:$0xf]
        %v639 = vld [vmem:[%s503 + $0x50] sm:$0xf]
        %v640 = vld [vmem:[%s503 + $0x54] sm:$0xf]
        %v641 = vld [vmem:[%s503 + $0x58] sm:$0xf]
        %v642 = vld [vmem:[%s503 + $0x5c] sm:$0xf]
        %v643 = vld [vmem:[%s503 + $0x60] sm:$0xf]
        %v644 = vld [vmem:[%s503 + $0x64] sm:$0xf]
        %v645 = vld [vmem:[%s503 + $0x68] sm:$0xf]
        %v646 = vld [vmem:[%s503 + $0x6c] sm:$0xf]
        %v647 = vld [vmem:[%s503 + $0x70] sm:$0xf]
        %v648 = vld [vmem:[%s503 + $0x74] sm:$0xf]
        %v649 = vld [vmem:[%s503 + $0x78] sm:$0xf]
        %v650 = vld [vmem:[%s503 + $0x7c] sm:$0xf]
        %v651 = vld [vmem:[%s580] sm:$0x1]
        %v653 = vlaneseq
        %v654 = vshrl.u32 %v653, 7
        %v655 = vsub.s32 0, %v654
        %v656 = vrot.slane %v651, %v655
        %v659 = vunpack.c.l.b16 %v618
        %v660 = vunpack.c.h.b16 %v618
        %v661 = vpack.c.b16 %v659, %v659
        %v662 = vpack.c.b16 %v660, %v660
        %v697 = vunpack.c.l.b16 %v619
        %v698 = vunpack.c.l.b16 %v620
        %v699 = vunpack.c.l.b16 %v621
        %v700 = vunpack.c.l.b16 %v622
        %v701 = vunpack.c.l.b16 %v623
        %v702 = vunpack.c.l.b16 %v624
        %v703 = vunpack.c.l.b16 %v625
        %v704 = vunpack.c.l.b16 %v626
        %v705 = vunpack.c.l.b16 %v627
        %v706 = vunpack.c.l.b16 %v628
        %v707 = vunpack.c.l.b16 %v629
        %v708 = vunpack.c.l.b16 %v630
        %v709 = vunpack.c.l.b16 %v631
        %v710 = vunpack.c.l.b16 %v632
        %v711 = vunpack.c.l.b16 %v633
        %v712 = vunpack.c.l.b16 %v634
        %v713 = vunpack.c.l.b16 %v635
        %v714 = vunpack.c.l.b16 %v636
        %v715 = vunpack.c.l.b16 %v637
        %v716 = vunpack.c.l.b16 %v638
        %v717 = vunpack.c.l.b16 %v639
        %v718 = vunpack.c.l.b16 %v640
        %v719 = vunpack.c.l.b16 %v641
        %v720 = vunpack.c.l.b16 %v642
        %v721 = vunpack.c.l.b16 %v643
        %v722 = vunpack.c.l.b16 %v644
        %v723 = vunpack.c.l.b16 %v645
        %v724 = vunpack.c.l.b16 %v646
        %v725 = vunpack.c.l.b16 %v647
        %v726 = vunpack.c.l.b16 %v648
        %v727 = vunpack.c.l.b16 %v649
        %v728 = vunpack.c.l.b16 %v650
        %v729 = vpack.c.b16 %v698, %v697
        %v730 = vpack.c.b16 %v700, %v699
        %v731 = vpack.c.b16 %v702, %v701
        %v732 = vpack.c.b16 %v704, %v703
        %v733 = vpack.c.b16 %v706, %v705
        %v734 = vpack.c.b16 %v708, %v707
        %v735 = vpack.c.b16 %v710, %v709
        %v736 = vpack.c.b16 %v712, %v711
        %v737 = vpack.c.b16 %v714, %v713
        %v738 = vpack.c.b16 %v716, %v715
        %v739 = vpack.c.b16 %v718, %v717
        %v740 = vpack.c.b16 %v720, %v719
        %v741 = vpack.c.b16 %v722, %v721
        %v742 = vpack.c.b16 %v724, %v723
        %v743 = vpack.c.b16 %v726, %v725
        %v744 = vpack.c.b16 %v728, %v727
        %761 = vmatprep.subr.bf16.mxu0 0
        %762 = vmatpush1.bf16.msra.mxu0 %v729
        %763 = vmatprep.subr.bf16.mxu0 0
        %764 = vmatpush1.bf16.msra.mxu0 %v730
        %765 = vmatprep.subr.bf16.mxu0 0
        %766 = vmatpush1.bf16.msra.mxu0 %v731
        %767 = vmatprep.subr.bf16.mxu0 0
        %768 = vmatpush1.bf16.msra.mxu0 %v732
        %769 = vmatprep.subr.bf16.mxu0 0
        %770 = vmatpush1.bf16.msra.mxu0 %v733
        %771 = vmatprep.subr.bf16.mxu0 0
        %772 = vmatpush1.bf16.msra.mxu0 %v734
        %773 = vmatprep.subr.bf16.mxu0 0
        %774 = vmatpush1.bf16.msra.mxu0 %v735
        %775 = vmatprep.subr.bf16.mxu0 0
        %776 = vmatpush1.bf16.msra.mxu0 %v736
        %777 = vmatprep.subr.bf16.mxu0 0
        %778 = vmatpush1.bf16.msra.mxu0 %v737
        %779 = vmatprep.subr.bf16.mxu0 0
        %780 = vmatpush1.bf16.msra.mxu0 %v738
        %781 = vmatprep.subr.bf16.mxu0 0
        %782 = vmatpush1.bf16.msra.mxu0 %v739
        %783 = vmatprep.subr.bf16.mxu0 0
        %784 = vmatpush1.bf16.msra.mxu0 %v740
        %785 = vmatprep.subr.bf16.mxu0 0
        %786 = vmatpush1.bf16.msra.mxu0 %v741
        %787 = vmatprep.subr.bf16.mxu0 0
        %788 = vmatpush1.bf16.msra.mxu0 %v742
        %789 = vmatprep.subr.bf16.mxu0 0
        %790 = vmatpush1.bf16.msra.mxu0 %v743
        %791 = vmatprep.subr.bf16.mxu0 0
        %792 = vmatpush1.bf16.msra.mxu0 %v744
        %793 = vmatprep.mubr.bf16.mxu0 %v662
        %794 = vmatmul.mubr.bf16.gmra.mrb[0].mxu0 %v661
        %v795 = vpop.f32.mrb[0].mxu0
        %v796 = vadd.f32 %v656, %v795
        %v797 = vpop.f32.mrb[0].mxu0
        %v798 = vpop.f32.mrb[0].mxu0
        %v799 = vpop.f32.mrb[0].mxu0
        %800 = vdwg.mxu0
        %v801 = vrot.slane %v796, 4
        %v802 = vadd.f32 %v796, %v801
        %v803 = vrot.slane %v802, 2
        %v804 = vadd.f32 %v802, %v803
        %v805 = vrot.slane %v804, 1
        %v806 = vadd.f32 %v804, %v805
        %v807 = vrcp.pop 8.0
        %v808 = vmul.f32 %v806, %v807
        %v809 = vmul.f32 %v796, %v796
        %v810 = vrot.slane %v809, 4
        %v811 = vadd.f32 %v809, %v810
        %v812 = vrot.slane %v811, 2
        %v813 = vadd.f32 %v811, %v812
        %v814 = vrot.slane %v813, 1
        %v815 = vadd.f32 %v813, %v814
        %v816 = vmul.f32 %v815, %v807
        %v817 = vmul.f32 %v808, %v808
        %v818 = vsub.f32 %v816, %v817
        %v819 = vmax.f32 %v818, 0.0
        %v820 = vsub.f32 %v796, %v808
        %v821 = vadd.f32 %v819, 1e-05
        %v822 = vrsqrt.pop %v821
        %v823 = vmul.f32 %v820, %v822
        %v824 = vld [vmem:[%s587] sm:$0x1]
        %v826 = vlaneseq
        %v827 = vshrl.u32 %v826, 7
        %v828 = vsub.s32 0, %v827
        %v829 = vrot.slane %v824, %v828
        %v831 = vmul.f32 %v823, %v829
        %v832 = vld [vmem:[%s594] sm:$0x1]
        %v834 = vlaneseq
        %v835 = vshrl.u32 %v834, 7
        %v836 = vsub.s32 0, %v835
        %v837 = vrot.slane %v832, %v836
        %v839 = vadd.f32 %v831, %v837
        %v840 = vmax.f32 %v839, 0.0
        %v841 = vld [vmem:[#allocation2] sm:$0xff]
        %v842 = vpack.c.bf16 %v840, %v840
        %v843 = vld [vmem:[%s603] sm:$0xf]
        %v844 = vld [vmem:[%s603 + $0x4] sm:$0xf]
        %v845 = vld [vmem:[%s603 + $0x8] sm:$0xf]
        %v846 = vld [vmem:[%s603 + $0xc] sm:$0xf]
        %v847 = vld [vmem:[%s603 + $0x10] sm:$0xf]
        %v848 = vld [vmem:[%s603 + $0x14] sm:$0xf]
        %v849 = vld [vmem:[%s603 + $0x18] sm:$0xf]
        %v850 = vld [vmem:[%s603 + $0x1c] sm:$0xf]
        %v851 = vld [vmem:[%s603 + $0x20] sm:$0xf]
        %v852 = vld [vmem:[%s603 + $0x24] sm:$0xf]
        %v853 = vld [vmem:[%s603 + $0x28] sm:$0xf]
        %v854 = vld [vmem:[%s603 + $0x2c] sm:$0xf]
        %v855 = vld [vmem:[%s603 + $0x30] sm:$0xf]
        %v856 = vld [vmem:[%s603 + $0x34] sm:$0xf]
        %v857 = vld [vmem:[%s603 + $0x38] sm:$0xf]
        %v858 = vld [vmem:[%s603 + $0x3c] sm:$0xf]
        %v875 = vunpack.c.l.b16 %v843
        %v876 = vunpack.c.l.b16 %v844
        %v877 = vunpack.c.l.b16 %v845
        %v878 = vunpack.c.l.b16 %v846
        %v879 = vunpack.c.l.b16 %v847
        %v880 = vunpack.c.l.b16 %v848
        %v881 = vunpack.c.l.b16 %v849
        %v882 = vunpack.c.l.b16 %v850
        %v883 = vunpack.c.l.b16 %v851
        %v884 = vunpack.c.l.b16 %v852
        %v885 = vunpack.c.l.b16 %v853
        %v886 = vunpack.c.l.b16 %v854
        %v887 = vunpack.c.l.b16 %v855
        %v888 = vunpack.c.l.b16 %v856
        %v889 = vunpack.c.l.b16 %v857
        %v890 = vunpack.c.l.b16 %v858
        %v891 = vpack.c.b16 %v876, %v875
        %v892 = vpack.c.b16 %v878, %v877
        %v893 = vpack.c.b16 %v880, %v879
        %v894 = vpack.c.b16 %v882, %v881
        %v895 = vpack.c.b16 %v884, %v883
        %v896 = vpack.c.b16 %v886, %v885
        %v897 = vpack.c.b16 %v888, %v887
        %v898 = vpack.c.b16 %v890, %v889
        %907 = vmatprep.subr.bf16.mxu0 0
        %908 = vmatpush1.bf16.msra.mxu0 %v891
        %909 = vmatprep.subr.bf16.mxu0 0
        %910 = vmatpush1.bf16.msra.mxu0 %v892
        %911 = vmatprep.subr.bf16.mxu0 0
        %912 = vmatpush1.bf16.msra.mxu0 %v893
        %913 = vmatprep.subr.bf16.mxu0 0
        %914 = vmatpush1.bf16.msra.mxu0 %v894
        %915 = vmatprep.subr.bf16.mxu0 0
        %916 = vmatpush1.bf16.msra.mxu0 %v895
        %917 = vmatprep.subr.bf16.mxu0 0
        %918 = vmatpush1.bf16.msra.mxu0 %v896
        %919 = vmatprep.subr.bf16.mxu0 0
        %920 = vmatpush1.bf16.msra.mxu0 %v897
        %921 = vmatprep.subr.bf16.mxu0 0
        %922 = vmatpush1.bf16.msra.mxu0 %v898
        %923 = vmatprep.subr.bf16.mxu0 0
        %924 = vmatpush1.bf16.msra.mxu0 0
        %925 = vmatprep.subr.bf16.mxu0 0
        %926 = vmatpush1.bf16.msra.mxu0 0
        %927 = vmatprep.subr.bf16.mxu0 0
        %928 = vmatpush1.bf16.msra.mxu0 0
        %929 = vmatprep.subr.bf16.mxu0 0
        %930 = vmatpush1.bf16.msra.mxu0 0
        %931 = vmatprep.subr.bf16.mxu0 0
        %932 = vmatpush1.bf16.msra.mxu0 0
        %933 = vmatprep.subr.bf16.mxu0 0
        %934 = vmatpush1.bf16.msra.mxu0 0
        %935 = vmatprep.subr.bf16.mxu0 0
        %936 = vmatpush1.bf16.msra.mxu0 0
        %937 = vmatprep.subr.bf16.mxu0 0
        %938 = vmatpush1.bf16.msra.mxu0 0
        %939 = vmatprep.mubr.bf16.mxu0 0
        %940 = vmatmul.mubr.bf16.gmra.mrb[0].mxu0 %v842
        %v941 = vpop.f32.mrb[0].mxu0
        %v942 = vadd.f32 0.0, %v941
        %v943 = vpop.f32.mrb[0].mxu0
        %v944 = vpop.f32.mrb[0].mxu0
        %v945 = vpop.f32.mrb[0].mxu0
        %946 = vdwg.mxu0
        %v947 = vadd.f32 %v841, %v942
        %948 = vst [vmem:[#allocation2] sm:$0xff] %v947
        %p949 = scmp.eq.s32.totalorder %s23, 1
        // Predicated region
        $region94: #{forward.3} parent=84 // pred_check
          %p950 = pneg %p949
        $region95: #{forward.3} parent=84 // pred_check_branch
          %952 = sbr.rel (%p950) target = $region97
        $region96: #{forward.3} parent=84 // pred_region
          %v953 = vld [vmem:[#allocation2] sm:$0xff]
          %v954 = vld [vmem:[%s607] sm:$0x1]
          %v956 = vlaneseq
          %v957 = vshrl.u32 %v956, 7
          %v958 = vsub.s32 0, %v957
          %v959 = vrot.slane %v954, %v958
          %v961 = vadd.f32 %v953, %v959
          %v962 = vrot.slane %v961, 4
          %v963 = vadd.f32 %v961, %v962
          %v964 = vrot.slane %v963, 2
          %v965 = vadd.f32 %v963, %v964
          %v966 = vrot.slane %v965, 1
          %v967 = vadd.f32 %v965, %v966
          %v968 = vmul.f32 %v967, %v807
          %v969 = vmul.f32 %v961, %v961
          %v970 = vrot.slane %v969, 4
          %v971 = vadd.f32 %v969, %v970
          %v972 = vrot.slane %v971, 2
          %v973 = vadd.f32 %v971, %v972
          %v974 = vrot.slane %v973, 1
          %v975 = vadd.f32 %v973, %v974
          %v976 = vmul.f32 %v975, %v807
          %v977 = vmul.f32 %v968, %v968
          %v978 = vsub.f32 %v976, %v977
          %v979 = vmax.f32 %v978, 0.0
          %v980 = vsub.f32 %v961, %v968
          %v981 = vadd.f32 %v979, 1e-05
          %v982 = vrsqrt.pop %v981
          %v983 = vmul.f32 %v980, %v982
          %984 = vst [vmem:[%s611] sm:$0xff] %v983
        $region97: #{forward.3} parent=84 // pred_fallthru
          _
        %p985 = scmp.lt.s32.totalorder %s22, 1
        %s986 = scalar_select %p985, %s22, 1
        %s987 = smul.addr %s986, 8
        %s988 = scalar_lea.vmem %s7, %s987
        // Predicated region
        $region98: #{forward.3} parent=84 // pred_check
          %p989 = pneg %p240
        $region99: #{forward.3} parent=84 // pred_check_branch
          %991 = sbr.rel (%p989) target = $region101
        $region100: #{forward.3} parent=84 // pred_region
          _
        $region101: #{forward.3} parent=84 // pred_fallthru
          _
      $region85: #{forward.3} parent=5 // pred_fallthru
        _
      %p992 = scmp.le.s32.totalorder 2, %s13
      // Predicated region
      $region102: #{forward.3} parent=5 // pred_check
        %p993 = pneg %p992
      $region103: #{forward.3} parent=5 // pred_check_branch
        %995 = sbr.rel (%p993) target = $region105
      $region104: #{forward.3} parent=5 // pred_region
        %s996 = ssub.s32 %s13, 2
        // Predicated region
        $region106: #{forward.3} parent=104 // pred_check
          %p997 = pneg %p246
        $region107: #{forward.3} parent=104 // pred_check_branch
          %999 = sbr.rel (%p997) target = $region109
        $region108: #{forward.3} parent=104 // pred_region
          %p1000 = scmp.lt.s32.totalorder %s24, 1
          %s1001 = scalar_select %p1000, %s24, 1
          %s1002 = smul.addr %s1001, 8
          %s1003 = scalar_lea.vmem %s7, %s1002
        $region109: #{forward.3} parent=104 // pred_fallthru
          _
      $region105: #{forward.3} parent=5 // pred_fallthru
        _
    $region6: #{forward.3} parent=1 // loop_footer
      %s17 = sadd.s32 1, %s13
    $region7: #{forward.3} parent=1 // loop_footer_branch
      %12 = sbr.rel target = $region3
    $region8: #{forward.3} parent=1 // loop_exit
      _

// kernel: forward.2
$region0: #{forward.2}
  #allocation0 [shape = 'u32[]', space=smem, size = 0x4, offset = 0x4, fixed_abs, tag = 'smem constant byte address 0x4 - core index']
  #allocation1 [shape = 'u32[144,128]{1,0:T(1,128)}', space=vmem, size = 0x12000, scoped, tag = 'internal scratch']
  #allocation2 [shape = 'f32[8,128]{1,0:T(8,128)}', space=vmem, size = 0x1000, scoped, tag = 'scratch operand']
  %s0 = inlined_call_operand.vmem [shape: bf16[8,256,4], index: 0, kind: input, shape index: {}]
  %s1 = inlined_call_operand.vmem [shape: bf16[4,256], index: 1, kind: input, shape index: {}]
  %s2 = inlined_call_operand.vmem [shape: f32[8,256], index: 2, kind: output, shape index: {}]
  %s3 = sld [smem:[#allocation0]]
  $region90: #{forward.2} parent=0
    _
  %s5 = ssub.s32 1, %s3
  %s6 = scalar_select 0, %s5, %s3
  $region1: #{forward.2} parent=0
    #allocation3 [shape = 'u8[524288]{0}', space=vmem, size = 0x80000, scoped, tag = 'input window, operand 0']
    loop: start=0, step=1, limit=6
    $region2: #{forward.2} parent=1 // loop_pre_header
      _
    $region3: #{forward.2} parent=1 // loop_header
      %s8 = sphi 0, %s12
      %p9 = scmp.ge.s32.totalorder %s8, 6
      %s15 = sphi 0, %s27
      %s16 = sphi 0, %s23
      %s17 = sphi 0, %s15
      %s18 = sphi 0, %s16
      %s19 = sphi 0, %s17
      %s20 = sphi 0, %s18
      %s30 = sphi 0, %s32
      %s33 = sphi 0, %s30
      %s34 = sphi 0, %s33
      %s50 = sphi 0, %s34
      %s56 = sphi 0, %s58
      %s59 = sphi 0, %s56
      %s60 = sphi 0, %s59
      %s76 = sphi 0, %s60
      %s82 = sphi 0, %s84
      %s85 = sphi 0, %s82
      %s86 = sphi 0, %s85
      %s102 = sphi 0, %s86
    $region4: #{forward.2} parent=1 // loop_header_branch
      %11 = sbr.rel (%p9) target = $region8
    $region5: #{forward.2} parent=1 // loop_body
      %s13 = ssub.s32 %s8, 1
      %s14 = ssub.s32 %s8, 2
      %s21 = sadd.s32 1, %s16
      %p22 = scmp.ge.s32.totalorder %s21, 2
      %s23 = scalar_select %p22, 0, %s21
      %s24 = sadd.s32 1, %s15
      %s25 = scalar_select %p22, %s24, %s15
      %p26 = scmp.ge.s32.totalorder %s25, 2
      %s27 = scalar_select %p26, 0, %s25
      %s28 = ssub.s32 %s16, %s23
      %p29 = scmp.eq.s32.totalorder %s28, 0
      %s31 = sadd.s32 %s30, 1
      %s32 = scalar_select %p29, %s30, %s31
      %p35 = pneg %p29
      %p36 = scmp.eq.s32.totalorder %s8, 3
      %p37 = por %p35, %p36
      %p38 = scmp.ne.s32.totalorder %s30, %s33
      %p39 = scmp.eq.s32.totalorder %s8, 0
      %p40 = por %p38, %p39
      %p41 = scmp.ne.s32.totalorder %s30, %s33
      %p42 = scmp.eq.s32.totalorder %s13, 3
      %p43 = por %p41, %p42
      %p44 = scmp.ne.s32.totalorder %s33, %s34
      %p45 = scmp.eq.s32.totalorder %s13, 0
      %p46 = por %p44, %p45
      %p47 = scmp.ne.s32.totalorder %s33, %s34
      %p48 = scmp.eq.s32.totalorder %s14, 3
      %p49 = por %p47, %p48
      %p51 = scmp.ne.s32.totalorder %s34, %s50
      %p52 = scmp.eq.s32.totalorder %s14, 0
      %p53 = por %p51, %p52
      %s54 = ssub.s32 %s15, %s27
      %p55 = scmp.eq.s32.totalorder %s54, 0
      %s57 = sadd.s32 %s56, 1
      %s58 = scalar_select %p55, %s56, %s57
      %p61 = pneg %p55
      %p62 = scmp.eq.s32.totalorder %s8, 3
      %p63 = por %p61, %p62
      %p64 = scmp.ne.s32.totalorder %s56, %s59
      %p65 = scmp.eq.s32.totalorder %s8, 0
      %p66 = por %p64, %p65
      %p67 = scmp.ne.s32.totalorder %s56, %s59
      %p68 = scmp.eq.s32.totalorder %s13, 3
      %p69 = por %p67, %p68
      %p70 = scmp.ne.s32.totalorder %s59, %s60
      %p71 = scmp.eq.s32.totalorder %s13, 0
      %p72 = por %p70, %p71
      %p73 = scmp.ne.s32.totalorder %s59, %s60
      %p74 = scmp.eq.s32.totalorder %s14, 3
      %p75 = por %p73, %p74
      %p77 = scmp.ne.s32.totalorder %s60, %s76
      %p78 = scmp.eq.s32.totalorder %s14, 0
      %p79 = por %p77, %p78
      %s80 = ssub.s32 %s15, %s27
      %p81 = scmp.eq.s32.totalorder %s80, 0
      %s83 = sadd.s32 %s82, 1
      %s84 = scalar_select %p81, %s82, %s83
      %p87 = pneg %p81
      %p88 = scmp.eq.s32.totalorder %s8, 3
      %p89 = por %p87, %p88
      %p90 = scmp.ne.s32.totalorder %s82, %s85
      %p91 = scmp.eq.s32.totalorder %s8, 0
      %p92 = por %p90, %p91
      %p93 = scmp.ne.s32.totalorder %s82, %s85
      %p94 = scmp.eq.s32.totalorder %s13, 3
      %p95 = por %p93, %p94
      %p96 = scmp.ne.s32.totalorder %s85, %s86
      %p97 = scmp.eq.s32.totalorder %s13, 0
      %p98 = por %p96, %p97
      %p99 = scmp.ne.s32.totalorder %s85, %s86
      %p100 = scmp.eq.s32.totalorder %s14, 3
      %p101 = por %p99, %p100
      %p103 = scmp.ne.s32.totalorder %s86, %s102
      %p104 = scmp.eq.s32.totalorder %s14, 0
      %p105 = por %p103, %p104
      %p106 = scmp.le.s32.totalorder 1, %s8
      %p107 = scmp.lt.s32.totalorder %s8, 5
      %p108 = pnand %p106, %p107
      %p109 = pneg %p108
      // Predicated region
      $region9: #{forward.2} parent=5 // pred_check
        _
      $region10: #{forward.2} parent=5 // pred_check_branch
        %111 = sbr.rel (%p108) target = $region12
      $region11: #{forward.2} parent=5 // pred_region
        %s112 = ssub.s32 %s8, 1
      $region12: #{forward.2} parent=5 // pred_fallthru
        _
      %p113 = scmp.lt.s32.totalorder %s8, 4
      // Predicated region
      $region13: #{forward.2} parent=5 // pred_check
        %p114 = pneg %p113
      $region14: #{forward.2} parent=5 // pred_check_branch
        %116 = sbr.rel (%p114) target = $region16
      $region15: #{forward.2} parent=5 // pred_region
        // Predicated region
        $region17: #{forward.2} parent=15 // pred_check
          %p117 = pneg %p40
        $region18: #{forward.2} parent=15 // pred_check_branch
          %119 = sbr.rel (%p117) target = $region20
        $region19: #{forward.2} parent=15 // pred_region
          %s120 = sand.u32 %s30, 1
          %s121 = sand.u32 %s30, 1
          %s122 = smul.addr %s121, 512
          %s123 = scalar_lea.vmem [#allocation3], %s122
          %s124 = smul.u32 16, %s16
          %s125 = smul.addr %s124, 4
          %s126 = scalar_lea.vmem %s0, %s125
          // Predicated region
          $region21: #{forward.2} parent=19 // pred_check
            _
          $region22: #{forward.2} parent=19 // pred_check_branch
            %128 = sbr.rel (0) target = $region24
          $region23: #{forward.2} parent=19 // pred_region
            // Predicated region
            $region25: #{forward.2} parent=23 // pred_check
              _
            $region26: #{forward.2} parent=23 // pred_check_branch
              %130 = sbr.rel target = $region28
            $region27: #{forward.2} parent=23 // pred_region
              // Predicated region
              $region40: #{forward.2} parent=27 // pred_check
                _
              $region41: #{forward.2} parent=27 // pred_check_branch
                %399 = sbr.rel (0) target = $region43
              $region42: #{forward.2} parent=27 // pred_region
                loop: start=0, step=1, limit=1
                $region44: #{forward.2} parent=42 // loop_pre_header
                  _
                $region45: #{forward.2} parent=42 // loop_header
                  %s401 = sphi 0, %s405
                  %p402 = scmp.ge.s32.totalorder %s401, 1
                  %s406 = sphi %s126, %s126
                  %s407 = sphi %s123, %s123
                $region46: #{forward.2} parent=42 // loop_header_branch
                  %404 = sbr.rel (%p402) target = $region50
                $region47: #{forward.2} parent=42 // loop_body
                  _
                $region48: #{forward.2} parent=42 // loop_footer
                  %s405 = sadd.s32 1, %s401
                $region49: #{forward.2} parent=42 // loop_footer_branch
                  %400 = sbr.rel target = $region45
                $region50: #{forward.2} parent=42 // loop_exit
                  _
                loop: start=0, step=1, limit=1
                $region51: #{forward.2} parent=42 // loop_pre_header
                  _
                $region52: #{forward.2} parent=42 // loop_header
                  %s410 = sphi 0, %s414
                  %p411 = scmp.ge.s32.totalorder %s410, 1
                  %s415 = sphi %s126, %s126
                  %s416 = sphi %s123, %s123
                $region53: #{forward.2} parent=42 // loop_header_branch
                  %413 = sbr.rel (%p411) target = $region57
                $region54: #{forward.2} parent=42 // loop_body
                  %v417 = vld [vmem:[%s415] sm:$0xf]
                  %418 = vst [vmem:[%s416] sm:$0xf] %v417
                  %v419 = vld [vmem:[%s415 + $0x4] sm:$0xf]
                  %420 = vst [vmem:[%s416 + $0x4] sm:$0xf] %v419
                  %v421 = vld [vmem:[%s415 + $0x8] sm:$0xf]
                  %422 = vst [vmem:[%s416 + $0x8] sm:$0xf] %v421
                  %v423 = vld [vmem:[%s415 + $0xc] sm:$0xf]
                  %424 = vst [vmem:[%s416 + $0xc] sm:$0xf] %v423
                  %v425 = vld [vmem:[%s415 + $0x10] sm:$0xf]
                  %426 = vst [vmem:[%s416 + $0x10] sm:$0xf] %v425
                  %v427 = vld [vmem:[%s415 + $0x14] sm:$0xf]
                  %428 = vst [vmem:[%s416 + $0x14] sm:$0xf] %v427
                  %v429 = vld [vmem:[%s415 + $0x18] sm:$0xf]
                  %430 = vst [vmem:[%s416 + $0x18] sm:$0xf] %v429
                  %v431 = vld [vmem:[%s415 + $0x1c] sm:$0xf]
                  %432 = vst [vmem:[%s416 + $0x1c] sm:$0xf] %v431
                  %v433 = vld [vmem:[%s415 + $0x20] sm:$0xf]
                  %434 = vst [vmem:[%s416 + $0x20] sm:$0xf] %v433
                  %v435 = vld [vmem:[%s415 + $0x24] sm:$0xf]
                  %436 = vst [vmem:[%s416 + $0x24] sm:$0xf] %v435
                  %v437 = vld [vmem:[%s415 + $0x28] sm:$0xf]
                  %438 = vst [vmem:[%s416 + $0x28] sm:$0xf] %v437
                  %v439 = vld [vmem:[%s415 + $0x2c] sm:$0xf]
                  %440 = vst [vmem:[%s416 + $0x2c] sm:$0xf] %v439
                  %v441 = vld [vmem:[%s415 + $0x30] sm:$0xf]
                  %442 = vst [vmem:[%s416 + $0x30] sm:$0xf] %v441
                  %v443 = vld [vmem:[%s415 + $0x34] sm:$0xf]
                  %444 = vst [vmem:[%s416 + $0x34] sm:$0xf] %v443
                  %v445 = vld [vmem:[%s415 + $0x38] sm:$0xf]
                  %446 = vst [vmem:[%s416 + $0x38] sm:$0xf] %v445
                  %v447 = vld [vmem:[%s415 + $0x3c] sm:$0xf]
                  %448 = vst [vmem:[%s416 + $0x3c] sm:$0xf] %v447
                  %v449 = vld [vmem:[%s415 + $0x80] sm:$0xf]
                  %450 = vst [vmem:[%s416 + $0x40] sm:$0xf] %v449
                  %v451 = vld [vmem:[%s415 + $0x84] sm:$0xf]
                  %452 = vst [vmem:[%s416 + $0x44] sm:$0xf] %v451
                  %v453 = vld [vmem:[%s415 + $0x88] sm:$0xf]
                  %454 = vst [vmem:[%s416 + $0x48] sm:$0xf] %v453
                  %v455 = vld [vmem:[%s415 + $0x8c] sm:$0xf]
                  %456 = vst [vmem:[%s416 + $0x4c] sm:$0xf] %v455
                  %v457 = vld [vmem:[%s415 + $0x90] sm:$0xf]
                  %458 = vst [vmem:[%s416 + $0x50] sm:$0xf] %v457
                  %v459 = vld [vmem:[%s415 + $0x94] sm:$0xf]
                  %460 = vst [vmem:[%s416 + $0x54] sm:$0xf] %v459
                  %v461 = vld [vmem:[%s415 + $0x98] sm:$0xf]
                  %462 = vst [vmem:[%s416 + $0x58] sm:$0xf] %v461
                  %v463 = vld [vmem:[%s415 + $0x9c] sm:$0xf]
                  %464 = vst [vmem:[%s416 + $0x5c] sm:$0xf] %v463
                  %v465 = vld [vmem:[%s415 + $0xa0] sm:$0xf]
                  %466 = vst [vmem:[%s416 + $0x60] sm:$0xf] %v465
                  %v467 = vld [vmem:[%s415 + $0xa4] sm:$0xf]
                  %468 = vst [vmem:[%s416 + $0x64] sm:$0xf] %v467
                  %v469 = vld [vmem:[%s415 + $0xa8] sm:$0xf]
                  %470 = vst [vmem:[%s416 + $0x68] sm:$0xf] %v469
                  %v471 = vld [vmem:[%s415 + $0xac] sm:$0xf]
                  %472 = vst [vmem:[%s416 + $0x6c] sm:$0xf] %v471
                  %v473 = vld [vmem:[%s415 + $0xb0] sm:$0xf]
                  %474 = vst [vmem:[%s416 + $0x70] sm:$0xf] %v473
                  %v475 = vld [vmem:[%s415 + $0xb4] sm:$0xf]
                  %476 = vst [vmem:[%s416 + $0x74] sm:$0xf] %v475
                  %v477 = vld [vmem:[%s415 + $0xb8] sm:$0xf]
                  %478 = vst [vmem:[%s416 + $0x78] sm:$0xf] %v477
                  %v479 = vld [vmem:[%s415 + $0xbc] sm:$0xf]
                  %480 = vst [vmem:[%s416 + $0x7c] sm:$0xf] %v479
                  %v481 = vld [vmem:[%s415 + $0x100] sm:$0xf]
                  %482 = vst [vmem:[%s416 + $0x80] sm:$0xf] %v481
                  %v483 = vld [vmem:[%s415 + $0x104] sm:$0xf]
                  %484 = vst [vmem:[%s416 + $0x84] sm:$0xf] %v483
                  %v485 = vld [vmem:[%s415 + $0x108] sm:$0xf]
                  %486 = vst [vmem:[%s416 + $0x88] sm:$0xf] %v485
                  %v487 = vld [vmem:[%s415 + $0x10c] sm:$0xf]
                  %488 = vst [vmem:[%s416 + $0x8c] sm:$0xf] %v487
                  %v489 = vld [vmem:[%s415 + $0x110] sm:$0xf]
                  %490 = vst [vmem:[%s416 + $0x90] sm:$0xf] %v489
                  %v491 = vld [vmem:[%s415 + $0x114] sm:$0xf]
                  %492 = vst [vmem:[%s416 + $0x94] sm:$0xf] %v491
                  %v493 = vld [vmem:[%s415 + $0x118] sm:$0xf]
                  %494 = vst [vmem:[%s416 + $0x98] sm:$0xf] %v493
                  %v495 = vld [vmem:[%s415 + $0x11c] sm:$0xf]
                  %496 = vst [vmem:[%s416 + $0x9c] sm:$0xf] %v495
                  %v497 = vld [vmem:[%s415 + $0x120] sm:$0xf]
                  %498 = vst [vmem:[%s416 + $0xa0] sm:$0xf] %v497
                  %v499 = vld [vmem:[%s415 + $0x124] sm:$0xf]
                  %500 = vst [vmem:[%s416 + $0xa4] sm:$0xf] %v499
                  %v501 = vld [vmem:[%s415 + $0x128] sm:$0xf]
                  %502 = vst [vmem:[%s416 + $0xa8] sm:$0xf] %v501
                  %v503 = vld [vmem:[%s415 + $0x12c] sm:$0xf]
                  %504 = vst [vmem:[%s416 + $0xac] sm:$0xf] %v503
                  %v505 = vld [vmem:[%s415 + $0x130] sm:$0xf]
                  %506 = vst [vmem:[%s416 + $0xb0] sm:$0xf] %v505
                  %v507 = vld [vmem:[%s415 + $0x134] sm:$0xf]
                  %508 = vst [vmem:[%s416 + $0xb4] sm:$0xf] %v507
                  %v509 = vld [vmem:[%s415 + $0x138] sm:$0xf]
                  %510 = vst [vmem:[%s416 + $0xb8] sm:$0xf] %v509
                  %v511 = vld [vmem:[%s415 + $0x13c] sm:$0xf]
                  %512 = vst [vmem:[%s416 + $0xbc] sm:$0xf] %v511
                  %v513 = vld [vmem:[%s415 + $0x180] sm:$0xf]
                  %514 = vst [vmem:[%s416 + $0xc0] sm:$0xf] %v513
                  %v515 = vld [vmem:[%s415 + $0x184] sm:$0xf]
                  %516 = vst [vmem:[%s416 + $0xc4] sm:$0xf] %v515
                  %v517 = vld [vmem:[%s415 + $0x188] sm:$0xf]
                  %518 = vst [vmem:[%s416 + $0xc8] sm:$0xf] %v517
                  %v519 = vld [vmem:[%s415 + $0x18c] sm:$0xf]
                  %520 = vst [vmem:[%s416 + $0xcc] sm:$0xf] %v519
                  %v521 = vld [vmem:[%s415 + $0x190] sm:$0xf]
                  %522 = vst [vmem:[%s416 + $0xd0] sm:$0xf] %v521
                  %v523 = vld [vmem:[%s415 + $0x194] sm:$0xf]
                  %524 = vst [vmem:[%s416 + $0xd4] sm:$0xf] %v523
                  %v525 = vld [vmem:[%s415 + $0x198] sm:$0xf]
                  %526 = vst [vmem:[%s416 + $0xd8] sm:$0xf] %v525
                  %v527 = vld [vmem:[%s415 + $0x19c] sm:$0xf]
                  %528 = vst [vmem:[%s416 + $0xdc] sm:$0xf] %v527
                  %v529 = vld [vmem:[%s415 + $0x1a0] sm:$0xf]
                  %530 = vst [vmem:[%s416 + $0xe0] sm:$0xf] %v529
                  %v531 = vld [vmem:[%s415 + $0x1a4] sm:$0xf]
                  %532 = vst [vmem:[%s416 + $0xe4] sm:$0xf] %v531
                  %v533 = vld [vmem:[%s415 + $0x1a8] sm:$0xf]
                  %534 = vst [vmem:[%s416 + $0xe8] sm:$0xf] %v533
                  %v535 = vld [vmem:[%s415 + $0x1ac] sm:$0xf]
                  %536 = vst [vmem:[%s416 + $0xec] sm:$0xf] %v535
                  %v537 = vld [vmem:[%s415 + $0x1b0] sm:$0xf]
                  %538 = vst [vmem:[%s416 + $0xf0] sm:$0xf] %v537
                  %v539 = vld [vmem:[%s415 + $0x1b4] sm:$0xf]
                  %540 = vst [vmem:[%s416 + $0xf4] sm:$0xf] %v539
                  %v541 = vld [vmem:[%s415 + $0x1b8] sm:$0xf]
                  %542 = vst [vmem:[%s416 + $0xf8] sm:$0xf] %v541
                  %v543 = vld [vmem:[%s415 + $0x1bc] sm:$0xf]
                  %544 = vst [vmem:[%s416 + $0xfc] sm:$0xf] %v543
                  %v545 = vld [vmem:[%s415 + $0x200] sm:$0xf]
                  %546 = vst [vmem:[%s416 + $0x100] sm:$0xf] %v545
                  %v547 = vld [vmem:[%s415 + $0x204] sm:$0xf]
                  %548 = vst [vmem:[%s416 + $0x104] sm:$0xf] %v547
                  %v549 = vld [vmem:[%s415 + $0x208] sm:$0xf]
                  %550 = vst [vmem:[%s416 + $0x108] sm:$0xf] %v549
                  %v551 = vld [vmem:[%s415 + $0x20c] sm:$0xf]
                  %552 = vst [vmem:[%s416 + $0x10c] sm:$0xf] %v551
                  %v553 = vld [vmem:[%s415 + $0x210] sm:$0xf]
                  %554 = vst [vmem:[%s416 + $0x110] sm:$0xf] %v553
                  %v555 = vld [vmem:[%s415 + $0x214] sm:$0xf]
                  %556 = vst [vmem:[%s416 + $0x114] sm:$0xf] %v555
                  %v557 = vld [vmem:[%s415 + $0x218] sm:$0xf]
                  %558 = vst [vmem:[%s416 + $0x118] sm:$0xf] %v557
                  %v559 = vld [vmem:[%s415 + $0x21c] sm:$0xf]
                  %560 = vst [vmem:[%s416 + $0x11c] sm:$0xf] %v559
                  %v561 = vld [vmem:[%s415 + $0x220] sm:$0xf]
                  %562 = vst [vmem:[%s416 + $0x120] sm:$0xf] %v561
                  %v563 = vld [vmem:[%s415 + $0x224] sm:$0xf]
                  %564 = vst [vmem:[%s416 + $0x124] sm:$0xf] %v563
                  %v565 = vld [vmem:[%s415 + $0x228] sm:$0xf]
                  %566 = vst [vmem:[%s416 + $0x128] sm:$0xf] %v565
                  %v567 = vld [vmem:[%s415 + $0x22c] sm:$0xf]
                  %568 = vst [vmem:[%s416 + $0x12c] sm:$0xf] %v567
                  %v569 = vld [vmem:[%s415 + $0x230] sm:$0xf]
                  %570 = vst [vmem:[%s416 + $0x130] sm:$0xf] %v569
                  %v571 = vld [vmem:[%s415 + $0x234] sm:$0xf]
                  %572 = vst [vmem:[%s416 + $0x134] sm:$0xf] %v571
                  %v573 = vld [vmem:[%s415 + $0x238] sm:$0xf]
                  %574 = vst [vmem:[%s416 + $0x138] sm:$0xf] %v573
                  %v575 = vld [vmem:[%s415 + $0x23c] sm:$0xf]
                  %576 = vst [vmem:[%s416 + $0x13c] sm:$0xf] %v575
                  %v577 = vld [vmem:[%s415 + $0x280] sm:$0xf]
                  %578 = vst [vmem:[%s416 + $0x140] sm:$0xf] %v577
                  %v579 = vld [vmem:[%s415 + $0x284] sm:$0xf]
                  %580 = vst [vmem:[%s416 + $0x144] sm:$0xf] %v579
                  %v581 = vld [vmem:[%s415 + $0x288] sm:$0xf]
                  %582 = vst [vmem:[%s416 + $0x148] sm:$0xf] %v581
                  %v583 = vld [vmem:[%s415 + $0x28c] sm:$0xf]
                  %584 = vst [vmem:[%s416 + $0x14c] sm:$0xf] %v583
                  %v585 = vld [vmem:[%s415 + $0x290] sm:$0xf]
                  %586 = vst [vmem:[%s416 + $0x150] sm:$0xf] %v585
                  %v587 = vld [vmem:[%s415 + $0x294] sm:$0xf]
                  %588 = vst [vmem:[%s416 + $0x154] sm:$0xf] %v587
                  %v589 = vld [vmem:[%s415 + $0x298] sm:$0xf]
                  %590 = vst [vmem:[%s416 + $0x158] sm:$0xf] %v589
                  %v591 = vld [vmem:[%s415 + $0x29c] sm:$0xf]
                  %592 = vst [vmem:[%s416 + $0x15c] sm:$0xf] %v591
                  %v593 = vld [vmem:[%s415 + $0x2a0] sm:$0xf]
                  %594 = vst [vmem:[%s416 + $0x160] sm:$0xf] %v593
                  %v595 = vld [vmem:[%s415 + $0x2a4] sm:$0xf]
                  %596 = vst [vmem:[%s416 + $0x164] sm:$0xf] %v595
                  %v597 = vld [vmem:[%s415 + $0x2a8] sm:$0xf]
                  %598 = vst [vmem:[%s416 + $0x168] sm:$0xf] %v597
                  %v599 = vld [vmem:[%s415 + $0x2ac] sm:$0xf]
                  %600 = vst [vmem:[%s416 + $0x16c] sm:$0xf] %v599
                  %v601 = vld [vmem:[%s415 + $0x2b0] sm:$0xf]
                  %602 = vst [vmem:[%s416 + $0x170] sm:$0xf] %v601
                  %v603 = vld [vmem:[%s415 + $0x2b4] sm:$0xf]
                  %604 = vst [vmem:[%s416 + $0x174] sm:$0xf] %v603
                  %v605 = vld [vmem:[%s415 + $0x2b8] sm:$0xf]
                  %606 = vst [vmem:[%s416 + $0x178] sm:$0xf] %v605
                  %v607 = vld [vmem:[%s415 + $0x2bc] sm:$0xf]
                  %608 = vst [vmem:[%s416 + $0x17c] sm:$0xf] %v607
                  %v609 = vld [vmem:[%s415 + $0x300] sm:$0xf]
                  %610 = vst [vmem:[%s416 + $0x180] sm:$0xf] %v609
                  %v611 = vld [vmem:[%s415 + $0x304] sm:$0xf]
                  %612 = vst [vmem:[%s416 + $0x184] sm:$0xf] %v611
                  %v613 = vld [vmem:[%s415 + $0x308] sm:$0xf]
                  %614 = vst [vmem:[%s416 + $0x188] sm:$0xf] %v613
                  %v615 = vld [vmem:[%s415 + $0x30c] sm:$0xf]
                  %616 = vst [vmem:[%s416 + $0x18c] sm:$0xf] %v615
                  %v617 = vld [vmem:[%s415 + $0x310] sm:$0xf]
                  %618 = vst [vmem:[%s416 + $0x190] sm:$0xf] %v617
                  %v619 = vld [vmem:[%s415 + $0x314] sm:$0xf]
                  %620 = vst [vmem:[%s416 + $0x194] sm:$0xf] %v619
                  %v621 = vld [vmem:[%s415 + $0x318] sm:$0xf]
                  %622 = vst [vmem:[%s416 + $0x198] sm:$0xf] %v621
                  %v623 = vld [vmem:[%s415 + $0x31c] sm:$0xf]
                  %624 = vst [vmem:[%s416 + $0x19c] sm:$0xf] %v623
                  %v625 = vld [vmem:[%s415 + $0x320] sm:$0xf]
                  %626 = vst [vmem:[%s416 + $0x1a0] sm:$0xf] %v625
                  %v627 = vld [vmem:[%s415 + $0x324] sm:$0xf]
                  %628 = vst [vmem:[%s416 + $0x1a4] sm:$0xf] %v627
                  %v629 = vld [vmem:[%s415 + $0x328] sm:$0xf]
                  %630 = vst [vmem:[%s416 + $0x1a8] sm:$0xf] %v629
                  %v631 = vld [vmem:[%s415 + $0x32c] sm:$0xf]
                  %632 = vst [vmem:[%s416 + $0x1ac] sm:$0xf] %v631
                  %v633 = vld [vmem:[%s415 + $0x330] sm:$0xf]
                  %634 = vst [vmem:[%s416 + $0x1b0] sm:$0xf] %v633
                  %v635 = vld [vmem:[%s415 + $0x334] sm:$0xf]
                  %636 = vst [vmem:[%s416 + $0x1b4] sm:$0xf] %v635
                  %v637 = vld [vmem:[%s415 + $0x338] sm:$0xf]
                  %638 = vst [vmem:[%s416 + $0x1b8] sm:$0xf] %v637
                  %v639 = vld [vmem:[%s415 + $0x33c] sm:$0xf]
                  %640 = vst [vmem:[%s416 + $0x1bc] sm:$0xf] %v639
                  %v641 = vld [vmem:[%s415 + $0x380] sm:$0xf]
                  %642 = vst [vmem:[%s416 + $0x1c0] sm:$0xf] %v641
                  %v643 = vld [vmem:[%s415 + $0x384] sm:$0xf]
                  %644 = vst [vmem:[%s416 + $0x1c4] sm:$0xf] %v643
                  %v645 = vld [vmem:[%s415 + $0x388] sm:$0xf]
                  %646 = vst [vmem:[%s416 + $0x1c8] sm:$0xf] %v645
                  %v647 = vld [vmem:[%s415 + $0x38c] sm:$0xf]
                  %648 = vst [vmem:[%s416 + $0x1cc] sm:$0xf] %v647
                  %v649 = vld [vmem:[%s415 + $0x390] sm:$0xf]
                  %650 = vst [vmem:[%s416 + $0x1d0] sm:$0xf] %v649
                  %v651 = vld [vmem:[%s415 + $0x394] sm:$0xf]
                  %652 = vst [vmem:[%s416 + $0x1d4] sm:$0xf] %v651
                  %v653 = vld [vmem:[%s415 + $0x398] sm:$0xf]
                  %654 = vst [vmem:[%s416 + $0x1d8] sm:$0xf] %v653
                  %v655 = vld [vmem:[%s415 + $0x39c] sm:$0xf]
                  %656 = vst [vmem:[%s416 + $0x1dc] sm:$0xf] %v655
                  %v657 = vld [vmem:[%s415 + $0x3a0] sm:$0xf]
                  %658 = vst [vmem:[%s416 + $0x1e0] sm:$0xf] %v657
                  %v659 = vld [vmem:[%s415 + $0x3a4] sm:$0xf]
                  %660 = vst [vmem:[%s416 + $0x1e4] sm:$0xf] %v659
                  %v661 = vld [vmem:[%s415 + $0x3a8] sm:$0xf]
                  %662 = vst [vmem:[%s416 + $0x1e8] sm:$0xf] %v661
                  %v663 = vld [vmem:[%s415 + $0x3ac] sm:$0xf]
                  %664 = vst [vmem:[%s416 + $0x1ec] sm:$0xf] %v663
                  %v665 = vld [vmem:[%s415 + $0x3b0] sm:$0xf]
                  %666 = vst [vmem:[%s416 + $0x1f0] sm:$0xf] %v665
                  %v667 = vld [vmem:[%s415 + $0x3b4] sm:$0xf]
                  %668 = vst [vmem:[%s416 + $0x1f4] sm:$0xf] %v667
                  %v669 = vld [vmem:[%s415 + $0x3b8] sm:$0xf]
                  %670 = vst [vmem:[%s416 + $0x1f8] sm:$0xf] %v669
                  %v671 = vld [vmem:[%s415 + $0x3bc] sm:$0xf]
                  %672 = vst [vmem:[%s416 + $0x1fc] sm:$0xf] %v671
                $region55: #{forward.2} parent=42 // loop_footer
                  %s414 = sadd.s32 1, %s410
                $region56: #{forward.2} parent=42 // loop_footer_branch
                  %409 = sbr.rel target = $region52
                $region57: #{forward.2} parent=42 // loop_exit
                  _
              $region43: #{forward.2} parent=27 // pred_fallthru
                _
            $region28: #{forward.2} parent=23 // pred_fallthru
              _
            // Predicated region
            $region29: #{forward.2} parent=23 // pred_check
              _
            $region30: #{forward.2} parent=23 // pred_check_branch
              %132 = sbr.rel (0) target = $region32
            $region31: #{forward.2} parent=23 // pred_region
              loop: start=0, step=1, limit=1
              $region33: #{forward.2} parent=31 // loop_pre_header
                _
              $region34: #{forward.2} parent=31 // loop_header
                %s135 = sphi 0, %s139
                %p136 = scmp.ge.s32.totalorder %s135, 1
                %s140 = sphi %s126, %s126
                %s141 = sphi %s123, %s123
              $region35: #{forward.2} parent=31 // loop_header_branch
                %138 = sbr.rel (%p136) target = $region39
              $region36: #{forward.2} parent=31 // loop_body
                %v142 = vld [vmem:[%s140] sm:$0xf]
                %143 = vst [vmem:[%s141] sm:$0xf] %v142
                %v144 = vld [vmem:[%s140 + $0x4] sm:$0xf]
                %145 = vst [vmem:[%s141 + $0x4] sm:$0xf] %v144
                %v146 = vld [vmem:[%s140 + $0x8] sm:$0xf]
                %147 = vst [vmem:[%s141 + $0x8] sm:$0xf] %v146
                %v148 = vld [vmem:[%s140 + $0xc] sm:$0xf]
                %149 = vst [vmem:[%s141 + $0xc] sm:$0xf] %v148
                %v150 = vld [vmem:[%s140 + $0x10] sm:$0xf]
                %151 = vst [vmem:[%s141 + $0x10] sm:$0xf] %v150
                %v152 = vld [vmem:[%s140 + $0x14] sm:$0xf]
                %153 = vst [vmem:[%s141 + $0x14] sm:$0xf] %v152
                %v154 = vld [vmem:[%s140 + $0x18] sm:$0xf]
                %155 = vst [vmem:[%s141 + $0x18] sm:$0xf] %v154
                %v156 = vld [vmem:[%s140 + $0x1c] sm:$0xf]
                %157 = vst [vmem:[%s141 + $0x1c] sm:$0xf] %v156
                %v158 = vld [vmem:[%s140 + $0x20] sm:$0xf]
                %159 = vst [vmem:[%s141 + $0x20] sm:$0xf] %v158
                %v160 = vld [vmem:[%s140 + $0x24] sm:$0xf]
                %161 = vst [vmem:[%s141 + $0x24] sm:$0xf] %v160
                %v162 = vld [vmem:[%s140 + $0x28] sm:$0xf]
                %163 = vst [vmem:[%s141 + $0x28] sm:$0xf] %v162
                %v164 = vld [vmem:[%s140 + $0x2c] sm:$0xf]
                %165 = vst [vmem:[%s141 + $0x2c] sm:$0xf] %v164
                %v166 = vld [vmem:[%s140 + $0x30] sm:$0xf]
                %167 = vst [vmem:[%s141 + $0x30] sm:$0xf] %v166
                %v168 = vld [vmem:[%s140 + $0x34] sm:$0xf]
                %169 = vst [vmem:[%s141 + $0x34] sm:$0xf] %v168
                %v170 = vld [vmem:[%s140 + $0x38] sm:$0xf]
                %171 = vst [vmem:[%s141 + $0x38] sm:$0xf] %v170
                %v172 = vld [vmem:[%s140 + $0x3c] sm:$0xf]
                %173 = vst [vmem:[%s141 + $0x3c] sm:$0xf] %v172
                %v174 = vld [vmem:[%s140 + $0x80] sm:$0xf]
                %175 = vst [vmem:[%s141 + $0x40] sm:$0xf] %v174
                %v176 = vld [vmem:[%s140 + $0x84] sm:$0xf]
                %177 = vst [vmem:[%s141 + $0x44] sm:$0xf] %v176
                %v178 = vld [vmem:[%s140 + $0x88] sm:$0xf]
                %179 = vst [vmem:[%s141 + $0x48] sm:$0xf] %v178
                %v180 = vld [vmem:[%s140 + $0x8c] sm:$0xf]
                %181 = vst [vmem:[%s141 + $0x4c] sm:$0xf] %v180
                %v182 = vld [vmem:[%s140 + $0x90] sm:$0xf]
                %183 = vst [vmem:[%s141 + $0x50] sm:$0xf] %v182
                %v184 = vld [vmem:[%s140 + $0x94] sm:$0xf]
                %185 = vst [vmem:[%s141 + $0x54] sm:$0xf] %v184
                %v186 = vld [vmem:[%s140 + $0x98] sm:$0xf]
                %187 = vst [vmem:[%s141 + $0x58] sm:$0xf] %v186
                %v188 = vld [vmem:[%s140 + $0x9c] sm:$0xf]
                %189 = vst [vmem:[%s141 + $0x5c] sm:$0xf] %v188
                %v190 = vld [vmem:[%s140 + $0xa0] sm:$0xf]
                %191 = vst [vmem:[%s141 + $0x60] sm:$0xf] %v190
                %v192 = vld [vmem:[%s140 + $0xa4] sm:$0xf]
                %193 = vst [vmem:[%s141 + $0x64] sm:$0xf] %v192
                %v194 = vld [vmem:[%s140 + $0xa8] sm:$0xf]
                %195 = vst [vmem:[%s141 + $0x68] sm:$0xf] %v194
                %v196 = vld [vmem:[%s140 + $0xac] sm:$0xf]
                %197 = vst [vmem:[%s141 + $0x6c] sm:$0xf] %v196
                %v198 = vld [vmem:[%s140 + $0xb0] sm:$0xf]
                %199 = vst [vmem:[%s141 + $0x70] sm:$0xf] %v198
                %v200 = vld [vmem:[%s140 + $0xb4] sm:$0xf]
                %201 = vst [vmem:[%s141 + $0x74] sm:$0xf] %v200
                %v202 = vld [vmem:[%s140 + $0xb8] sm:$0xf]
                %203 = vst [vmem:[%s141 + $0x78] sm:$0xf] %v202
                %v204 = vld [vmem:[%s140 + $0xbc] sm:$0xf]
                %205 = vst [vmem:[%s141 + $0x7c] sm:$0xf] %v204
                %v206 = vld [vmem:[%s140 + $0x100] sm:$0xf]
                %207 = vst [vmem:[%s141 + $0x80] sm:$0xf] %v206
                %v208 = vld [vmem:[%s140 + $0x104] sm:$0xf]
                %209 = vst [vmem:[%s141 + $0x84] sm:$0xf] %v208
                %v210 = vld [vmem:[%s140 + $0x108] sm:$0xf]
                %211 = vst [vmem:[%s141 + $0x88] sm:$0xf] %v210
                %v212 = vld [vmem:[%s140 + $0x10c] sm:$0xf]
                %213 = vst [vmem:[%s141 + $0x8c] sm:$0xf] %v212
                %v214 = vld [vmem:[%s140 + $0x110] sm:$0xf]
                %215 = vst [vmem:[%s141 + $0x90] sm:$0xf] %v214
                %v216 = vld [vmem:[%s140 + $0x114] sm:$0xf]
                %217 = vst [vmem:[%s141 + $0x94] sm:$0xf] %v216
                %v218 = vld [vmem:[%s140 + $0x118] sm:$0xf]
                %219 = vst [vmem:[%s141 + $0x98] sm:$0xf] %v218
                %v220 = vld [vmem:[%s140 + $0x11c] sm:$0xf]
                %221 = vst [vmem:[%s141 + $0x9c] sm:$0xf] %v220
                %v222 = vld [vmem:[%s140 + $0x120] sm:$0xf]
                %223 = vst [vmem:[%s141 + $0xa0] sm:$0xf] %v222
                %v224 = vld [vmem:[%s140 + $0x124] sm:$0xf]
                %225 = vst [vmem:[%s141 + $0xa4] sm:$0xf] %v224
                %v226 = vld [vmem:[%s140 + $0x128] sm:$0xf]
                %227 = vst [vmem:[%s141 + $0xa8] sm:$0xf] %v226
                %v228 = vld [vmem:[%s140 + $0x12c] sm:$0xf]
                %229 = vst [vmem:[%s141 + $0xac] sm:$0xf] %v228
                %v230 = vld [vmem:[%s140 + $0x130] sm:$0xf]
                %231 = vst [vmem:[%s141 + $0xb0] sm:$0xf] %v230
                %v232 = vld [vmem:[%s140 + $0x134] sm:$0xf]
                %233 = vst [vmem:[%s141 + $0xb4] sm:$0xf] %v232
                %v234 = vld [vmem:[%s140 + $0x138] sm:$0xf]
                %235 = vst [vmem:[%s141 + $0xb8] sm:$0xf] %v234
                %v236 = vld [vmem:[%s140 + $0x13c] sm:$0xf]
                %237 = vst [vmem:[%s141 + $0xbc] sm:$0xf] %v236
                %v238 = vld [vmem:[%s140 + $0x180] sm:$0xf]
                %239 = vst [vmem:[%s141 + $0xc0] sm:$0xf] %v238
                %v240 = vld [vmem:[%s140 + $0x184] sm:$0xf]
                %241 = vst [vmem:[%s141 + $0xc4] sm:$0xf] %v240
                %v242 = vld [vmem:[%s140 + $0x188] sm:$0xf]
                %243 = vst [vmem:[%s141 + $0xc8] sm:$0xf] %v242
                %v244 = vld [vmem:[%s140 + $0x18c] sm:$0xf]
                %245 = vst [vmem:[%s141 + $0xcc] sm:$0xf] %v244
                %v246 = vld [vmem:[%s140 + $0x190] sm:$0xf]
                %247 = vst [vmem:[%s141 + $0xd0] sm:$0xf] %v246
                %v248 = vld [vmem:[%s140 + $0x194] sm:$0xf]
                %249 = vst [vmem:[%s141 + $0xd4] sm:$0xf] %v248
                %v250 = vld [vmem:[%s140 + $0x198] sm:$0xf]
                %251 = vst [vmem:[%s141 + $0xd8] sm:$0xf] %v250
                %v252 = vld [vmem:[%s140 + $0x19c] sm:$0xf]
                %253 = vst [vmem:[%s141 + $0xdc] sm:$0xf] %v252
                %v254 = vld [vmem:[%s140 + $0x1a0] sm:$0xf]
                %255 = vst [vmem:[%s141 + $0xe0] sm:$0xf] %v254
                %v256 = vld [vmem:[%s140 + $0x1a4] sm:$0xf]
                %257 = vst [vmem:[%s141 + $0xe4] sm:$0xf] %v256
                %v258 = vld [vmem:[%s140 + $0x1a8] sm:$0xf]
                %259 = vst [vmem:[%s141 + $0xe8] sm:$0xf] %v258
                %v260 = vld [vmem:[%s140 + $0x1ac] sm:$0xf]
                %261 = vst [vmem:[%s141 + $0xec] sm:$0xf] %v260
                %v262 = vld [vmem:[%s140 + $0x1b0] sm:$0xf]
                %263 = vst [vmem:[%s141 + $0xf0] sm:$0xf] %v262
                %v264 = vld [vmem:[%s140 + $0x1b4] sm:$0xf]
                %265 = vst [vmem:[%s141 + $0xf4] sm:$0xf] %v264
                %v266 = vld [vmem:[%s140 + $0x1b8] sm:$0xf]
                %267 = vst [vmem:[%s141 + $0xf8] sm:$0xf] %v266
                %v268 = vld [vmem:[%s140 + $0x1bc] sm:$0xf]
                %269 = vst [vmem:[%s141 + $0xfc] sm:$0xf] %v268
                %v270 = vld [vmem:[%s140 + $0x200] sm:$0xf]
                %271 = vst [vmem:[%s141 + $0x100] sm:$0xf] %v270
                %v272 = vld [vmem:[%s140 + $0x204] sm:$0xf]
                %273 = vst [vmem:[%s141 + $0x104] sm:$0xf] %v272
                %v274 = vld [vmem:[%s140 + $0x208] sm:$0xf]
                %275 = vst [vmem:[%s141 + $0x108] sm:$0xf] %v274
                %v276 = vld [vmem:[%s140 + $0x20c] sm:$0xf]
                %277 = vst [vmem:[%s141 + $0x10c] sm:$0xf] %v276
                %v278 = vld [vmem:[%s140 + $0x210] sm:$0xf]
                %279 = vst [vmem:[%s141 + $0x110] sm:$0xf] %v278
                %v280 = vld [vmem:[%s140 + $0x214] sm:$0xf]
                %281 = vst [vmem:[%s141 + $0x114] sm:$0xf] %v280
                %v282 = vld [vmem:[%s140 + $0x218] sm:$0xf]
                %283 = vst [vmem:[%s141 + $0x118] sm:$0xf] %v282
                %v284 = vld [vmem:[%s140 + $0x21c] sm:$0xf]
                %285 = vst [vmem:[%s141 + $0x11c] sm:$0xf] %v284
                %v286 = vld [vmem:[%s140 + $0x220] sm:$0xf]
                %287 = vst [vmem:[%s141 + $0x120] sm:$0xf] %v286
                %v288 = vld [vmem:[%s140 + $0x224] sm:$0xf]
                %289 = vst [vmem:[%s141 + $0x124] sm:$0xf] %v288
                %v290 = vld [vmem:[%s140 + $0x228] sm:$0xf]
                %291 = vst [vmem:[%s141 + $0x128] sm:$0xf] %v290
                %v292 = vld [vmem:[%s140 + $0x22c] sm:$0xf]
                %293 = vst [vmem:[%s141 + $0x12c] sm:$0xf] %v292
                %v294 = vld [vmem:[%s140 + $0x230] sm:$0xf]
                %295 = vst [vmem:[%s141 + $0x130] sm:$0xf] %v294
                %v296 = vld [vmem:[%s140 + $0x234] sm:$0xf]
                %297 = vst [vmem:[%s141 + $0x134] sm:$0xf] %v296
                %v298 = vld [vmem:[%s140 + $0x238] sm:$0xf]
                %299 = vst [vmem:[%s141 + $0x138] sm:$0xf] %v298
                %v300 = vld [vmem:[%s140 + $0x23c] sm:$0xf]
                %301 = vst [vmem:[%s141 + $0x13c] sm:$0xf] %v300
                %v302 = vld [vmem:[%s140 + $0x280] sm:$0xf]
                %303 = vst [vmem:[%s141 + $0x140] sm:$0xf] %v302
                %v304 = vld [vmem:[%s140 + $0x284] sm:$0xf]
                %305 = vst [vmem:[%s141 + $0x144] sm:$0xf] %v304
                %v306 = vld [vmem:[%s140 + $0x288] sm:$0xf]
                %307 = vst [vmem:[%s141 + $0x148] sm:$0xf] %v306
                %v308 = vld [vmem:[%s140 + $0x28c] sm:$0xf]
                %309 = vst [vmem:[%s141 + $0x14c] sm:$0xf] %v308
                %v310 = vld [vmem:[%s140 + $0x290] sm:$0xf]
                %311 = vst [vmem:[%s141 + $0x150] sm:$0xf] %v310
                %v312 = vld [vmem:[%s140 + $0x294] sm:$0xf]
                %313 = vst [vmem:[%s141 + $0x154] sm:$0xf] %v312
                %v314 = vld [vmem:[%s140 + $0x298] sm:$0xf]
                %315 = vst [vmem:[%s141 + $0x158] sm:$0xf] %v314
                %v316 = vld [vmem:[%s140 + $0x29c] sm:$0xf]
                %317 = vst [vmem:[%s141 + $0x15c] sm:$0xf] %v316
                %v318 = vld [vmem:[%s140 + $0x2a0] sm:$0xf]
                %319 = vst [vmem:[%s141 + $0x160] sm:$0xf] %v318
                %v320 = vld [vmem:[%s140 + $0x2a4] sm:$0xf]
                %321 = vst [vmem:[%s141 + $0x164] sm:$0xf] %v320
                %v322 = vld [vmem:[%s140 + $0x2a8] sm:$0xf]
                %323 = vst [vmem:[%s141 + $0x168] sm:$0xf] %v322
                %v324 = vld [vmem:[%s140 + $0x2ac] sm:$0xf]
                %325 = vst [vmem:[%s141 + $0x16c] sm:$0xf] %v324
                %v326 = vld [vmem:[%s140 + $0x2b0] sm:$0xf]
                %327 = vst [vmem:[%s141 + $0x170] sm:$0xf] %v326
                %v328 = vld [vmem:[%s140 + $0x2b4] sm:$0xf]
                %329 = vst [vmem:[%s141 + $0x174] sm:$0xf] %v328
                %v330 = vld [vmem:[%s140 + $0x2b8] sm:$0xf]
                %331 = vst [vmem:[%s141 + $0x178] sm:$0xf] %v330
                %v332 = vld [vmem:[%s140 + $0x2bc] sm:$0xf]
                %333 = vst [vmem:[%s141 + $0x17c] sm:$0xf] %v332
                %v334 = vld [vmem:[%s140 + $0x300] sm:$0xf]
                %335 = vst [vmem:[%s141 + $0x180] sm:$0xf] %v334
                %v336 = vld [vmem:[%s140 + $0x304] sm:$0xf]
                %337 = vst [vmem:[%s141 + $0x184] sm:$0xf] %v336
                %v338 = vld [vmem:[%s140 + $0x308] sm:$0xf]
                %339 = vst [vmem:[%s141 + $0x188] sm:$0xf] %v338
                %v340 = vld [vmem:[%s140 + $0x30c] sm:$0xf]
                %341 = vst [vmem:[%s141 + $0x18c] sm:$0xf] %v340
                %v342 = vld [vmem:[%s140 + $0x310] sm:$0xf]
                %343 = vst [vmem:[%s141 + $0x190] sm:$0xf] %v342
                %v344 = vld [vmem:[%s140 + $0x314] sm:$0xf]
                %345 = vst [vmem:[%s141 + $0x194] sm:$0xf] %v344
                %v346 = vld [vmem:[%s140 + $0x318] sm:$0xf]
                %347 = vst [vmem:[%s141 + $0x198] sm:$0xf] %v346
                %v348 = vld [vmem:[%s140 + $0x31c] sm:$0xf]
                %349 = vst [vmem:[%s141 + $0x19c] sm:$0xf] %v348
                %v350 = vld [vmem:[%s140 + $0x320] sm:$0xf]
                %351 = vst [vmem:[%s141 + $0x1a0] sm:$0xf] %v350
                %v352 = vld [vmem:[%s140 + $0x324] sm:$0xf]
                %353 = vst [vmem:[%s141 + $0x1a4] sm:$0xf] %v352
                %v354 = vld [vmem:[%s140 + $0x328] sm:$0xf]
                %355 = vst [vmem:[%s141 + $0x1a8] sm:$0xf] %v354
                %v356 = vld [vmem:[%s140 + $0x32c] sm:$0xf]
                %357 = vst [vmem:[%s141 + $0x1ac] sm:$0xf] %v356
                %v358 = vld [vmem:[%s140 + $0x330] sm:$0xf]
                %359 = vst [vmem:[%s141 + $0x1b0] sm:$0xf] %v358
                %v360 = vld [vmem:[%s140 + $0x334] sm:$0xf]
                %361 = vst [vmem:[%s141 + $0x1b4] sm:$0xf] %v360
                %v362 = vld [vmem:[%s140 + $0x338] sm:$0xf]
                %363 = vst [vmem:[%s141 + $0x1b8] sm:$0xf] %v362
                %v364 = vld [vmem:[%s140 + $0x33c] sm:$0xf]
                %365 = vst [vmem:[%s141 + $0x1bc] sm:$0xf] %v364
                %v366 = vld [vmem:[%s140 + $0x380] sm:$0xf]
                %367 = vst [vmem:[%s141 + $0x1c0] sm:$0xf] %v366
                %v368 = vld [vmem:[%s140 + $0x384] sm:$0xf]
                %369 = vst [vmem:[%s141 + $0x1c4] sm:$0xf] %v368
                %v370 = vld [vmem:[%s140 + $0x388] sm:$0xf]
                %371 = vst [vmem:[%s141 + $0x1c8] sm:$0xf] %v370
                %v372 = vld [vmem:[%s140 + $0x38c] sm:$0xf]
                %373 = vst [vmem:[%s141 + $0x1cc] sm:$0xf] %v372
                %v374 = vld [vmem:[%s140 + $0x390] sm:$0xf]
                %375 = vst [vmem:[%s141 + $0x1d0] sm:$0xf] %v374
                %v376 = vld [vmem:[%s140 + $0x394] sm:$0xf]
                %377 = vst [vmem:[%s141 + $0x1d4] sm:$0xf] %v376
                %v378 = vld [vmem:[%s140 + $0x398] sm:$0xf]
                %379 = vst [vmem:[%s141 + $0x1d8] sm:$0xf] %v378
                %v380 = vld [vmem:[%s140 + $0x39c] sm:$0xf]
                %381 = vst [vmem:[%s141 + $0x1dc] sm:$0xf] %v380
                %v382 = vld [vmem:[%s140 + $0x3a0] sm:$0xf]
                %383 = vst [vmem:[%s141 + $0x1e0] sm:$0xf] %v382
                %v384 = vld [vmem:[%s140 + $0x3a4] sm:$0xf]
                %385 = vst [vmem:[%s141 + $0x1e4] sm:$0xf] %v384
                %v386 = vld [vmem:[%s140 + $0x3a8] sm:$0xf]
                %387 = vst [vmem:[%s141 + $0x1e8] sm:$0xf] %v386
                %v388 = vld [vmem:[%s140 + $0x3ac] sm:$0xf]
                %389 = vst [vmem:[%s141 + $0x1ec] sm:$0xf] %v388
                %v390 = vld [vmem:[%s140 + $0x3b0] sm:$0xf]
                %391 = vst [vmem:[%s141 + $0x1f0] sm:$0xf] %v390
                %v392 = vld [vmem:[%s140 + $0x3b4] sm:$0xf]
                %393 = vst [vmem:[%s141 + $0x1f4] sm:$0xf] %v392
                %v394 = vld [vmem:[%s140 + $0x3b8] sm:$0xf]
                %395 = vst [vmem:[%s141 + $0x1f8] sm:$0xf] %v394
                %v396 = vld [vmem:[%s140 + $0x3bc] sm:$0xf]
                %397 = vst [vmem:[%s141 + $0x1fc] sm:$0xf] %v396
              $region37: #{forward.2} parent=31 // loop_footer
                %s139 = sadd.s32 1, %s135
              $region38: #{forward.2} parent=31 // loop_footer_branch
                %134 = sbr.rel target = $region34
              $region39: #{forward.2} parent=31 // loop_exit
                _
            $region32: #{forward.2} parent=23 // pred_fallthru
              _
          $region24: #{forward.2} parent=19 // pred_fallthru
            _
          %673 = vnop
        $region20: #{forward.2} parent=15 // pred_fallthru
          _
        // Predicated region
        $region58: #{forward.2} parent=15 // pred_check
          %p674 = pneg %p66
        $region59: #{forward.2} parent=15 // pred_check_branch
          %676 = sbr.rel (%p674) target = $region61
        $region60: #{forward.2} parent=15 // pred_region
          %p677 = scmp.lt.s32.totalorder %s15, 1
          %s678 = scalar_select %p677, %s15, 1
          %s679 = smul.addr %s678, 2
          %s680 = scalar_lea.vmem %s1, %s679
        $region61: #{forward.2} parent=15 // pred_fallthru
          _
      $region16: #{forward.2} parent=5 // pred_fallthru
        _
      %p681 = scmp.le.s32.totalorder 1, %s8
      %p682 = scmp.lt.s32.totalorder %s8, 5
      %p683 = pnand %p681, %p682
      %p684 = pneg %p683
      // Predicated region
      $region62: #{forward.2} parent=5 // pred_check
        _
      $region63: #{forward.2} parent=5 // pred_check_branch
        %686 = sbr.rel (%p683) target = $region65
      $region64: #{forward.2} parent=5 // pred_region
        %s687 = ssub.s32 %s8, 1
        %s688 = sand.u32 %s33, 1
        %s689 = sand.u32 %s33, 1
        %s690 = smul.addr %s689, 512
        %s691 = scalar_lea.vmem [#allocation3], %s690
        // Predicated region
        $region66: #{forward.2} parent=64 // pred_check
          %p692 = pneg %p46
        $region67: #{forward.2} parent=64 // pred_check_branch
          %694 = sbr.rel (%p692) target = $region69
        $region68: #{forward.2} parent=64 // pred_region
          _
        $region69: #{forward.2} parent=64 // pred_fallthru
          _
        %s695 = sand.u32 %s33, 1
        %s696 = sand.u32 %s33, 1
        %s697 = smul.addr %s696, 512
        %s698 = scalar_lea.vmem [#allocation3], %s697
        %p699 = pneg %p46
        %p700 = pneg %p43
        %p701 = scmp.lt.s32.totalorder %s17, 1
        %s702 = scalar_select %p701, %s17, 1
        %s703 = smul.addr %s702, 2
        %s704 = scalar_lea.vmem %s1, %s703
        %p705 = pneg %p72
        %p706 = pneg %p69
        %p707 = pneg %p98
        %p708 = pneg %p95
        %p709 = scmp.lt.s32.totalorder %s17, 1
        %s710 = scalar_select %p709, %s17, 1
        %s711 = smul.addr %s710, 8
        %s712 = scalar_lea.vmem %s2, %s711
        %s713 = smul.u32 16, %s18
        %p714 = scmp.lt.s32.totalorder %s17, 1
        %s715 = scalar_select %p714, %s17, 1
        %s716 = smul.addr %s715, 2
        %s717 = scalar_lea.vmem %s1, %s716
        %p718 = scmp.lt.s32.totalorder %s17, 1
        %s719 = scalar_select %p718, %s17, 1
        %s720 = smul.addr %s719, 8
        %s721 = scalar_lea.vmem %s2, %s720
        %p723 = scmp.eq.s32.totalorder %s18, 0
        // Predicated region
        $region70: #{forward.2} parent=64 // pred_check
          %p724 = pneg %p723
        $region71: #{forward.2} parent=64 // pred_check_branch
          %726 = sbr.rel (%p724) target = $region73
        $region72: #{forward.2} parent=64 // pred_region
          %727 = vst [vmem:[#allocation2] sm:$0xff] 0.0
        $region73: #{forward.2} parent=64 // pred_fallthru
          _
        %v728 = vld [vmem:[%s691] sm:$0xf]
        %v729 = vld [vmem:[%s691 + $0x4] sm:$0xf]
        %v730 = vld [vmem:[%s691 + $0x8] sm:$0xf]
        %v731 = vld [vmem:[%s691 + $0xc] sm:$0xf]
        %v732 = vld [vmem:[%s691 + $0x10] sm:$0xf]
        %v733 = vld [vmem:[%s691 + $0x14] sm:$0xf]
        %v734 = vld [vmem:[%s691 + $0x18] sm:$0xf]
        %v735 = vld [vmem:[%s691 + $0x1c] sm:$0xf]
        %v736 = vld [vmem:[%s691 + $0x20] sm:$0xf]
        %v737 = vld [vmem:[%s691 + $0x24] sm:$0xf]
        %v738 = vld [vmem:[%s691 + $0x28] sm:$0xf]
        %v739 = vld [vmem:[%s691 + $0x2c] sm:$0xf]
        %v740 = vld [vmem:[%s691 + $0x30] sm:$0xf]
        %v741 = vld [vmem:[%s691 + $0x34] sm:$0xf]
        %v742 = vld [vmem:[%s691 + $0x38] sm:$0xf]
        %v743 = vld [vmem:[%s691 + $0x3c] sm:$0xf]
        %v744 = vld [vmem:[%s691 + $0x40] sm:$0xf]
        %v745 = vld [vmem:[%s691 + $0x44] sm:$0xf]
        %v746 = vld [vmem:[%s691 + $0x48] sm:$0xf]
        %v747 = vld [vmem:[%s691 + $0x4c] sm:$0xf]
        %v748 = vld [vmem:[%s691 + $0x50] sm:$0xf]
        %v749 = vld [vmem:[%s691 + $0x54] sm:$0xf]
        %v750 = vld [vmem:[%s691 + $0x58] sm:$0xf]
        %v751 = vld [vmem:[%s691 + $0x5c] sm:$0xf]
        %v752 = vld [vmem:[%s691 + $0x60] sm:$0xf]
        %v753 = vld [vmem:[%s691 + $0x64] sm:$0xf]
        %v754 = vld [vmem:[%s691 + $0x68] sm:$0xf]
        %v755 = vld [vmem:[%s691 + $0x6c] sm:$0xf]
        %v756 = vld [vmem:[%s691 + $0x70] sm:$0xf]
        %v757 = vld [vmem:[%s691 + $0x74] sm:$0xf]
        %v758 = vld [vmem:[%s691 + $0x78] sm:$0xf]
        %v759 = vld [vmem:[%s691 + $0x7c] sm:$0xf]
        %v760 = vld [vmem:[%s691 + $0x80] sm:$0xf]
        %v761 = vld [vmem:[%s691 + $0x84] sm:$0xf]
        %v762 = vld [vmem:[%s691 + $0x88] sm:$0xf]
        %v763 = vld [vmem:[%s691 + $0x8c] sm:$0xf]
        %v764 = vld [vmem:[%s691 + $0x90] sm:$0xf]
        %v765 = vld [vmem:[%s691 + $0x94] sm:$0xf]
        %v766 = vld [vmem:[%s691 + $0x98] sm:$0xf]
        %v767 = vld [vmem:[%s691 + $0x9c] sm:$0xf]
        %v768 = vld [vmem:[%s691 + $0xa0] sm:$0xf]
        %v769 = vld [vmem:[%s691 + $0xa4] sm:$0xf]
        %v770 = vld [vmem:[%s691 + $0xa8] sm:$0xf]
        %v771 = vld [vmem:[%s691 + $0xac] sm:$0xf]
        %v772 = vld [vmem:[%s691 + $0xb0] sm:$0xf]
        %v773 = vld [vmem:[%s691 + $0xb4] sm:$0xf]
        %v774 = vld [vmem:[%s691 + $0xb8] sm:$0xf]
        %v775 = vld [vmem:[%s691 + $0xbc] sm:$0xf]
        %v776 = vld [vmem:[%s691 + $0xc0] sm:$0xf]
        %v777 = vld [vmem:[%s691 + $0xc4] sm:$0xf]
        %v778 = vld [vmem:[%s691 + $0xc8] sm:$0xf]
        %v779 = vld [vmem:[%s691 + $0xcc] sm:$0xf]
        %v780 = vld [vmem:[%s691 + $0xd0] sm:$0xf]
        %v781 = vld [vmem:[%s691 + $0xd4] sm:$0xf]
        %v782 = vld [vmem:[%s691 + $0xd8] sm:$0xf]
        %v783 = vld [vmem:[%s691 + $0xdc] sm:$0xf]
        %v784 = vld [vmem:[%s691 + $0xe0] sm:$0xf]
        %v785 = vld [vmem:[%s691 + $0xe4] sm:$0xf]
        %v786 = vld [vmem:[%s691 + $0xe8] sm:$0xf]
        %v787 = vld [vmem:[%s691 + $0xec] sm:$0xf]
        %v788 = vld [vmem:[%s691 + $0xf0] sm:$0xf]
        %v789 = vld [vmem:[%s691 + $0xf4] sm:$0xf]
        %v790 = vld [vmem:[%s691 + $0xf8] sm:$0xf]
        %v791 = vld [vmem:[%s691 + $0xfc] sm:$0xf]
        %v792 = vld [vmem:[%s691 + $0x100] sm:$0xf]
        %v793 = vld [vmem:[%s691 + $0x104] sm:$0xf]
        %v794 = vld [vmem:[%s691 + $0x108] sm:$0xf]
        %v795 = vld [vmem:[%s691 + $0x10c] sm:$0xf]
        %v796 = vld [vmem:[%s691 + $0x110] sm:$0xf]
        %v797 = vld [vmem:[%s691 + $0x114] sm:$0xf]
        %v798 = vld [vmem:[%s691 + $0x118] sm:$0xf]
        %v799 = vld [vmem:[%s691 + $0x11c] sm:$0xf]
        %v800 = vld [vmem:[%s691 + $0x120] sm:$0xf]
        %v801 = vld [vmem:[%s691 + $0x124] sm:$0xf]
        %v802 = vld [vmem:[%s691 + $0x128] sm:$0xf]
        %v803 = vld [vmem:[%s691 + $0x12c] sm:$0xf]
        %v804 = vld [vmem:[%s691 + $0x130] sm:$0xf]
        %v805 = vld [vmem:[%s691 + $0x134] sm:$0xf]
        %v806 = vld [vmem:[%s691 + $0x138] sm:$0xf]
        %v807 = vld [vmem:[%s691 + $0x13c] sm:$0xf]
        %v808 = vld [vmem:[%s691 + $0x140] sm:$0xf]
        %v809 = vld [vmem:[%s691 + $0x144] sm:$0xf]
        %v810 = vld [vmem:[%s691 + $0x148] sm:$0xf]
        %v811 = vld [vmem:[%s691 + $0x14c] sm:$0xf]
        %v812 = vld [vmem:[%s691 + $0x150] sm:$0xf]
        %v813 = vld [vmem:[%s691 + $0x154] sm:$0xf]
        %v814 = vld [vmem:[%s691 + $0x158] sm:$0xf]
        %v815 = vld [vmem:[%s691 + $0x15c] sm:$0xf]
        %v816 = vld [vmem:[%s691 + $0x160] sm:$0xf]
        %v817 = vld [vmem:[%s691 + $0x164] sm:$0xf]
        %v818 = vld [vmem:[%s691 + $0x168] sm:$0xf]
        %v819 = vld [vmem:[%s691 + $0x16c] sm:$0xf]
        %v820 = vld [vmem:[%s691 + $0x170] sm:$0xf]
        %v821 = vld [vmem:[%s691 + $0x174] sm:$0xf]
        %v822 = vld [vmem:[%s691 + $0x178] sm:$0xf]
        %v823 = vld [vmem:[%s691 + $0x17c] sm:$0xf]
        %v824 = vld [vmem:[%s691 + $0x180] sm:$0xf]
        %v825 = vld [vmem:[%s691 + $0x184] sm:$0xf]
        %v826 = vld [vmem:[%s691 + $0x188] sm:$0xf]
        %v827 = vld [vmem:[%s691 + $0x18c] sm:$0xf]
        %v828 = vld [vmem:[%s691 + $0x190] sm:$0xf]
        %v829 = vld [vmem:[%s691 + $0x194] sm:$0xf]
        %v830 = vld [vmem:[%s691 + $0x198] sm:$0xf]
        %v831 = vld [vmem:[%s691 + $0x19c] sm:$0xf]
        %v832 = vld [vmem:[%s691 + $0x1a0] sm:$0xf]
        %v833 = vld [vmem:[%s691 + $0x1a4] sm:$0xf]
        %v834 = vld [vmem:[%s691 + $0x1a8] sm:$0xf]
        %v835 = vld [vmem:[%s691 + $0x1ac] sm:$0xf]
        %v836 = vld [vmem:[%s691 + $0x1b0] sm:$0xf]
        %v837 = vld [vmem:[%s691 + $0x1b4] sm:$0xf]
        %v838 = vld [vmem:[%s691 + $0x1b8] sm:$0xf]
        %v839 = vld [vmem:[%s691 + $0x1bc] sm:$0xf]
        %v840 = vld [vmem:[%s691 + $0x1c0] sm:$0xf]
        %v841 = vld [vmem:[%s691 + $0x1c4] sm:$0xf]
        %v842 = vld [vmem:[%s691 + $0x1c8] sm:$0xf]
        %v843 = vld [vmem:[%s691 + $0x1cc] sm:$0xf]
        %v844 = vld [vmem:[%s691 + $0x1d0] sm:$0xf]
        %v845 = vld [vmem:[%s691 + $0x1d4] sm:$0xf]
        %v846 = vld [vmem:[%s691 + $0x1d8] sm:$0xf]
        %v847 = vld [vmem:[%s691 + $0x1dc] sm:$0xf]
        %v848 = vld [vmem:[%s691 + $0x1e0] sm:$0xf]
        %v849 = vld [vmem:[%s691 + $0x1e4] sm:$0xf]
        %v850 = vld [vmem:[%s691 + $0x1e8] sm:$0xf]
        %v851 = vld [vmem:[%s691 + $0x1ec] sm:$0xf]
        %v852 = vld [vmem:[%s691 + $0x1f0] sm:$0xf]
        %v853 = vld [vmem:[%s691 + $0x1f4] sm:$0xf]
        %v854 = vld [vmem:[%s691 + $0x1f8] sm:$0xf]
        %v855 = vld [vmem:[%s691 + $0x1fc] sm:$0xf]
        %v856 = vld [vmem:[%s717] sm:$0x3]
        %v985 = vunpack.c.l.b16 %v728
        %v986 = vunpack.c.l.b16 %v729
        %v987 = vunpack.c.l.b16 %v730
        %v988 = vunpack.c.l.b16 %v731
        %v989 = vunpack.c.l.b16 %v732
        %v990 = vunpack.c.l.b16 %v733
        %v991 = vunpack.c.l.b16 %v734
        %v992 = vunpack.c.l.b16 %v735
        %v993 = vunpack.c.l.b16 %v736
        %v994 = vunpack.c.l.b16 %v737
        %v995 = vunpack.c.l.b16 %v738
        %v996 = vunpack.c.l.b16 %v739
        %v997 = vunpack.c.l.b16 %v740
        %v998 = vunpack.c.l.b16 %v741
        %v999 = vunpack.c.l.b16 %v742
        %v1000 = vunpack.c.l.b16 %v743
        %v1001 = vunpack.c.l.b16 %v744
        %v1002 = vunpack.c.l.b16 %v745
        %v1003 = vunpack.c.l.b16 %v746
        %v1004 = vunpack.c.l.b16 %v747
        %v1005 = vunpack.c.l.b16 %v748
        %v1006 = vunpack.c.l.b16 %v749
        %v1007 = vunpack.c.l.b16 %v750
        %v1008 = vunpack.c.l.b16 %v751
        %v1009 = vunpack.c.l.b16 %v752
        %v1010 = vunpack.c.l.b16 %v753
        %v1011 = vunpack.c.l.b16 %v754
        %v1012 = vunpack.c.l.b16 %v755
        %v1013 = vunpack.c.l.b16 %v756
        %v1014 = vunpack.c.l.b16 %v757
        %v1015 = vunpack.c.l.b16 %v758
        %v1016 = vunpack.c.l.b16 %v759
        %v1017 = vunpack.c.l.b16 %v760
        %v1018 = vunpack.c.l.b16 %v761
        %v1019 = vunpack.c.l.b16 %v762
        %v1020 = vunpack.c.l.b16 %v763
        %v1021 = vunpack.c.l.b16 %v764
        %v1022 = vunpack.c.l.b16 %v765
        %v1023 = vunpack.c.l.b16 %v766
        %v1024 = vunpack.c.l.b16 %v767
        %v1025 = vunpack.c.l.b16 %v768
        %v1026 = vunpack.c.l.b16 %v769
        %v1027 = vunpack.c.l.b16 %v770
        %v1028 = vunpack.c.l.b16 %v771
        %v1029 = vunpack.c.l.b16 %v772
        %v1030 = vunpack.c.l.b16 %v773
        %v1031 = vunpack.c.l.b16 %v774
        %v1032 = vunpack.c.l.b16 %v775
        %v1033 = vunpack.c.l.b16 %v776
        %v1034 = vunpack.c.l.b16 %v777
        %v1035 = vunpack.c.l.b16 %v778
        %v1036 = vunpack.c.l.b16 %v779
        %v1037 = vunpack.c.l.b16 %v780
        %v1038 = vunpack.c.l.b16 %v781
        %v1039 = vunpack.c.l.b16 %v782
        %v1040 = vunpack.c.l.b16 %v783
        %v1041 = vunpack.c.l.b16 %v784
        %v1042 = vunpack.c.l.b16 %v785
        %v1043 = vunpack.c.l.b16 %v786
        %v1044 = vunpack.c.l.b16 %v787
        %v1045 = vunpack.c.l.b16 %v788
        %v1046 = vunpack.c.l.b16 %v789
        %v1047 = vunpack.c.l.b16 %v790
        %v1048 = vunpack.c.l.b16 %v791
        %v1049 = vunpack.c.l.b16 %v792
        %v1050 = vunpack.c.l.b16 %v793
        %v1051 = vunpack.c.l.b16 %v794
        %v1052 = vunpack.c.l.b16 %v795
        %v1053 = vunpack.c.l.b16 %v796
        %v1054 = vunpack.c.l.b16 %v797
        %v1055 = vunpack.c.l.b16 %v798
        %v1056 = vunpack.c.l.b16 %v799
        %v1057 = vunpack.c.l.b16 %v800
        %v1058 = vunpack.c.l.b16 %v801
        %v1059 = vunpack.c.l.b16 %v802
        %v1060 = vunpack.c.l.b16 %v803
        %v1061 = vunpack.c.l.b16 %v804
        %v1062 = vunpack.c.l.b16 %v805
        %v1063 = vunpack.c.l.b16 %v806
        %v1064 = vunpack.c.l.b16 %v807
        %v1065 = vunpack.c.l.b16 %v808
        %v1066 = vunpack.c.l.b16 %v809
        %v1067 = vunpack.c.l.b16 %v810
        %v1068 = vunpack.c.l.b16 %v811
        %v1069 = vunpack.c.l.b16 %v812
        %v1070 = vunpack.c.l.b16 %v813
        %v1071 = vunpack.c.l.b16 %v814
        %v1072 = vunpack.c.l.b16 %v815
        %v1073 = vunpack.c.l.b16 %v816
        %v1074 = vunpack.c.l.b16 %v817
        %v1075 = vunpack.c.l.b16 %v818
        %v1076 = vunpack.c.l.b16 %v819
        %v1077 = vunpack.c.l.b16 %v820
        %v1078 = vunpack.c.l.b16 %v821
        %v1079 = vunpack.c.l.b16 %v822
        %v1080 = vunpack.c.l.b16 %v823
        %v1081 = vunpack.c.l.b16 %v824
        %v1082 = vunpack.c.l.b16 %v825
        %v1083 = vunpack.c.l.b16 %v826
        %v1084 = vunpack.c.l.b16 %v827
        %v1085 = vunpack.c.l.b16 %v828
        %v1086 = vunpack.c.l.b16 %v829
        %v1087 = vunpack.c.l.b16 %v830
        %v1088 = vunpack.c.l.b16 %v831
        %v1089 = vunpack.c.l.b16 %v832
        %v1090 = vunpack.c.l.b16 %v833
        %v1091 = vunpack.c.l.b16 %v834
        %v1092 = vunpack.c.l.b16 %v835
        %v1093 = vunpack.c.l.b16 %v836
        %v1094 = vunpack.c.l.b16 %v837
        %v1095 = vunpack.c.l.b16 %v838
        %v1096 = vunpack.c.l.b16 %v839
        %v1097 = vunpack.c.l.b16 %v840
        %v1098 = vunpack.c.l.b16 %v841
        %v1099 = vunpack.c.l.b16 %v842
        %v1100 = vunpack.c.l.b16 %v843
        %v1101 = vunpack.c.l.b16 %v844
        %v1102 = vunpack.c.l.b16 %v845
        %v1103 = vunpack.c.l.b16 %v846
        %v1104 = vunpack.c.l.b16 %v847
        %v1105 = vunpack.c.l.b16 %v848
        %v1106 = vunpack.c.l.b16 %v849
        %v1107 = vunpack.c.l.b16 %v850
        %v1108 = vunpack.c.l.b16 %v851
        %v1109 = vunpack.c.l.b16 %v852
        %v1110 = vunpack.c.l.b16 %v853
        %v1111 = vunpack.c.l.b16 %v854
        %v1112 = vunpack.c.l.b16 %v855
        %v1113 = vpack.c.b16 %v986, %v985
        %v1114 = vpack.c.b16 %v988, %v987
        %v1115 = vpack.c.b16 %v990, %v989
        %v1116 = vpack.c.b16 %v992, %v991
        %v1117 = vpack.c.b16 %v994, %v993
        %v1118 = vpack.c.b16 %v996, %v995
        %v1119 = vpack.c.b16 %v998, %v997
        %v1120 = vpack.c.b16 %v1000, %v999
        %v1121 = vpack.c.b16 %v1002, %v1001
        %v1122 = vpack.c.b16 %v1004, %v1003
        %v1123 = vpack.c.b16 %v1006, %v1005
        %v1124 = vpack.c.b16 %v1008, %v1007
        %v1125 = vpack.c.b16 %v1010, %v1009
        %v1126 = vpack.c.b16 %v1012, %v1011
        %v1127 = vpack.c.b16 %v1014, %v1013
        %v1128 = vpack.c.b16 %v1016, %v1015
        %v1129 = vpack.c.b16 %v1018, %v1017
        %v1130 = vpack.c.b16 %v1020, %v1019
        %v1131 = vpack.c.b16 %v1022, %v1021
        %v1132 = vpack.c.b16 %v1024, %v1023
        %v1133 = vpack.c.b16 %v1026, %v1025
        %v1134 = vpack.c.b16 %v1028, %v1027
        %v1135 = vpack.c.b16 %v1030, %v1029
        %v1136 = vpack.c.b16 %v1032, %v1031
        %v1137 = vpack.c.b16 %v1034, %v1033
        %v1138 = vpack.c.b16 %v1036, %v1035
        %v1139 = vpack.c.b16 %v1038, %v1037
        %v1140 = vpack.c.b16 %v1040, %v1039
        %v1141 = vpack.c.b16 %v1042, %v1041
        %v1142 = vpack.c.b16 %v1044, %v1043
        %v1143 = vpack.c.b16 %v1046, %v1045
        %v1144 = vpack.c.b16 %v1048, %v1047
        %v1145 = vpack.c.b16 %v1050, %v1049
        %v1146 = vpack.c.b16 %v1052, %v1051
        %v1147 = vpack.c.b16 %v1054, %v1053
        %v1148 = vpack.c.b16 %v1056, %v1055
        %v1149 = vpack.c.b16 %v1058, %v1057
        %v1150 = vpack.c.b16 %v1060, %v1059
        %v1151 = vpack.c.b16 %v1062, %v1061
        %v1152 = vpack.c.b16 %v1064, %v1063
        %v1153 = vpack.c.b16 %v1066, %v1065
        %v1154 = vpack.c.b16 %v1068, %v1067
        %v1155 = vpack.c.b16 %v1070, %v1069
        %v1156 = vpack.c.b16 %v1072, %v1071
        %v1157 = vpack.c.b16 %v1074, %v1073
        %v1158 = vpack.c.b16 %v1076, %v1075
        %v1159 = vpack.c.b16 %v1078, %v1077
        %v1160 = vpack.c.b16 %v1080, %v1079
        %v1161 = vpack.c.b16 %v1082, %v1081
        %v1162 = vpack.c.b16 %v1084, %v1083
        %v1163 = vpack.c.b16 %v1086, %v1085
        %v1164 = vpack.c.b16 %v1088, %v1087
        %v1165 = vpack.c.b16 %v1090, %v1089
        %v1166 = vpack.c.b16 %v1092, %v1091
        %v1167 = vpack.c.b16 %v1094, %v1093
        %v1168 = vpack.c.b16 %v1096, %v1095
        %v1169 = vpack.c.b16 %v1098, %v1097
        %v1170 = vpack.c.b16 %v1100, %v1099
        %v1171 = vpack.c.b16 %v1102, %v1101
        %v1172 = vpack.c.b16 %v1104, %v1103
        %v1173 = vpack.c.b16 %v1106, %v1105
        %v1174 = vpack.c.b16 %v1108, %v1107
        %v1175 = vpack.c.b16 %v1110, %v1109
        %v1176 = vpack.c.b16 %v1112, %v1111
        %vm1177 = vcmask 31744
        %v1179 = vsel %vm1177, %v1113, 0
        %v1182 = vsel %vm1177, %v1114, 0
        %v1185 = vsel %vm1177, %v1115, 0
        %v1188 = vsel %vm1177, %v1116, 0
        %v1191 = vsel %vm1177, %v1117, 0
        %v1194 = vsel %vm1177, %v1118, 0
        %v1197 = vsel %vm1177, %v1119, 0
        %v1200 = vsel %vm1177, %v1120, 0
        %v1203 = vsel %vm1177, %v1121, 0
        %v1206 = vsel %vm1177, %v1122, 0
        %v1209 = vsel %vm1177, %v1123, 0
        %v1212 = vsel %vm1177, %v1124, 0
        %v1215 = vsel %vm1177, %v1125, 0
        %v1218 = vsel %vm1177, %v1126, 0
        %v1221 = vsel %vm1177, %v1127, 0
        %v1224 = vsel %vm1177, %v1128, 0
        %v1227 = vsel %vm1177, %v1129, 0
        %v1230 = vsel %vm1177, %v1130, 0
        %v1233 = vsel %vm1177, %v1131, 0
        %v1236 = vsel %vm1177, %v1132, 0
        %v1239 = vsel %vm1177, %v1133, 0
        %v1242 = vsel %vm1177, %v1134, 0
        %v1245 = vsel %vm1177, %v1135, 0
        %v1248 = vsel %vm1177, %v1136, 0
        %v1251 = vsel %vm1177, %v1137, 0
        %v1254 = vsel %vm1177, %v1138, 0
        %v1257 = vsel %vm1177, %v1139, 0
        %v1260 = vsel %vm1177, %v1140, 0
        %v1263 = vsel %vm1177, %v1141, 0
        %v1266 = vsel %vm1177, %v1142, 0
        %v1269 = vsel %vm1177, %v1143, 0
        %v1272 = vsel %vm1177, %v1144, 0
        %v1275 = vsel %vm1177, %v1145, 0
        %v1278 = vsel %vm1177, %v1146, 0
        %v1281 = vsel %vm1177, %v1147, 0
        %v1284 = vsel %vm1177, %v1148, 0
        %v1287 = vsel %vm1177, %v1149, 0
        %v1290 = vsel %vm1177, %v1150, 0
        %v1293 = vsel %vm1177, %v1151, 0
        %v1296 = vsel %vm1177, %v1152, 0
        %v1299 = vsel %vm1177, %v1153, 0
        %v1302 = vsel %vm1177, %v1154, 0
        %v1305 = vsel %vm1177, %v1155, 0
        %v1308 = vsel %vm1177, %v1156, 0
        %v1311 = vsel %vm1177, %v1157, 0
        %v1314 = vsel %vm1177, %v1158, 0
        %v1317 = vsel %vm1177, %v1159, 0
        %v1320 = vsel %vm1177, %v1160, 0
        %v1323 = vsel %vm1177, %v1161, 0
        %v1326 = vsel %vm1177, %v1162, 0
        %v1329 = vsel %vm1177, %v1163, 0
        %v1332 = vsel %vm1177, %v1164, 0
        %v1335 = vsel %vm1177, %v1165, 0
        %v1338 = vsel %vm1177, %v1166, 0
        %v1341 = vsel %vm1177, %v1167, 0
        %v1344 = vsel %vm1177, %v1168, 0
        %v1347 = vsel %vm1177, %v1169, 0
        %v1350 = vsel %vm1177, %v1170, 0
        %v1353 = vsel %vm1177, %v1171, 0
        %v1356 = vsel %vm1177, %v1172, 0
        %v1359 = vsel %vm1177, %v1173, 0
        %v1362 = vsel %vm1177, %v1174, 0
        %v1365 = vsel %vm1177, %v1175, 0
        %v1368 = vsel %vm1177, %v1176, 0
        %vm1370 = vcmask 1041408
        %v1372 = vsel %vm1370, %v856, 0
        %1374 = vmatprep.subr.bf16.mxu0 0
        %1375 = vmatpush1.bf16.msra.mxu0 %v1372
        %1376 = vmatprep.subr.bf16.mxu0 0
        %1377 = vmatpush1.bf16.msra.mxu0 0
        %1378 = vmatprep.subr.bf16.mxu0 0
        %1379 = vmatpush1.bf16.msra.mxu0 0
        %1380 = vmatprep.subr.bf16.mxu0 0
        %1381 = vmatpush1.bf16.msra.mxu0 0
        %1382 = vmatprep.subr.bf16.mxu0 0
        %1383 = vmatpush1.bf16.msra.mxu0 0
        %1384 = vmatprep.subr.bf16.mxu0 0
        %1385 = vmatpush1.bf16.msra.mxu0 0
        %1386 = vmatprep.subr.bf16.mxu0 0
        %1387 = vmatpush1.bf16.msra.mxu0 0
        %1388 = vmatprep.subr.bf16.mxu0 0
        %1389 = vmatpush1.bf16.msra.mxu0 0
        %1390 = vmatprep.subr.bf16.mxu0 0
        %1391 = vmatpush1.bf16.msra.mxu0 0
        %1392 = vmatprep.subr.bf16.mxu0 0
        %1393 = vmatpush1.bf16.msra.mxu0 0
        %1394 = vmatprep.subr.bf16.mxu0 0
        %1395 = vmatpush1.bf16.msra.mxu0 0
        %1396 = vmatprep.subr.bf16.mxu0 0
        %1397 = vmatpush1.bf16.msra.mxu0 0
        %1398 = vmatprep.subr.bf16.mxu0 0
        %1399 = vmatpush1.bf16.msra.mxu0 0
        %1400 = vmatprep.subr.bf16.mxu0 0
        %1401 = vmatpush1.bf16.msra.mxu0 0
        %1402 = vmatprep.subr.bf16.mxu0 0
        %1403 = vmatpush1.bf16.msra.mxu0 0
        %1404 = vmatprep.subr.bf16.mxu0 0
        %1405 = vmatpush1.bf16.msra.mxu0 0
        %1406 = vmatprep.mubr.bf16.mxu0 0
        %1407 = vmatmul.mubr.bf16.gmra.mrb[0].mxu0 %v1179
        %v1408 = vpop.f32.mrb[0].mxu0
        %v1409 = vadd.f32 0.0, %v1408
        %v1410 = vpop.f32.mrb[0].mxu0
        %v1411 = vpop.f32.mrb[0].mxu0
        %v1412 = vadd.f32 0.0, %v1411
        %v1413 = vpop.f32.mrb[0].mxu0
        %1414 = vmatprep.mubr.bf16.mxu0 0
        %1415 = vmatmul.mubr.bf16.gmra.mrb[0].mxu0 %v1182
        %v1416 = vpop.f32.mrb[0].mxu0
        %v1417 = vadd.f32 0.0, %v1416
        %v1418 = vpop.f32.mrb[0].mxu0
        %v1419 = vpop.f32.mrb[0].mxu0
        %v1420 = vadd.f32 0.0, %v1419
        %v1421 = vpop.f32.mrb[0].mxu0
        %1422 = vmatprep.mubr.bf16.mxu0 0
        %1423 = vmatmul.mubr.bf16.gmra.mrb[0].mxu0 %v1185
        %v1424 = vpop.f32.mrb[0].mxu0
        %v1425 = vadd.f32 0.0, %v1424
        %v1426 = vpop.f32.mrb[0].mxu0
        %v1427 = vpop.f32.mrb[0].mxu0
        %v1428 = vadd.f32 0.0, %v1427
        %v1429 = vpop.f32.mrb[0].mxu0
        %1430 = vmatprep.mubr.bf16.mxu0 0
        %1431 = vmatmul.mubr.bf16.gmra.mrb[0].mxu0 %v1188
        %v1432 = vpop.f32.mrb[0].mxu0
        %v1433 = vadd.f32 0.0, %v1432
        %v1434 = vpop.f32.mrb[0].mxu0
        %v1435 = vpop.f32.mrb[0].mxu0
        %v1436 = vadd.f32 0.0, %v1435
        %v1437 = vpop.f32.mrb[0].mxu0
        %1438 = vmatprep.mubr.bf16.mxu0 0
        %1439 = vmatmul.mubr.bf16.gmra.mrb[0].mxu0 %v1191
        %v1440 = vpop.f32.mrb[0].mxu0
        %v1441 = vadd.f32 0.0, %v1440
        %v1442 = vpop.f32.mrb[0].mxu0
        %v1443 = vpop.f32.mrb[0].mxu0
        %v1444 = vadd.f32 0.0, %v1443
        %v1445 = vpop.f32.mrb[0].mxu0
        %1446 = vmatprep.mubr.bf16.mxu0 0
        %1447 = vmatmul.mubr.bf16.gmra.mrb[0].mxu0 %v1194
        %v1448 = vpop.f32.mrb[0].mxu0
        %v1449 = vadd.f32 0.0, %v1448
        %v1450 = vpop.f32.mrb[0].mxu0
        %v1451 = vpop.f32.mrb[0].mxu0
        %v1452 = vadd.f32 0.0, %v1451
        %v1453 = vpop.f32.mrb[0].mxu0
        %1454 = vmatprep.mubr.bf16.mxu0 0
        %1455 = vmatmul.mubr.bf16.gmra.mrb[0].mxu0 %v1197
        %v1456 = vpop.f32.mrb[0].mxu0
        %v1457 = vadd.f32 0.0, %v1456
        %v1458 = vpop.f32.mrb[0].mxu0
        %v1459 = vpop.f32.mrb[0].mxu0
        %v1460 = vadd.f32 0.0, %v1459
        %v1461 = vpop.f32.mrb[0].mxu0
        %1462 = vmatprep.mubr.bf16.mxu0 0
        %1463 = vmatmul.mubr.bf16.gmra.mrb[0].mxu0 %v1200
        %v1464 = vpop.f32.mrb[0].mxu0
        %v1465 = vadd.f32 0.0, %v1464
        %v1466 = vpop.f32.mrb[0].mxu0
        %v1467 = vpop.f32.mrb[0].mxu0
        %v1468 = vadd.f32 0.0, %v1467
        %v1469 = vpop.f32.mrb[0].mxu0
        %1470 = vmatprep.mubr.bf16.mxu0 0
        %1471 = vmatmul.mubr.bf16.gmra.mrb[0].mxu0 %v1203
        %v1472 = vpop.f32.mrb[0].mxu0
        %v1473 = vadd.f32 0.0, %v1472
        %v1474 = vpop.f32.mrb[0].mxu0
        %v1475 = vpop.f32.mrb[0].mxu0
        %v1476 = vadd.f32 0.0, %v1475
        %v1477 = vpop.f32.mrb[0].mxu0
        %1478 = vmatprep.mubr.bf16.mxu0 0
        %1479 = vmatmul.mubr.bf16.gmra.mrb[0].mxu0 %v1206
        %v1480 = vpop.f32.mrb[0].mxu0
        %v1481 = vadd.f32 0.0, %v1480
        %v1482 = vpop.f32.mrb[0].mxu0
        %v1483 = vpop.f32.mrb[0].mxu0
        %v1484 = vadd.f32 0.0, %v1483
        %v1485 = vpop.f32.mrb[0].mxu0
        %1486 = vmatprep.mubr.bf16.mxu0 0
        %1487 = vmatmul.mubr.bf16.gmra.mrb[0].mxu0 %v1209
        %v1488 = vpop.f32.mrb[0].mxu0
        %v1489 = vadd.f32 0.0, %v1488
        %v1490 = vpop.f32.mrb[0].mxu0
        %v1491 = vpop.f32.mrb[0].mxu0
        %v1492 = vadd.f32 0.0, %v1491
        %v1493 = vpop.f32.mrb[0].mxu0
        %1494 = vmatprep.mubr.bf16.mxu0 0
        %1495 = vmatmul.mubr.bf16.gmra.mrb[0].mxu0 %v1212
        %v1496 = vpop.f32.mrb[0].mxu0
        %v1497 = vadd.f32 0.0, %v1496
        %v1498 = vpop.f32.mrb[0].mxu0
        %v1499 = vpop.f32.mrb[0].mxu0
        %v1500 = vadd.f32 0.0, %v1499
        %v1501 = vpop.f32.mrb[0].mxu0
        %1502 = vmatprep.mubr.bf16.mxu0 0
        %1503 = vmatmul.mubr.bf16.gmra.mrb[0].mxu0 %v1215
        %v1504 = vpop.f32.mrb[0].mxu0
        %v1505 = vadd.f32 0.0, %v1504
        %v1506 = vpop.f32.mrb[0].mxu0
        %v1507 = vpop.f32.mrb[0].mxu0
        %v1508 = vadd.f32 0.0, %v1507
        %v1509 = vpop.f32.mrb[0].mxu0
        %1510 = vmatprep.mubr.bf16.mxu0 0
        %1511 = vmatmul.mubr.bf16.gmra.mrb[0].mxu0 %v1218
        %v1512 = vpop.f32.mrb[0].mxu0
        %v1513 = vadd.f32 0.0, %v1512
        %v1514 = vpop.f32.mrb[0].mxu0
        %v1515 = vpop.f32.mrb[0].mxu0
        %v1516 = vadd.f32 0.0, %v1515
        %v1517 = vpop.f32.mrb[0].mxu0
        %1518 = vmatprep.mubr.bf16.mxu0 0
        %1519 = vmatmul.mubr.bf16.gmra.mrb[0].mxu0 %v1221
        %v1520 = vpop.f32.mrb[0].mxu0
        %v1521 = vadd.f32 0.0, %v1520
        %v1522 = vpop.f32.mrb[0].mxu0
        %v1523 = vpop.f32.mrb[0].mxu0
        %v1524 = vadd.f32 0.0, %v1523
        %v1525 = vpop.f32.mrb[0].mxu0
        %1526 = vmatprep.mubr.bf16.mxu0 0
        %1527 = vmatmul.mubr.bf16.gmra.mrb[0].mxu0 %v1224
        %v1528 = vpop.f32.mrb[0].mxu0
        %v1529 = vadd.f32 0.0, %v1528
        %v1530 = vpop.f32.mrb[0].mxu0
        %v1531 = vpop.f32.mrb[0].mxu0
        %v1532 = vadd.f32 0.0, %v1531
        %v1533 = vpop.f32.mrb[0].mxu0
        %1534 = vmatprep.mubr.bf16.mxu0 0
        %1535 = vmatmul.mubr.bf16.gmra.mrb[0].mxu0 %v1227
        %v1536 = vpop.f32.mrb[0].mxu0
        %v1537 = vadd.f32 0.0, %v1536
        %v1538 = vpop.f32.mrb[0].mxu0
        %v1539 = vpop.f32.mrb[0].mxu0
        %v1540 = vadd.f32 0.0, %v1539
        %v1541 = vpop.f32.mrb[0].mxu0
        %1542 = vmatprep.mubr.bf16.mxu0 0
        %1543 = vmatmul.mubr.bf16.gmra.mrb[0].mxu0 %v1230
        %v1544 = vpop.f32.mrb[0].mxu0
        %v1545 = vadd.f32 0.0, %v1544
        %v1546 = vpop.f32.mrb[0].mxu0
        %v1547 = vpop.f32.mrb[0].mxu0
        %v1548 = vadd.f32 0.0, %v1547
        %v1549 = vpop.f32.mrb[0].mxu0
        %1550 = vmatprep.mubr.bf16.mxu0 0
        %1551 = vmatmul.mubr.bf16.gmra.mrb[0].mxu0 %v1233
        %v1552 = vpop.f32.mrb[0].mxu0
        %v1553 = vadd.f32 0.0, %v1552
        %v1554 = vpop.f32.mrb[0].mxu0
        %v1555 = vpop.f32.mrb[0].mxu0
        %v1556 = vadd.f32 0.0, %v1555
        %v1557 = vpop.f32.mrb[0].mxu0
        %1558 = vmatprep.mubr.bf16.mxu0 0
        %1559 = vmatmul.mubr.bf16.gmra.mrb[0].mxu0 %v1236
        %v1560 = vpop.f32.mrb[0].mxu0
        %v1561 = vadd.f32 0.0, %v1560
        %v1562 = vpop.f32.mrb[0].mxu0
        %v1563 = vpop.f32.mrb[0].mxu0
        %v1564 = vadd.f32 0.0, %v1563
        %v1565 = vpop.f32.mrb[0].mxu0
        %1566 = vmatprep.mubr.bf16.mxu0 0
        %1567 = vmatmul.mubr.bf16.gmra.mrb[0].mxu0 %v1239
        %v1568 = vpop.f32.mrb[0].mxu0
        %v1569 = vadd.f32 0.0, %v1568
        %v1570 = vpop.f32.mrb[0].mxu0
        %v1571 = vpop.f32.mrb[0].mxu0
        %v1572 = vadd.f32 0.0, %v1571
        %v1573 = vpop.f32.mrb[0].mxu0
        %1574 = vmatprep.mubr.bf16.mxu0 0
        %1575 = vmatmul.mubr.bf16.gmra.mrb[0].mxu0 %v1242
        %v1576 = vpop.f32.mrb[0].mxu0
        %v1577 = vadd.f32 0.0, %v1576
        %v1578 = vpop.f32.mrb[0].mxu0
        %v1579 = vpop.f32.mrb[0].mxu0
        %v1580 = vadd.f32 0.0, %v1579
        %v1581 = vpop.f32.mrb[0].mxu0
        %1582 = vmatprep.mubr.bf16.mxu0 0
        %1583 = vmatmul.mubr.bf16.gmra.mrb[0].mxu0 %v1245
        %v1584 = vpop.f32.mrb[0].mxu0
        %v1585 = vadd.f32 0.0, %v1584
        %v1586 = vpop.f32.mrb[0].mxu0
        %v1587 = vpop.f32.mrb[0].mxu0
        %v1588 = vadd.f32 0.0, %v1587
        %v1589 = vpop.f32.mrb[0].mxu0
        %1590 = vmatprep.mubr.bf16.mxu0 0
        %1591 = vmatmul.mubr.bf16.gmra.mrb[0].mxu0 %v1248
        %v1592 = vpop.f32.mrb[0].mxu0
        %v1593 = vadd.f32 0.0, %v1592
        %v1594 = vpop.f32.mrb[0].mxu0
        %v1595 = vpop.f32.mrb[0].mxu0
        %v1596 = vadd.f32 0.0, %v1595
        %v1597 = vpop.f32.mrb[0].mxu0
        %1598 = vmatprep.mubr.bf16.mxu0 0
        %1599 = vmatmul.mubr.bf16.gmra.mrb[0].mxu0 %v1251
        %v1600 = vpop.f32.mrb[0].mxu0
        %v1601 = vadd.f32 0.0, %v1600
        %v1602 = vpop.f32.mrb[0].mxu0
        %v1603 = vpop.f32.mrb[0].mxu0
        %v1604 = vadd.f32 0.0, %v1603
        %v1605 = vpop.f32.mrb[0].mxu0
        %1606 = vmatprep.mubr.bf16.mxu0 0
        %1607 = vmatmul.mubr.bf16.gmra.mrb[0].mxu0 %v1254
        %v1608 = vpop.f32.mrb[0].mxu0
        %v1609 = vadd.f32 0.0, %v1608
        %v1610 = vpop.f32.mrb[0].mxu0
        %v1611 = vpop.f32.mrb[0].mxu0
        %v1612 = vadd.f32 0.0, %v1611
        %v1613 = vpop.f32.mrb[0].mxu0
        %1614 = vmatprep.mubr.bf16.mxu0 0
        %1615 = vmatmul.mubr.bf16.gmra.mrb[0].mxu0 %v1257
        %v1616 = vpop.f32.mrb[0].mxu0
        %v1617 = vadd.f32 0.0, %v1616
        %v1618 = vpop.f32.mrb[0].mxu0
        %v1619 = vpop.f32.mrb[0].mxu0
        %v1620 = vadd.f32 0.0, %v1619
        %v1621 = vpop.f32.mrb[0].mxu0
        %1622 = vmatprep.mubr.bf16.mxu0 0
        %1623 = vmatmul.mubr.bf16.gmra.mrb[0].mxu0 %v1260
        %v1624 = vpop.f32.mrb[0].mxu0
        %v1625 = vadd.f32 0.0, %v1624
        %v1626 = vpop.f32.mrb[0].mxu0
        %v1627 = vpop.f32.mrb[0].mxu0
        %v1628 = vadd.f32 0.0, %v1627
        %v1629 = vpop.f32.mrb[0].mxu0
        %1630 = vmatprep.mubr.bf16.mxu0 0
        %1631 = vmatmul.mubr.bf16.gmra.mrb[0].mxu0 %v1263
        %v1632 = vpop.f32.mrb[0].mxu0
        %v1633 = vadd.f32 0.0, %v1632
        %v1634 = vpop.f32.mrb[0].mxu0
        %v1635 = vpop.f32.mrb[0].mxu0
        %v1636 = vadd.f32 0.0, %v1635
        %v1637 = vpop.f32.mrb[0].mxu0
        %1638 = vmatprep.mubr.bf16.mxu0 0
        %1639 = vmatmul.mubr.bf16.gmra.mrb[0].mxu0 %v1266
        %v1640 = vpop.f32.mrb[0].mxu0
        %v1641 = vadd.f32 0.0, %v1640
        %v1642 = vpop.f32.mrb[0].mxu0
        %v1643 = vpop.f32.mrb[0].mxu0
        %v1644 = vadd.f32 0.0, %v1643
        %v1645 = vpop.f32.mrb[0].mxu0
        %1646 = vmatprep.mubr.bf16.mxu0 0
        %1647 = vmatmul.mubr.bf16.gmra.mrb[0].mxu0 %v1269
        %v1648 = vpop.f32.mrb[0].mxu0
        %v1649 = vadd.f32 0.0, %v1648
        %v1650 = vpop.f32.mrb[0].mxu0
        %v1651 = vpop.f32.mrb[0].mxu0
        %v1652 = vadd.f32 0.0, %v1651
        %v1653 = vpop.f32.mrb[0].mxu0
        %1654 = vmatprep.mubr.bf16.mxu0 0
        %1655 = vmatmul.mubr.bf16.gmra.mrb[0].mxu0 %v1272
        %v1656 = vpop.f32.mrb[0].mxu0
        %v1657 = vadd.f32 0.0, %v1656
        %v1658 = vpop.f32.mrb[0].mxu0
        %v1659 = vpop.f32.mrb[0].mxu0
        %v1660 = vadd.f32 0.0, %v1659
        %v1661 = vpop.f32.mrb[0].mxu0
        %1662 = vmatprep.mubr.bf16.mxu0 0
        %1663 = vmatmul.mubr.bf16.gmra.mrb[0].mxu0 %v1275
        %v1664 = vpop.f32.mrb[0].mxu0
        %v1665 = vadd.f32 0.0, %v1664
        %v1666 = vpop.f32.mrb[0].mxu0
        %v1667 = vpop.f32.mrb[0].mxu0
        %v1668 = vadd.f32 0.0, %v1667
        %v1669 = vpop.f32.mrb[0].mxu0
        %1670 = vmatprep.mubr.bf16.mxu0 0
        %1671 = vmatmul.mubr.bf16.gmra.mrb[0].mxu0 %v1278
        %v1672 = vpop.f32.mrb[0].mxu0
        %v1673 = vadd.f32 0.0, %v1672
        %v1674 = vpop.f32.mrb[0].mxu0
        %v1675 = vpop.f32.mrb[0].mxu0
        %v1676 = vadd.f32 0.0, %v1675
        %v1677 = vpop.f32.mrb[0].mxu0
        %1678 = vmatprep.mubr.bf16.mxu0 0
        %1679 = vmatmul.mubr.bf16.gmra.mrb[0].mxu0 %v1281
        %v1680 = vpop.f32.mrb[0].mxu0
        %v1681 = vadd.f32 0.0, %v1680
        %v1682 = vpop.f32.mrb[0].mxu0
        %v1683 = vpop.f32.mrb[0].mxu0
        %v1684 = vadd.f32 0.0, %v1683
        %v1685 = vpop.f32.mrb[0].mxu0
        %1686 = vmatprep.mubr.bf16.mxu0 0
        %1687 = vmatmul.mubr.bf16.gmra.mrb[0].mxu0 %v1284
        %v1688 = vpop.f32.mrb[0].mxu0
        %v1689 = vadd.f32 0.0, %v1688
        %v1690 = vpop.f32.mrb[0].mxu0
        %v1691 = vpop.f32.mrb[0].mxu0
        %v1692 = vadd.f32 0.0, %v1691
        %v1693 = vpop.f32.mrb[0].mxu0
        %1694 = vmatprep.mubr.bf16.mxu0 0
        %1695 = vmatmul.mubr.bf16.gmra.mrb[0].mxu0 %v1287
        %v1696 = vpop.f32.mrb[0].mxu0
        %v1697 = vadd.f32 0.0, %v1696
        %v1698 = vpop.f32.mrb[0].mxu0
        %v1699 = vpop.f32.mrb[0].mxu0
        %v1700 = vadd.f32 0.0, %v1699
        %v1701 = vpop.f32.mrb[0].mxu0
        %1702 = vmatprep.mubr.bf16.mxu0 0
        %1703 = vmatmul.mubr.bf16.gmra.mrb[0].mxu0 %v1290
        %v1704 = vpop.f32.mrb[0].mxu0
        %v1705 = vadd.f32 0.0, %v1704
        %v1706 = vpop.f32.mrb[0].mxu0
        %v1707 = vpop.f32.mrb[0].mxu0
        %v1708 = vadd.f32 0.0, %v1707
        %v1709 = vpop.f32.mrb[0].mxu0
        %1710 = vmatprep.mubr.bf16.mxu0 0
        %1711 = vmatmul.mubr.bf16.gmra.mrb[0].mxu0 %v1293
        %v1712 = vpop.f32.mrb[0].mxu0
        %v1713 = vadd.f32 0.0, %v1712
        %v1714 = vpop.f32.mrb[0].mxu0
        %v1715 = vpop.f32.mrb[0].mxu0
        %v1716 = vadd.f32 0.0, %v1715
        %v1717 = vpop.f32.mrb[0].mxu0
        %1718 = vmatprep.mubr.bf16.mxu0 0
        %1719 = vmatmul.mubr.bf16.gmra.mrb[0].mxu0 %v1296
        %v1720 = vpop.f32.mrb[0].mxu0
        %v1721 = vadd.f32 0.0, %v1720
        %v1722 = vpop.f32.mrb[0].mxu0
        %v1723 = vpop.f32.mrb[0].mxu0
        %v1724 = vadd.f32 0.0, %v1723
        %v1725 = vpop.f32.mrb[0].mxu0
        %1726 = vmatprep.mubr.bf16.mxu0 0
        %1727 = vmatmul.mubr.bf16.gmra.mrb[0].mxu0 %v1299
        %v1728 = vpop.f32.mrb[0].mxu0
        %v1729 = vadd.f32 0.0, %v1728
        %v1730 = vpop.f32.mrb[0].mxu0
        %v1731 = vpop.f32.mrb[0].mxu0
        %v1732 = vadd.f32 0.0, %v1731
        %v1733 = vpop.f32.mrb[0].mxu0
        %1734 = vmatprep.mubr.bf16.mxu0 0
        %1735 = vmatmul.mubr.bf16.gmra.mrb[0].mxu0 %v1302
        %v1736 = vpop.f32.mrb[0].mxu0
        %v1737 = vadd.f32 0.0, %v1736
        %v1738 = vpop.f32.mrb[0].mxu0
        %v1739 = vpop.f32.mrb[0].mxu0
        %v1740 = vadd.f32 0.0, %v1739
        %v1741 = vpop.f32.mrb[0].mxu0
        %1742 = vmatprep.mubr.bf16.mxu0 0
        %1743 = vmatmul.mubr.bf16.gmra.mrb[0].mxu0 %v1305
        %v1744 = vpop.f32.mrb[0].mxu0
        %v1745 = vadd.f32 0.0, %v1744
        %v1746 = vpop.f32.mrb[0].mxu0
        %v1747 = vpop.f32.mrb[0].mxu0
        %v1748 = vadd.f32 0.0, %v1747
        %v1749 = vpop.f32.mrb[0].mxu0
        %1750 = vmatprep.mubr.bf16.mxu0 0
        %1751 = vmatmul.mubr.bf16.gmra.mrb[0].mxu0 %v1308
        %v1752 = vpop.f32.mrb[0].mxu0
        %v1753 = vadd.f32 0.0, %v1752
        %v1754 = vpop.f32.mrb[0].mxu0
        %v1755 = vpop.f32.mrb[0].mxu0
        %v1756 = vadd.f32 0.0, %v1755
        %v1757 = vpop.f32.mrb[0].mxu0
        %1758 = vmatprep.mubr.bf16.mxu0 0
        %1759 = vmatmul.mubr.bf16.gmra.mrb[0].mxu0 %v1311
        %v1760 = vpop.f32.mrb[0].mxu0
        %v1761 = vadd.f32 0.0, %v1760
        %v1762 = vpop.f32.mrb[0].mxu0
        %v1763 = vpop.f32.mrb[0].mxu0
        %v1764 = vadd.f32 0.0, %v1763
        %v1765 = vpop.f32.mrb[0].mxu0
        %1766 = vmatprep.mubr.bf16.mxu0 0
        %1767 = vmatmul.mubr.bf16.gmra.mrb[0].mxu0 %v1314
        %v1768 = vpop.f32.mrb[0].mxu0
        %v1769 = vadd.f32 0.0, %v1768
        %v1770 = vpop.f32.mrb[0].mxu0
        %v1771 = vpop.f32.mrb[0].mxu0
        %v1772 = vadd.f32 0.0, %v1771
        %v1773 = vpop.f32.mrb[0].mxu0
        %1774 = vmatprep.mubr.bf16.mxu0 0
        %1775 = vmatmul.mubr.bf16.gmra.mrb[0].mxu0 %v1317
        %v1776 = vpop.f32.mrb[0].mxu0
        %v1777 = vadd.f32 0.0, %v1776
        %v1778 = vpop.f32.mrb[0].mxu0
        %v1779 = vpop.f32.mrb[0].mxu0
        %v1780 = vadd.f32 0.0, %v1779
        %v1781 = vpop.f32.mrb[0].mxu0
        %1782 = vmatprep.mubr.bf16.mxu0 0
        %1783 = vmatmul.mubr.bf16.gmra.mrb[0].mxu0 %v1320
        %v1784 = vpop.f32.mrb[0].mxu0
        %v1785 = vadd.f32 0.0, %v1784
        %v1786 = vpop.f32.mrb[0].mxu0
        %v1787 = vpop.f32.mrb[0].mxu0
        %v1788 = vadd.f32 0.0, %v1787
        %v1789 = vpop.f32.mrb[0].mxu0
        %1790 = vmatprep.mubr.bf16.mxu0 0
        %1791 = vmatmul.mubr.bf16.gmra.mrb[0].mxu0 %v1323
        %v1792 = vpop.f32.mrb[0].mxu0
        %v1793 = vadd.f32 0.0, %v1792
        %v1794 = vpop.f32.mrb[0].mxu0
        %v1795 = vpop.f32.mrb[0].mxu0
        %v1796 = vadd.f32 0.0, %v1795
        %v1797 = vpop.f32.mrb[0].mxu0
        %1798 = vmatprep.mubr.bf16.mxu0 0
        %1799 = vmatmul.mubr.bf16.gmra.mrb[0].mxu0 %v1326
        %v1800 = vpop.f32.mrb[0].mxu0
        %v1801 = vadd.f32 0.0, %v1800
        %v1802 = vpop.f32.mrb[0].mxu0
        %v1803 = vpop.f32.mrb[0].mxu0
        %v1804 = vadd.f32 0.0, %v1803
        %v1805 = vpop.f32.mrb[0].mxu0
        %1806 = vmatprep.mubr.bf16.mxu0 0
        %1807 = vmatmul.mubr.bf16.gmra.mrb[0].mxu0 %v1329
        %v1808 = vpop.f32.mrb[0].mxu0
        %v1809 = vadd.f32 0.0, %v1808
        %v1810 = vpop.f32.mrb[0].mxu0
        %v1811 = vpop.f32.mrb[0].mxu0
        %v1812 = vadd.f32 0.0, %v1811
        %v1813 = vpop.f32.mrb[0].mxu0
        %1814 = vmatprep.mubr.bf16.mxu0 0
        %1815 = vmatmul.mubr.bf16.gmra.mrb[0].mxu0 %v1332
        %v1816 = vpop.f32.mrb[0].mxu0
        %v1817 = vadd.f32 0.0, %v1816
        %v1818 = vpop.f32.mrb[0].mxu0
        %v1819 = vpop.f32.mrb[0].mxu0
        %v1820 = vadd.f32 0.0, %v1819
        %v1821 = vpop.f32.mrb[0].mxu0
        %1822 = vmatprep.mubr.bf16.mxu0 0
        %1823 = vmatmul.mubr.bf16.gmra.mrb[0].mxu0 %v1335
        %v1824 = vpop.f32.mrb[0].mxu0
        %v1825 = vadd.f32 0.0, %v1824
        %v1826 = vpop.f32.mrb[0].mxu0
        %v1827 = vpop.f32.mrb[0].mxu0
        %v1828 = vadd.f32 0.0, %v1827
        %v1829 = vpop.f32.mrb[0].mxu0
        %1830 = vmatprep.mubr.bf16.mxu0 0
        %1831 = vmatmul.mubr.bf16.gmra.mrb[0].mxu0 %v1338
        %v1832 = vpop.f32.mrb[0].mxu0
        %v1833 = vadd.f32 0.0, %v1832
        %v1834 = vpop.f32.mrb[0].mxu0
        %v1835 = vpop.f32.mrb[0].mxu0
        %v1836 = vadd.f32 0.0, %v1835
        %v1837 = vpop.f32.mrb[0].mxu0
        %1838 = vmatprep.mubr.bf16.mxu0 0
        %1839 = vmatmul.mubr.bf16.gmra.mrb[0].mxu0 %v1341
        %v1840 = vpop.f32.mrb[0].mxu0
        %v1841 = vadd.f32 0.0, %v1840
        %v1842 = vpop.f32.mrb[0].mxu0
        %v1843 = vpop.f32.mrb[0].mxu0
        %v1844 = vadd.f32 0.0, %v1843
        %v1845 = vpop.f32.mrb[0].mxu0
        %1846 = vmatprep.mubr.bf16.mxu0 0
        %1847 = vmatmul.mubr.bf16.gmra.mrb[0].mxu0 %v1344
        %v1848 = vpop.f32.mrb[0].mxu0
        %v1849 = vadd.f32 0.0, %v1848
        %v1850 = vpop.f32.mrb[0].mxu0
        %v1851 = vpop.f32.mrb[0].mxu0
        %v1852 = vadd.f32 0.0, %v1851
        %v1853 = vpop.f32.mrb[0].mxu0
        %1854 = vmatprep.mubr.bf16.mxu0 0
        %1855 = vmatmul.mubr.bf16.gmra.mrb[0].mxu0 %v1347
        %v1856 = vpop.f32.mrb[0].mxu0
        %v1857 = vadd.f32 0.0, %v1856
        %v1858 = vpop.f32.mrb[0].mxu0
        %v1859 = vpop.f32.mrb[0].mxu0
        %v1860 = vadd.f32 0.0, %v1859
        %v1861 = vpop.f32.mrb[0].mxu0
        %1862 = vmatprep.mubr.bf16.mxu0 0
        %1863 = vmatmul.mubr.bf16.gmra.mrb[0].mxu0 %v1350
        %v1864 = vpop.f32.mrb[0].mxu0
        %v1865 = vadd.f32 0.0, %v1864
        %v1866 = vpop.f32.mrb[0].mxu0
        %v1867 = vpop.f32.mrb[0].mxu0
        %v1868 = vadd.f32 0.0, %v1867
        %v1869 = vpop.f32.mrb[0].mxu0
        %1870 = vmatprep.mubr.bf16.mxu0 0
        %1871 = vmatmul.mubr.bf16.gmra.mrb[0].mxu0 %v1353
        %v1872 = vpop.f32.mrb[0].mxu0
        %v1873 = vadd.f32 0.0, %v1872
        %v1874 = vpop.f32.mrb[0].mxu0
        %v1875 = vpop.f32.mrb[0].mxu0
        %v1876 = vadd.f32 0.0, %v1875
        %v1877 = vpop.f32.mrb[0].mxu0
        %1878 = vmatprep.mubr.bf16.mxu0 0
        %1879 = vmatmul.mubr.bf16.gmra.mrb[0].mxu0 %v1356
        %v1880 = vpop.f32.mrb[0].mxu0
        %v1881 = vadd.f32 0.0, %v1880
        %v1882 = vpop.f32.mrb[0].mxu0
        %v1883 = vpop.f32.mrb[0].mxu0
        %v1884 = vadd.f32 0.0, %v1883
        %v1885 = vpop.f32.mrb[0].mxu0
        %1886 = vmatprep.mubr.bf16.mxu0 0
        %1887 = vmatmul.mubr.bf16.gmra.mrb[0].mxu0 %v1359
        %v1888 = vpop.f32.mrb[0].mxu0
        %v1889 = vadd.f32 0.0, %v1888
        %v1890 = vpop.f32.mrb[0].mxu0
        %v1891 = vpop.f32.mrb[0].mxu0
        %v1892 = vadd.f32 0.0, %v1891
        %v1893 = vpop.f32.mrb[0].mxu0
        %1894 = vmatprep.mubr.bf16.mxu0 0
        %1895 = vmatmul.mubr.bf16.gmra.mrb[0].mxu0 %v1362
        %v1896 = vpop.f32.mrb[0].mxu0
        %v1897 = vadd.f32 0.0, %v1896
        %v1898 = vpop.f32.mrb[0].mxu0
        %v1899 = vpop.f32.mrb[0].mxu0
        %v1900 = vadd.f32 0.0, %v1899
        %v1901 = vpop.f32.mrb[0].mxu0
        %1902 = vmatprep.mubr.bf16.mxu0 0
        %1903 = vmatmul.mubr.bf16.gmra.mrb[0].mxu0 %v1365
        %v1904 = vpop.f32.mrb[0].mxu0
        %v1905 = vadd.f32 0.0, %v1904
        %v1906 = vpop.f32.mrb[0].mxu0
        %v1907 = vpop.f32.mrb[0].mxu0
        %v1908 = vadd.f32 0.0, %v1907
        %v1909 = vpop.f32.mrb[0].mxu0
        %1910 = vmatprep.mubr.bf16.mxu0 0
        %1911 = vmatmul.mubr.bf16.gmra.mrb[0].mxu0 %v1368
        %v1912 = vpop.f32.mrb[0].mxu0
        %v1913 = vadd.f32 0.0, %v1912
        %v1914 = vpop.f32.mrb[0].mxu0
        %v1915 = vpop.f32.mrb[0].mxu0
        %v1916 = vadd.f32 0.0, %v1915
        %v1917 = vpop.f32.mrb[0].mxu0
        %1918 = vdwg.mxu0
        %v1919 = vmax.f32 %v1409, 0.0
        %v1920 = vmax.f32 %v1412, 0.0
        %v1921 = vmax.f32 %v1417, 0.0
        %v1922 = vmax.f32 %v1420, 0.0
        %v1923 = vmax.f32 %v1425, 0.0
        %v1924 = vmax.f32 %v1428, 0.0
        %v1925 = vmax.f32 %v1433, 0.0
        %v1926 = vmax.f32 %v1436, 0.0
        %v1927 = vmax.f32 %v1441, 0.0
        %v1928 = vmax.f32 %v1444, 0.0
        %v1929 = vmax.f32 %v1449, 0.0
        %v1930 = vmax.f32 %v1452, 0.0
        %v1931 = vmax.f32 %v1457, 0.0
        %v1932 = vmax.f32 %v1460, 0.0
        %v1933 = vmax.f32 %v1465, 0.0
        %v1934 = vmax.f32 %v1468, 0.0
        %v1935 = vmax.f32 %v1473, 0.0
        %v1936 = vmax.f32 %v1476, 0.0
        %v1937 = vmax.f32 %v1481, 0.0
        %v1938 = vmax.f32 %v1484, 0.0
        %v1939 = vmax.f32 %v1489, 0.0
        %v1940 = vmax.f32 %v1492, 0.0
        %v1941 = vmax.f32 %v1497, 0.0
        %v1942 = vmax.f32 %v1500, 0.0
        %v1943 = vmax.f32 %v1505, 0.0
        %v1944 = vmax.f32 %v1508, 0.0
        %v1945 = vmax.f32 %v1513, 0.0
        %v1946 = vmax.f32 %v1516, 0.0
        %v1947 = vmax.f32 %v1521, 0.0
        %v1948 = vmax.f32 %v1524, 0.0
        %v1949 = vmax.f32 %v1529, 0.0
        %v1950 = vmax.f32 %v1532, 0.0
        %v1951 = vmax.f32 %v1537, 0.0
        %v1952 = vmax.f32 %v1540, 0.0
        %v1953 = vmax.f32 %v1545, 0.0
        %v1954 = vmax.f32 %v1548, 0.0
        %v1955 = vmax.f32 %v1553, 0.0
        %v1956 = vmax.f32 %v1556, 0.0
        %v1957 = vmax.f32 %v1561, 0.0
        %v1958 = vmax.f32 %v1564, 0.0
        %v1959 = vmax.f32 %v1569, 0.0
        %v1960 = vmax.f32 %v1572, 0.0
        %v1961 = vmax.f32 %v1577, 0.0
        %v1962 = vmax.f32 %v1580, 0.0
        %v1963 = vmax.f32 %v1585, 0.0
        %v1964 = vmax.f32 %v1588, 0.0
        %v1965 = vmax.f32 %v1593, 0.0
        %v1966 = vmax.f32 %v1596, 0.0
        %v1967 = vmax.f32 %v1601, 0.0
        %v1968 = vmax.f32 %v1604, 0.0
        %v1969 = vmax.f32 %v1609, 0.0
        %v1970 = vmax.f32 %v1612, 0.0
        %v1971 = vmax.f32 %v1617, 0.0
        %v1972 = vmax.f32 %v1620, 0.0
        %v1973 = vmax.f32 %v1625, 0.0
        %v1974 = vmax.f32 %v1628, 0.0
        %v1975 = vmax.f32 %v1633, 0.0
        %v1976 = vmax.f32 %v1636, 0.0
        %v1977 = vmax.f32 %v1641, 0.0
        %v1978 = vmax.f32 %v1644, 0.0
        %v1979 = vmax.f32 %v1649, 0.0
        %v1980 = vmax.f32 %v1652, 0.0
        %v1981 = vmax.f32 %v1657, 0.0
        %v1982 = vmax.f32 %v1660, 0.0
        %v1983 = vmax.f32 %v1665, 0.0
        %v1984 = vmax.f32 %v1668, 0.0
        %v1985 = vmax.f32 %v1673, 0.0
        %v1986 = vmax.f32 %v1676, 0.0
        %v1987 = vmax.f32 %v1681, 0.0
        %v1988 = vmax.f32 %v1684, 0.0
        %v1989 = vmax.f32 %v1689, 0.0
        %v1990 = vmax.f32 %v1692, 0.0
        %v1991 = vmax.f32 %v1697, 0.0
        %v1992 = vmax.f32 %v1700, 0.0
        %v1993 = vmax.f32 %v1705, 0.0
        %v1994 = vmax.f32 %v1708, 0.0
        %v1995 = vmax.f32 %v1713, 0.0
        %v1996 = vmax.f32 %v1716, 0.0
        %v1997 = vmax.f32 %v1721, 0.0
        %v1998 = vmax.f32 %v1724, 0.0
        %v1999 = vmax.f32 %v1729, 0.0
        %v2000 = vmax.f32 %v1732, 0.0
        %v2001 = vmax.f32 %v1737, 0.0
        %v2002 = vmax.f32 %v1740, 0.0
        %v2003 = vmax.f32 %v1745, 0.0
        %v2004 = vmax.f32 %v1748, 0.0
        %v2005 = vmax.f32 %v1753, 0.0
        %v2006 = vmax.f32 %v1756, 0.0
        %v2007 = vmax.f32 %v1761, 0.0
        %v2008 = vmax.f32 %v1764, 0.0
        %v2009 = vmax.f32 %v1769, 0.0
        %v2010 = vmax.f32 %v1772, 0.0
        %v2011 = vmax.f32 %v1777, 0.0
        %v2012 = vmax.f32 %v1780, 0.0
        %v2013 = vmax.f32 %v1785, 0.0
        %v2014 = vmax.f32 %v1788, 0.0
        %v2015 = vmax.f32 %v1793, 0.0
        %v2016 = vmax.f32 %v1796, 0.0
        %v2017 = vmax.f32 %v1801, 0.0
        %v2018 = vmax.f32 %v1804, 0.0
        %v2019 = vmax.f32 %v1809, 0.0
        %v2020 = vmax.f32 %v1812, 0.0
        %v2021 = vmax.f32 %v1817, 0.0
        %v2022 = vmax.f32 %v1820, 0.0
        %v2023 = vmax.f32 %v1825, 0.0
        %v2024 = vmax.f32 %v1828, 0.0
        %v2025 = vmax.f32 %v1833, 0.0
        %v2026 = vmax.f32 %v1836, 0.0
        %v2027 = vmax.f32 %v1841, 0.0
        %v2028 = vmax.f32 %v1844, 0.0
        %v2029 = vmax.f32 %v1849, 0.0
        %v2030 = vmax.f32 %v1852, 0.0
        %v2031 = vmax.f32 %v1857, 0.0
        %v2032 = vmax.f32 %v1860, 0.0
        %v2033 = vmax.f32 %v1865, 0.0
        %v2034 = vmax.f32 %v1868, 0.0
        %v2035 = vmax.f32 %v1873, 0.0
        %v2036 = vmax.f32 %v1876, 0.0
        %v2037 = vmax.f32 %v1881, 0.0
        %v2038 = vmax.f32 %v1884, 0.0
        %v2039 = vmax.f32 %v1889, 0.0
        %v2040 = vmax.f32 %v1892, 0.0
        %v2041 = vmax.f32 %v1897, 0.0
        %v2042 = vmax.f32 %v1900, 0.0
        %v2043 = vmax.f32 %v1905, 0.0
        %v2044 = vmax.f32 %v1908, 0.0
        %v2045 = vmax.f32 %v1913, 0.0
        %v2046 = vmax.f32 %v1916, 0.0
        %v2047 = vld [vmem:[#allocation2] sm:$0xff]
        %v2048 = vadd.f32 %v1919, %v1920
        %v2049 = vadd.f32 %v2048, %v1921
        %v2050 = vadd.f32 %v2049, %v1922
        %v2051 = vadd.f32 %v2050, %v1923
        %v2052 = vadd.f32 %v2051, %v1924
        %v2053 = vadd.f32 %v2052, %v1925
        %v2054 = vadd.f32 %v2053, %v1926
        %v2055 = vadd.f32 %v2054, %v1927
        %v2056 = vadd.f32 %v2055, %v1928
        %v2057 = vadd.f32 %v2056, %v1929
        %v2058 = vadd.f32 %v2057, %v1930
        %v2059 = vadd.f32 %v2058, %v1931
        %v2060 = vadd.f32 %v2059, %v1932
        %v2061 = vadd.f32 %v2060, %v1933
        %v2062 = vadd.f32 %v2061, %v1934
        %v2063 = vrot.slane %v2062, 4
        %v2064 = vadd.f32 %v2062, %v2063
        %v2065 = vrot.slane %v2064, 2
        %v2066 = vadd.f32 %v2064, %v2065
        %v2067 = vrot.slane %v2066, 1
        %v2068 = vadd.f32 %v2066, %v2067
        %v2069 = vadd.f32 %v1935, %v1936
        %v2070 = vadd.f32 %v2069, %v1937
        %v2071 = vadd.f32 %v2070, %v1938
        %v2072 = vadd.f32 %v2071, %v1939
        %v2073 = vadd.f32 %v2072, %v1940
        %v2074 = vadd.f32 %v2073, %v1941
        %v2075 = vadd.f32 %v2074, %v1942
        %v2076 = vadd.f32 %v2075, %v1943
        %v2077 = vadd.f32 %v2076, %v1944
        %v2078 = vadd.f32 %v2077, %v1945
        %v2079 = vadd.f32 %v2078, %v1946
        %v2080 = vadd.f32 %v2079, %v1947
        %v2081 = vadd.f32 %v2080, %v1948
        %v2082 = vadd.f32 %v2081, %v1949
        %v2083 = vadd.f32 %v2082, %v1950
        %v2084 = vrot.slane %v2083, 4
        %v2085 = vadd.f32 %v2083, %v2084
        %v2086 = vrot.slane %v2085, 2
        %v2087 = vadd.f32 %v2085, %v2086
        %v2088 = vrot.slane %v2087, 1
        %v2089 = vadd.f32 %v2087, %v2088
        %v2090 = vadd.f32 %v1951, %v1952
        %v2091 = vadd.f32 %v2090, %v1953
        %v2092 = vadd.f32 %v2091, %v1954
        %v2093 = vadd.f32 %v2092, %v1955
        %v2094 = vadd.f32 %v2093, %v1956
        %v2095 = vadd.f32 %v2094, %v1957
        %v2096 = vadd.f32 %v2095, %v1958
        %v2097 = vadd.f32 %v2096, %v1959
        %v2098 = vadd.f32 %v2097, %v1960
        %v2099 = vadd.f32 %v2098, %v1961
        %v2100 = vadd.f32 %v2099, %v1962
        %v2101 = vadd.f32 %v2100, %v1963
        %v2102 = vadd.f32 %v2101, %v1964
        %v2103 = vadd.f32 %v2102, %v1965
        %v2104 = vadd.f32 %v2103, %v1966
        %v2105 = vrot.slane %v2104, 4
        %v2106 = vadd.f32 %v2104, %v2105
        %v2107 = vrot.slane %v2106, 2
        %v2108 = vadd.f32 %v2106, %v2107
        %v2109 = vrot.slane %v2108, 1
        %v2110 = vadd.f32 %v2108, %v2109
        %v2111 = vadd.f32 %v1967, %v1968
        %v2112 = vadd.f32 %v2111, %v1969
        %v2113 = vadd.f32 %v2112, %v1970
        %v2114 = vadd.f32 %v2113, %v1971
        %v2115 = vadd.f32 %v2114, %v1972
        %v2116 = vadd.f32 %v2115, %v1973
        %v2117 = vadd.f32 %v2116, %v1974
        %v2118 = vadd.f32 %v2117, %v1975
        %v2119 = vadd.f32 %v2118, %v1976
        %v2120 = vadd.f32 %v2119, %v1977
        %v2121 = vadd.f32 %v2120, %v1978
        %v2122 = vadd.f32 %v2121, %v1979
        %v2123 = vadd.f32 %v2122, %v1980
        %v2124 = vadd.f32 %v2123, %v1981
        %v2125 = vadd.f32 %v2124, %v1982
        %v2126 = vrot.slane %v2125, 4
        %v2127 = vadd.f32 %v2125, %v2126
        %v2128 = vrot.slane %v2127, 2
        %v2129 = vadd.f32 %v2127, %v2128
        %v2130 = vrot.slane %v2129, 1
        %v2131 = vadd.f32 %v2129, %v2130
        %v2132 = vadd.f32 %v1983, %v1984
        %v2133 = vadd.f32 %v2132, %v1985
        %v2134 = vadd.f32 %v2133, %v1986
        %v2135 = vadd.f32 %v2134, %v1987
        %v2136 = vadd.f32 %v2135, %v1988
        %v2137 = vadd.f32 %v2136, %v1989
        %v2138 = vadd.f32 %v2137, %v1990
        %v2139 = vadd.f32 %v2138, %v1991
        %v2140 = vadd.f32 %v2139, %v1992
        %v2141 = vadd.f32 %v2140, %v1993
        %v2142 = vadd.f32 %v2141, %v1994
        %v2143 = vadd.f32 %v2142, %v1995
        %v2144 = vadd.f32 %v2143, %v1996
        %v2145 = vadd.f32 %v2144, %v1997
        %v2146 = vadd.f32 %v2145, %v1998
        %v2147 = vrot.slane %v2146, 4
        %v2148 = vadd.f32 %v2146, %v2147
        %v2149 = vrot.slane %v2148, 2
        %v2150 = vadd.f32 %v2148, %v2149
        %v2151 = vrot.slane %v2150, 1
        %v2152 = vadd.f32 %v2150, %v2151
        %v2153 = vadd.f32 %v1999, %v2000
        %v2154 = vadd.f32 %v2153, %v2001
        %v2155 = vadd.f32 %v2154, %v2002
        %v2156 = vadd.f32 %v2155, %v2003
        %v2157 = vadd.f32 %v2156, %v2004
        %v2158 = vadd.f32 %v2157, %v2005
        %v2159 = vadd.f32 %v2158, %v2006
        %v2160 = vadd.f32 %v2159, %v2007
        %v2161 = vadd.f32 %v2160, %v2008
        %v2162 = vadd.f32 %v2161, %v2009
        %v2163 = vadd.f32 %v2162, %v2010
        %v2164 = vadd.f32 %v2163, %v2011
        %v2165 = vadd.f32 %v2164, %v2012
        %v2166 = vadd.f32 %v2165, %v2013
        %v2167 = vadd.f32 %v2166, %v2014
        %v2168 = vrot.slane %v2167, 4
        %v2169 = vadd.f32 %v2167, %v2168
        %v2170 = vrot.slane %v2169, 2
        %v2171 = vadd.f32 %v2169, %v2170
        %v2172 = vrot.slane %v2171, 1
        %v2173 = vadd.f32 %v2171, %v2172
        %v2174 = vadd.f32 %v2015, %v2016
        %v2175 = vadd.f32 %v2174, %v2017
        %v2176 = vadd.f32 %v2175, %v2018
        %v2177 = vadd.f32 %v2176, %v2019
        %v2178 = vadd.f32 %v2177, %v2020
        %v2179 = vadd.f32 %v2178, %v2021
        %v2180 = vadd.f32 %v2179, %v2022
        %v2181 = vadd.f32 %v2180, %v2023
        %v2182 = vadd.f32 %v2181, %v2024
        %v2183 = vadd.f32 %v2182, %v2025
        %v2184 = vadd.f32 %v2183, %v2026
        %v2185 = vadd.f32 %v2184, %v2027
        %v2186 = vadd.f32 %v2185, %v2028
        %v2187 = vadd.f32 %v2186, %v2029
        %v2188 = vadd.f32 %v2187, %v2030
        %v2189 = vrot.slane %v2188, 4
        %v2190 = vadd.f32 %v2188, %v2189
        %v2191 = vrot.slane %v2190, 2
        %v2192 = vadd.f32 %v2190, %v2191
        %v2193 = vrot.slane %v2192, 1
        %v2194 = vadd.f32 %v2192, %v2193
        %v2195 = vadd.f32 %v2031, %v2032
        %v2196 = vadd.f32 %v2195, %v2033
        %v2197 = vadd.f32 %v2196, %v2034
        %v2198 = vadd.f32 %v2197, %v2035
        %v2199 = vadd.f32 %v2198, %v2036
        %v2200 = vadd.f32 %v2199, %v2037
        %v2201 = vadd.f32 %v2200, %v2038
        %v2202 = vadd.f32 %v2201, %v2039
        %v2203 = vadd.f32 %v2202, %v2040
        %v2204 = vadd.f32 %v2203, %v2041
        %v2205 = vadd.f32 %v2204, %v2042
        %v2206 = vadd.f32 %v2205, %v2043
        %v2207 = vadd.f32 %v2206, %v2044
        %v2208 = vadd.f32 %v2207, %v2045
        %v2209 = vadd.f32 %v2208, %v2046
        %v2210 = vrot.slane %v2209, 4
        %v2211 = vadd.f32 %v2209, %v2210
        %v2212 = vrot.slane %v2211, 2
        %v2213 = vadd.f32 %v2211, %v2212
        %v2214 = vrot.slane %v2213, 1
        %v2215 = vadd.f32 %v2213, %v2214
        %vm2224 = vcmask 1041409
        %v2225 = vsel %vm2224, %v2089, %v2068
        %vm2226 = vcmask 1042434
        %v2227 = vsel %vm2226, %v2110, %v2225
        %vm2228 = vcmask 1043459
        %v2229 = vsel %vm2228, %v2131, %v2227
        %vm2230 = vcmask 1044484
        %v2231 = vsel %vm2230, %v2152, %v2229
        %vm2232 = vcmask 1045509
        %v2233 = vsel %vm2232, %v2173, %v2231
        %vm2234 = vcmask 1046534
        %v2235 = vsel %vm2234, %v2194, %v2233
        %vm2236 = vcmask 1047559
        %v2237 = vsel %vm2236, %v2215, %v2235
        %v2239 = vadd.f32 %v2047, %v2237
        %2240 = vst [vmem:[#allocation2] sm:$0xff] %v2239
        %p2241 = scmp.eq.s32.totalorder %s18, 1
        // Predicated region
        $region74: #{forward.2} parent=64 // pred_check
          %p2242 = pneg %p2241
        $region75: #{forward.2} parent=64 // pred_check_branch
          %2244 = sbr.rel (%p2242) target = $region77
        $region76: #{forward.2} parent=64 // pred_region
          %v2245 = vld [vmem:[#allocation2] sm:$0xff]
          %v2246 = vmul.f32 %v2245, 0.00390625
          %2247 = vst [vmem:[%s721] sm:$0xff] %v2246
        $region77: #{forward.2} parent=64 // pred_fallthru
          _
        %p2248 = scmp.lt.s32.totalorder %s17, 1
        %s2249 = scalar_select %p2248, %s17, 1
        %s2250 = smul.addr %s2249, 8
        %s2251 = scalar_lea.vmem %s2, %s2250
        // Predicated region
        $region78: #{forward.2} parent=64 // pred_check
          %p2252 = pneg %p95
        $region79: #{forward.2} parent=64 // pred_check_branch
          %2254 = sbr.rel (%p2252) target = $region81
        $region80: #{forward.2} parent=64 // pred_region
          _
        $region81: #{forward.2} parent=64 // pred_fallthru
          _
      $region65: #{forward.2} parent=5 // pred_fallthru
        _
      %p2255 = scmp.le.s32.totalorder 2, %s8
      // Predicated region
      $region82: #{forward.2} parent=5 // pred_check
        %p2256 = pneg %p2255
      $region83: #{forward.2} parent=5 // pred_check_branch
        %2258 = sbr.rel (%p2256) target = $region85
      $region84: #{forward.2} parent=5 // pred_region
        %s2259 = ssub.s32 %s8, 2
        // Predicated region
        $region86: #{forward.2} parent=84 // pred_check
          %p2260 = pneg %p101
        $region87: #{forward.2} parent=84 // pred_check_branch
          %2262 = sbr.rel (%p2260) target = $region89
        $region88: #{forward.2} parent=84 // pred_region
          %p2263 = scmp.lt.s32.totalorder %s19, 1
          %s2264 = scalar_select %p2263, %s19, 1
          %s2265 = smul.addr %s2264, 8
          %s2266 = scalar_lea.vmem %s2, %s2265
        $region89: #{forward.2} parent=84 // pred_fallthru
          _
      $region85: #{forward.2} parent=5 // pred_fallthru
        _
    $region6: #{forward.2} parent=1 // loop_footer
      %s12 = sadd.s32 1, %s8
    $region7: #{forward.2} parent=1 // loop_footer_branch
      %7 = sbr.rel target = $region3
    $region8: #{forward.2} parent=1 // loop_exit
      _

</llo_original>
